<compile_context>
chip_gen: v7x
topology: tpu7x:2x2x1
jax: 0.10.0
libtpu: 0.0.40
codegen_flags: <defaults>
</compile_context>

<pallas_src>
import functools

import jax
import jax.numpy as jnp
from jax.experimental import pallas as pl
from jax.experimental.pallas import tpu as pltpu

NUM_CLASSES = 2
NUM_CHANNELS = 3
N_CROPS = 9
STEM_OUT = 32      # nn.Conv2d(num_channels, 32, 3, stride=2, padding=1)
FEAT_DIM = 1280    # efficientnet_b0 feature width


# ---------------------------------------------------------------------------
# Small host-side helpers (run at trace time, plain Python)
# ---------------------------------------------------------------------------
def _pick_tile(p, lo=64, hi=512):
    """Largest multiple-of-8 divisor of p in [lo, hi] giving >=2 grid steps.
    Falls back to the largest multiple-of-8 divisor <= hi, then to p itself."""
    divs = [t for t in range(8, p + 1, 8) if p % t == 0]
    in_range = [t for t in divs if lo <= t <= hi and p // t >= 2]
    if in_range:
        return max(in_range)
    small = [t for t in divs if t <= hi]
    return max(small) if small else p


def _tpu_generation():
    try:
        kind = jax.devices()[0].device_kind.lower()
    except Exception:
        return 0
    for g in (7, 6, 5, 4, 3, 2):
        if "v%d" % g in kind:
            return g
    return 0


def _vmem_limit_bytes():
    """~75% of physical VMEM (48 MiB on v7x's 64 MiB), capped at 64 MiB."""
    try:
        cap = int(pltpu.get_tpu_info().vmem_capacity_bytes)
    except Exception:
        cap = 64 << 20
    return int(min((cap * 3) // 4, 64 << 20))


# ---------------------------------------------------------------------------
# Fused Pallas kernel: stem conv + SiLU -> 1x1 to 1280 + SiLU -> global mean
#                      over crops*spatial -> fc_final
# ---------------------------------------------------------------------------
def _fused_forward_kernel(patches_ref, w1_ref, b1_ref, w2_ref, b2_ref,
                          fcw_ref, fcb_ref, feat_vec_ref, out_ref, acc_ref,
                          *, inv_p, epi_bf16):
    k = pl.program_id(1)

    @pl.when(k == 0)
    def _():
        acc_ref[...] = jnp.zeros_like(acc_ref)

    # Stem conv as a matmul over 27-wide im2col patches (bf16 MXU, f32 acc).
    h = jnp.dot(patches_ref[0], w1_ref[...], preferred_element_type=jnp.float32)
    h = h + b1_ref[...]
    h = h * jax.nn.sigmoid(h)                       # SiLU in f32 (lane-sparse, cheap)

    # 1x1 projection to 1280 + bias + SiLU.
    y = jnp.dot(h.astype(jnp.bfloat16), w2_ref[...],
                preferred_element_type=jnp.float32)
    y = y + b2_ref[...]
    if epi_bf16:
        # v6e/v7x: bf16 EUP/VPU epilogue halves SiLU work on the wide activation.
        y = y.astype(jnp.bfloat16)
    y = y * jax.nn.sigmoid(y)

    # Running sum for the global (crops*spatial) average pool, f32 accumulation.
    acc_ref[...] += jnp.sum(y.astype(jnp.float32), axis=0, keepdims=True)

    @pl.when(k == pl.num_programs(1) - 1)
    def _():
        fv = acc_ref[...] * inv_p                                 # (1, 1280) f32
        feat_vec_ref[0] = fv.astype(feat_vec_ref.dtype)
        o = jnp.dot(fv, fcw_ref[...], preferred_element_type=jnp.float32)
        o = o + fcb_ref[...]
        out_ref[0] = o.astype(out_ref.dtype)                      # Dropout(p=0) = id


def fused_forward(patches, stem_w, stem_b, head_w, head_b, fc_w, fc_b):
    """patches:(bs, P, 27) -> (out:(bs,num_classes), feat_vec:(bs,1280))."""
    bs, P, K1 = patches.shape
    C1 = stem_w.shape[1]          # 32
    C2 = head_w.shape[1]          # 1280
    NC = fc_w.shape[1]            # num_classes
    tm = _pick_tile(P)
    epi_bf16 = _tpu_generation() >= 6

    b1 = stem_b.reshape(1, C1).astype(jnp.float32)
    b2 = head_b.reshape(1, C2).astype(jnp.float32)
    fcb = fc_b.reshape(1, NC).astype(jnp.float32)
    kernel = functools.partial(_fused_forward_kernel,
                               inv_p=1.0 / float(P), epi_bf16=epi_bf16)

    feat_vec, out = pl.pallas_call(
        kernel,
        out_shape=(jax.ShapeDtypeStruct((bs, 1, C2), jnp.float32),
                   jax.ShapeDtypeStruct((bs, 1, NC), jnp.float32)),
        grid_spec=pltpu.PrefetchScalarGridSpec(
            num_scalar_prefetch=0,
            grid=(bs, P // tm),
            in_specs=[
                pl.BlockSpec((1, tm, K1), lambda b, k: (b, k, 0)),
                pl.BlockSpec((K1, C1), lambda b, k: (0, 0)),
                pl.BlockSpec((1, C1), lambda b, k: (0, 0)),
                pl.BlockSpec((C1, C2), lambda b, k: (0, 0)),
                pl.BlockSpec((1, C2), lambda b, k: (0, 0)),
                pl.BlockSpec((C2, NC), lambda b, k: (0, 0)),
                pl.BlockSpec((1, NC), lambda b, k: (0, 0)),
            ],
            out_specs=[
                pl.BlockSpec((1, 1, C2), lambda b, k: (b, 0, 0)),
                pl.BlockSpec((1, 1, NC), lambda b, k: (b, 0, 0)),
            ],
            scratch_shapes=[pltpu.VMEM((1, C2), jnp.float32)],
        ),
        compiler_params=pltpu.CompilerParams(
            dimension_semantics=("parallel", "arbitrary"),
            vmem_limit_bytes=_vmem_limit_bytes(),
        ),
    )(patches.astype(jnp.bfloat16), stem_w.astype(jnp.bfloat16), b1,
      head_w.astype(jnp.bfloat16), b2, fc_w.astype(jnp.float32), fcb)

    return out.reshape(bs, NC), feat_vec.reshape(bs, C2)


# ---------------------------------------------------------------------------
# Glue (plain JAX): layout transforms, im2col, parameter setup
# ---------------------------------------------------------------------------
def im2col_3x3_s2_p1(x_nhwc):
    """(N,H,W,C) -> (N, OH, OW, 3*3*C) patches for a 3x3 stride-2 pad-1 conv.
    OH = floor((H-1)/2)+1 (matches PyTorch for both even and odd H/W)."""
    n, h, w, c = x_nhwc.shape
    oh, ow = (h - 1) // 2 + 1, (w - 1) // 2 + 1
    xp = jnp.pad(x_nhwc, ((0, 0), (1, 1), (1, 1), (0, 0)))
    cols = []
    for kh in range(3):
        for kw in range(3):
            cols.append(xp[:, kh:kh + 2 * oh:2, kw:kw + 2 * ow:2, :])
    return jnp.concatenate(cols, axis=-1)   # channel order (kh, kw, cin)


def init_params(key):
    ks = jax.random.split(key, 6)
    s = 0.05
    return dict(
        # stem conv weight stored as (kh, kw, cin, cout) to match im2col ordering
        stem_w=jax.random.normal(ks[0], (3, 3, NUM_CHANNELS, STEM_OUT), jnp.float32) * s,
        stem_b=jax.random.normal(ks[1], (STEM_OUT,), jnp.float32) * s,
        head_w=jax.random.normal(ks[2], (STEM_OUT, FEAT_DIM), jnp.float32) * s,
        head_b=jax.random.normal(ks[3], (FEAT_DIM,), jnp.float32) * s,
        fc_w=jax.random.normal(ks[4], (FEAT_DIM, NUM_CLASSES), jnp.float32) * s,
        fc_b=jax.random.normal(ks[5], (NUM_CLASSES,), jnp.float32) * s,
    )


def avgpool_cnn_forward(params, x):
    """x: (bs, ncrops, C, H, W) f32 -> (out:(bs,num_classes), feat_vec:(bs,1280))."""
    bs, ncrops, c, h, w = x.shape
    xf = x.reshape(bs * ncrops, c, h, w).astype(jnp.bfloat16)   # bf16 on the HBM side
    x_nhwc = jnp.transpose(xf, (0, 2, 3, 1))                    # NCHW -> NHWC

    patches = im2col_3x3_s2_p1(x_nhwc)                          # (N, OH, OW, 9*c) bf16
    n, oh, ow, k = patches.shape
    patches = patches.reshape(bs, ncrops * oh * ow, k)          # tiles per batch element

    stem_w2 = params["stem_w"].reshape(9 * c, STEM_OUT)
    # One fused kernel: stem+SiLU -> 1x1(1280)+SiLU -> mean over crops*spatial
    # -> fc_final.  (AdaptiveAvgPool2d(1) then AvgPool1d(ncrops) == one uniform
    #  mean over crops*spatial — exact.)
    out, feat_vec = fused_forward(patches, stem_w2, params["stem_b"],
                                  params["head_w"], params["head_b"],
                                  params["fc_w"], params["fc_b"])
    return out, feat_vec


if __name__ == "__main__":
    key = jax.random.PRNGKey(0)
    pkey, xkey = jax.random.split(key)
    params = init_params(pkey)
    x = jax.random.normal(xkey, (2, N_CROPS, NUM_CHANNELS, 16, 16), jnp.float32)

    out, feat_vec = jax.jit(avgpool_cnn_forward)(params, x)
    jax.block_until_ready((out, feat_vec))

    assert out.shape == (2, NUM_CLASSES), out.shape
    assert feat_vec.shape == (2, FEAT_DIM), feat_vec.shape
    assert jnp.all(jnp.isfinite(out)) and jnp.all(jnp.isfinite(feat_vec))
    print("KERNEL_OK")
</pallas_src>

<mosaic_0001>
module attributes {stable_mosaic.version = 11 : i64} {
  func.func @_fused_forward_kernel(%arg0: i32, %arg1: i32, %arg2: memref<1x288x27xbf16, #tpu.memory_space<vmem>>, %arg3: memref<27x32xbf16, #tpu.memory_space<vmem>>, %arg4: memref<1x32xf32, #tpu.memory_space<vmem>>, %arg5: memref<32x1280xbf16, #tpu.memory_space<vmem>>, %arg6: memref<1x1280xf32, #tpu.memory_space<vmem>>, %arg7: memref<1280x2xf32, #tpu.memory_space<vmem>>, %arg8: memref<1x2xf32, #tpu.memory_space<vmem>>, %arg9: memref<1x1x1280xf32, #tpu.memory_space<vmem>>, %arg10: memref<1x1x2xf32, #tpu.memory_space<vmem>>, %arg11: memref<1x1280xf32, #tpu.memory_space<vmem>>) attributes {dimension_semantics = [#tpu.dimension_semantics<parallel>, #tpu.dimension_semantics<arbitrary>], iteration_bounds = array<i64: 2, 2>, scalar_prefetch = 0 : i64, scratch_operands = 1 : i64, tpu.core_type = #tpu.core_type<tc>, window_params = [{transform_indices = @transform_0, window_bounds = array<i64: 1, 288, 27>}, {pipeline_mode = #tpu.pipeline_mode<synchronous>, transform_indices = @transform_1, window_bounds = array<i64: 27, 32>}, {pipeline_mode = #tpu.pipeline_mode<synchronous>, transform_indices = @transform_2, window_bounds = array<i64: 1, 32>}, {pipeline_mode = #tpu.pipeline_mode<synchronous>, transform_indices = @transform_3, window_bounds = array<i64: 32, 1280>}, {pipeline_mode = #tpu.pipeline_mode<synchronous>, transform_indices = @transform_4, window_bounds = array<i64: 1, 1280>}, {pipeline_mode = #tpu.pipeline_mode<synchronous>, transform_indices = @transform_5, window_bounds = array<i64: 1280, 2>}, {pipeline_mode = #tpu.pipeline_mode<synchronous>, transform_indices = @transform_6, window_bounds = array<i64: 1, 2>}, {transform_indices = @transform_7, window_bounds = array<i64: 1, 1, 1280>}, {transform_indices = @transform_8, window_bounds = array<i64: 1, 1, 2>}]} {
    %c0_i32 = arith.constant 0 : i32
    %0 = arith.cmpi eq, %arg1, %c0_i32 : i32
    %1 = arith.extui %0 : i1 to i32
    %c0_i32_0 = arith.constant 0 : i32
    %2 = arith.cmpi ne, %1, %c0_i32_0 : i32
    scf.if %2 {
      %cst_20 = arith.constant 0.000000e+00 : f32
      %36 = vector.broadcast %cst_20 : f32 to vector<1x1280xf32>
      %c0_21 = arith.constant 0 : index
      %c0_22 = arith.constant 0 : index
      %37 = vector.load %arg11[%c0_21, %c0_22] : memref<1x1280xf32, #tpu.memory_space<vmem>>, vector<1x1280xf32>
      tpu.vector_store %arg11[%c0_21, %c0_22], %36 {strides = array<i32>} : memref<1x1280xf32, #tpu.memory_space<vmem>>, vector<1x1280xf32>,
    } else {
    }
    %c0 = arith.constant 0 : index
    %c0_1 = arith.constant 0 : index
    %c0_2 = arith.constant 0 : index
    %3 = vector.load %arg2[%c0, %c0_1, %c0_2] : memref<1x288x27xbf16, #tpu.memory_space<vmem>>, vector<1x288x27xbf16>
    %4 = vector.shape_cast %3 : vector<1x288x27xbf16> to vector<288x27xbf16>
    %c0_3 = arith.constant 0 : index
    %c0_4 = arith.constant 0 : index
    %5 = vector.load %arg3[%c0_3, %c0_4] : memref<27x32xbf16, #tpu.memory_space<vmem>>, vector<27x32xbf16>
    %cst = arith.constant dense<0.000000e+00> : vector<288x32xf32>
    %6 = tpu.matmul %4, %5, %cst {dimension_numbers = #tpu.dot_dimension_numbers<[1], [0], [0], [1], [0, 0, 1, 1], [], []>} : vector<288x27xbf16>, vector<27x32xbf16>, vector<288x32xf32> -> vector<288x32xf32>
    %c0_5 = arith.constant 0 : index
    %c0_6 = arith.constant 0 : index
    %7 = vector.load %arg4[%c0_5, %c0_6] : memref<1x32xf32, #tpu.memory_space<vmem>>, vector<1x32xf32>
    %8 = vector.broadcast %7 : vector<1x32xf32> to vector<288x32xf32>
    %9 = arith.addf %6, %8 : vector<288x32xf32>
    %10 = arith.negf %9 : vector<288x32xf32>
    %11 = math.exp %10 : vector<288x32xf32>
    %cst_7 = arith.constant 1.000000e+00 : f32
    %12 = vector.broadcast %cst_7 : f32 to vector<288x32xf32>
    %13 = arith.addf %12, %11 : vector<288x32xf32>
    %14 = arith.divf %12, %13 : vector<288x32xf32>
    %15 = arith.mulf %9, %14 : vector<288x32xf32>
    %16 = arith.truncf %15 : vector<288x32xf32> to vector<288x32xbf16>
    %c0_8 = arith.constant 0 : index
    %c0_9 = arith.constant 0 : index
    %17 = vector.load %arg5[%c0_8, %c0_9] : memref<32x1280xbf16, #tpu.memory_space<vmem>>, vector<32x1280xbf16>
    %cst_10 = arith.constant dense<0.000000e+00> : vector<288x1280xf32>
    %18 = tpu.matmul %16, %17, %cst_10 {dimension_numbers = #tpu.dot_dimension_numbers<[1], [0], [0], [1], [0, 0, 1, 1], [], []>} : vector<288x32xbf16>, vector<32x1280xbf16>, vector<288x1280xf32> -> vector<288x1280xf32>
    %c0_11 = arith.constant 0 : index
    %c0_12 = arith.constant 0 : index
    %19 = vector.load %arg6[%c0_11, %c0_12] : memref<1x1280xf32, #tpu.memory_space<vmem>>, vector<1x1280xf32>
    %20 = vector.broadcast %19 : vector<1x1280xf32> to vector<288x1280xf32>
    %21 = arith.addf %18, %20 : vector<288x1280xf32>
    %22 = arith.negf %21 : vector<288x1280xf32>
    %23 = math.exp %22 : vector<288x1280xf32>
    %cst_13 = arith.constant 1.000000e+00 : f32
    %24 = vector.broadcast %cst_13 : f32 to vector<288x1280xf32>
    %25 = arith.addf %24, %23 : vector<288x1280xf32>
    %26 = arith.divf %24, %25 : vector<288x1280xf32>
    %27 = arith.mulf %21, %26 : vector<288x1280xf32>
    %c0_14 = arith.constant 0 : index
    %c0_15 = arith.constant 0 : index
    %28 = vector.load %arg11[%c0_14, %c0_15] : memref<1x1280xf32, #tpu.memory_space<vmem>>, vector<1x1280xf32>
    %cst_16 = arith.constant dense<0.000000e+00> : vector<1280xf32>
    %29 = vector.multi_reduction <add>, %27, %cst_16 [0] : vector<288x1280xf32> to vector<1280xf32>
    %30 = vector.shape_cast %29 : vector<1280xf32> to vector<1x1280xf32>
    %31 = arith.addf %28, %30 : vector<1x1280xf32>
    %c0_17 = arith.constant 0 : index
    %c0_18 = arith.constant 0 : index
    %32 = vector.load %arg11[%c0_17, %c0_18] : memref<1x1280xf32, #tpu.memory_space<vmem>>, vector<1x1280xf32>
    tpu.vector_store %arg11[%c0_17, %c0_18], %31 {strides = array<i32>} : memref<1x1280xf32, #tpu.memory_space<vmem>>, vector<1x1280xf32>,
    %c1_i32 = arith.constant 1 : i32
    %33 = arith.cmpi eq, %arg1, %c1_i32 : i32
    %34 = arith.extui %33 : i1 to i32
    %c0_i32_19 = arith.constant 0 : i32
    %35 = arith.cmpi ne, %34, %c0_i32_19 : i32
    scf.if %35 {
      %c0_20 = arith.constant 0 : index
      %c0_21 = arith.constant 0 : index
      %36 = vector.load %arg11[%c0_20, %c0_21] : memref<1x1280xf32, #tpu.memory_space<vmem>>, vector<1x1280xf32>
      %cst_22 = arith.constant 0.00173611112 : f32
      %37 = vector.broadcast %cst_22 : f32 to vector<1x1280xf32>
      %38 = arith.mulf %36, %37 : vector<1x1280xf32>
      %c0_23 = arith.constant 0 : index
      %c0_24 = arith.constant 0 : index
      %c0_25 = arith.constant 0 : index
      %39 = vector.load %arg9[%c0_23, %c0_24, %c0_25] : memref<1x1x1280xf32, #tpu.memory_space<vmem>>, vector<1x1x1280xf32>
      %40 = vector.shape_cast %39 : vector<1x1x1280xf32> to vector<1x1280xf32>
      %41 = vector.shape_cast %38 : vector<1x1280xf32> to vector<1x1x1280xf32>
      tpu.vector_store %arg9[%c0_23, %c0_24, %c0_25], %41 {strides = array<i32>} : memref<1x1x1280xf32, #tpu.memory_space<vmem>>, vector<1x1x1280xf32>,
      %c0_26 = arith.constant 0 : index
      %c0_27 = arith.constant 0 : index
      %42 = vector.load %arg7[%c0_26, %c0_27] : memref<1280x2xf32, #tpu.memory_space<vmem>>, vector<1280x2xf32>
      %cst_28 = arith.constant dense<0.000000e+00> : vector<1x2xf32>
      %43 = tpu.matmul %38, %42, %cst_28 {dimension_numbers = #tpu.dot_dimension_numbers<[1], [0], [0], [1], [0, 0, 1, 1], [], []>} : vector<1x1280xf32>, vector<1280x2xf32>, vector<1x2xf32> -> vector<1x2xf32>
      %c0_29 = arith.constant 0 : index
      %c0_30 = arith.constant 0 : index
      %44 = vector.load %arg8[%c0_29, %c0_30] : memref<1x2xf32, #tpu.memory_space<vmem>>, vector<1x2xf32>
      %45 = arith.addf %43, %44 : vector<1x2xf32>
      %c0_31 = arith.constant 0 : index
      %c0_32 = arith.constant 0 : index
      %c0_33 = arith.constant 0 : index
      %46 = vector.load %arg10[%c0_31, %c0_32, %c0_33] : memref<1x1x2xf32, #tpu.memory_space<vmem>>, vector<1x1x2xf32>
      %47 = vector.shape_cast %46 : vector<1x1x2xf32> to vector<1x2xf32>
      %48 = vector.shape_cast %45 : vector<1x2xf32> to vector<1x1x2xf32>
      tpu.vector_store %arg10[%c0_31, %c0_32, %c0_33], %48 {strides = array<i32>} : memref<1x1x2xf32, #tpu.memory_space<vmem>>, vector<1x1x2xf32>,
    } else {
    }
    return
  }
  func.func @transform_0(%arg0: i32, %arg1: i32) -> (i32, i32, i32) {
    %c0_i32 = arith.constant 0 : i32
    %c0_i32_0 = arith.constant 0 : i32
    return %arg0, %arg1, %c0_i32 : i32, i32, i32
  }
  func.func @transform_1(%arg0: i32, %arg1: i32) -> (i32, i32) {
    %c0_i32 = arith.constant 0 : i32
    %c0_i32_0 = arith.constant 0 : i32
    %c0_i32_1 = arith.constant 0 : i32
    return %c0_i32, %c0_i32_0 : i32, i32
  }
  func.func @transform_2(%arg0: i32, %arg1: i32) -> (i32, i32) {
    %c0_i32 = arith.constant 0 : i32
    %c0_i32_0 = arith.constant 0 : i32
    %c0_i32_1 = arith.constant 0 : i32
    return %c0_i32, %c0_i32_0 : i32, i32
  }
  func.func @transform_3(%arg0: i32, %arg1: i32) -> (i32, i32) {
    %c0_i32 = arith.constant 0 : i32
    %c0_i32_0 = arith.constant 0 : i32
    %c0_i32_1 = arith.constant 0 : i32
    return %c0_i32, %c0_i32_0 : i32, i32
  }
  func.func @transform_4(%arg0: i32, %arg1: i32) -> (i32, i32) {
    %c0_i32 = arith.constant 0 : i32
    %c0_i32_0 = arith.constant 0 : i32
    %c0_i32_1 = arith.constant 0 : i32
    return %c0_i32, %c0_i32_0 : i32, i32
  }
  func.func @transform_5(%arg0: i32, %arg1: i32) -> (i32, i32) {
    %c0_i32 = arith.constant 0 : i32
    %c0_i32_0 = arith.constant 0 : i32
    %c0_i32_1 = arith.constant 0 : i32
    return %c0_i32, %c0_i32_0 : i32, i32
  }
  func.func @transform_6(%arg0: i32, %arg1: i32) -> (i32, i32) {
    %c0_i32 = arith.constant 0 : i32
    %c0_i32_0 = arith.constant 0 : i32
    %c0_i32_1 = arith.constant 0 : i32
    return %c0_i32, %c0_i32_0 : i32, i32
  }
  func.func @transform_7(%arg0: i32, %arg1: i32) -> (i32, i32, i32) {
    %c0_i32 = arith.constant 0 : i32
    %c0_i32_0 = arith.constant 0 : i32
    %c0_i32_1 = arith.constant 0 : i32
    return %arg0, %c0_i32, %c0_i32_0 : i32, i32, i32
  }
  func.func @transform_8(%arg0: i32, %arg1: i32) -> (i32, i32, i32) {
    %c0_i32 = arith.constant 0 : i32
    %c0_i32_0 = arith.constant 0 : i32
    %c0_i32_1 = arith.constant 0 : i32
    return %arg0, %c0_i32, %c0_i32_0 : i32, i32, i32
  }
}

</mosaic_0001>

<llo_original>
// kernel: avgpool_cnn_forward.1
$region0: #{avgpool_cnn_forward.1}
  #allocation0 [shape = 'u32[]', space=smem, size = 0x4, offset = 0x4, fixed_abs, tag = 'smem constant byte address 0x4 - core index']
  #allocation1 [shape = 'u32[144,128]{1,0:T(1,128)}', space=vmem, size = 0x12000, scoped, tag = 'internal scratch']
  #allocation2 [shape = 'f32[1,1280]{1,0:T(1,128)}', space=vmem, size = 0x1400, scoped, tag = 'scratch operand']
  %s0 = inlined_call_operand.vmem [shape: bf16[2,576,27], index: 0, kind: input, shape index: {}]
  %s1 = inlined_call_operand.vmem [shape: bf16[27,32], index: 1, kind: input, shape index: {}]
  %s2 = inlined_call_operand.vmem [shape: f32[1,32], index: 2, kind: input, shape index: {}]
  %s3 = inlined_call_operand.vmem [shape: bf16[32,1280], index: 3, kind: input, shape index: {}]
  %s4 = inlined_call_operand.vmem [shape: f32[1,1280], index: 4, kind: input, shape index: {}]
  %s5 = inlined_call_operand.vmem [shape: f32[1280,2], index: 5, kind: input, shape index: {}]
  %s6 = inlined_call_operand.vmem [shape: f32[1,2], index: 6, kind: input, shape index: {}]
  %s7 = inlined_call_operand.vmem [shape: f32[2,1,1280], index: 7, kind: output, shape index: {0}]
  %s8 = inlined_call_operand.hbm [shape: f32[2,1,2], index: 8, kind: output, shape index: {1}]
  %9 = xla_tuple %s7, %s8
  %s10 = sld [smem:[#allocation0]]
  $region77: #{avgpool_cnn_forward.1} parent=0
    _
  %s12 = ssub.s32 1, %s10
  %s13 = scalar_select 0, %s12, %s10
  $region1: #{avgpool_cnn_forward.1} parent=0
    #allocation3 [shape = 'u8[1024]{0}', space=vmem, size = 0x400, scoped, tag = 'output window, operand 1']
    #allocation4 [shape = 's32[2]{0}', space=sflag, size = 0x8, scoped, tag = 'scoped memory for avgpool_cnn_forward.1']
    %14 = vsyncpa [#allocation4], 0
    %s15 = scalar_lea.sflag [#allocation4], 1
    %16 = vsyncpa %s15, 0
    loop: start=0, step=1, limit=6
    $region2: #{avgpool_cnn_forward.1} parent=1 // loop_pre_header
      _
    $region3: #{avgpool_cnn_forward.1} parent=1 // loop_header
      %s18 = sphi 0, %s22
      %p19 = scmp.ge.s32.totalorder %s18, 6
      %s25 = sphi 0, %s37
      %s26 = sphi 0, %s33
      %s27 = sphi 0, %s25
      %s28 = sphi 0, %s26
      %s29 = sphi 0, %s27
      %s30 = sphi 0, %s28
      %s42 = sphi 0, %s44
      %s45 = sphi 0, %s42
      %s46 = sphi 0, %s45
      %s62 = sphi 0, %s46
      %s66 = sphi 0, %s66
      %s68 = sphi 0, %s66
      %s69 = sphi 0, %s68
      %s83 = sphi 0, %s69
      %s87 = sphi 0, %s87
      %s89 = sphi 0, %s87
      %s90 = sphi 0, %s89
      %s104 = sphi 0, %s90
      %s108 = sphi 0, %s108
      %s110 = sphi 0, %s108
      %s111 = sphi 0, %s110
      %s125 = sphi 0, %s111
      %s129 = sphi 0, %s129
      %s131 = sphi 0, %s129
      %s132 = sphi 0, %s131
      %s146 = sphi 0, %s132
      %s150 = sphi 0, %s150
      %s152 = sphi 0, %s150
      %s153 = sphi 0, %s152
      %s167 = sphi 0, %s153
      %s171 = sphi 0, %s171
      %s173 = sphi 0, %s171
      %s174 = sphi 0, %s173
      %s188 = sphi 0, %s174
      %s194 = sphi 0, %s196
      %s197 = sphi 0, %s194
      %s198 = sphi 0, %s197
      %s214 = sphi 0, %s198
      %s220 = sphi 0, %s222
      %s223 = sphi 0, %s220
      %s224 = sphi 0, %s223
      %s240 = sphi 0, %s224
    $region4: #{avgpool_cnn_forward.1} parent=1 // loop_header_branch
      %21 = sbr.rel (%p19) target = $region8
    $region5: #{avgpool_cnn_forward.1} parent=1 // loop_body
      %s23 = ssub.s32 %s18, 1
      %s24 = ssub.s32 %s18, 2
      %s31 = sadd.s32 1, %s26
      %p32 = scmp.ge.s32.totalorder %s31, 2
      %s33 = scalar_select %p32, 0, %s31
      %s34 = sadd.s32 1, %s25
      %s35 = scalar_select %p32, %s34, %s25
      %p36 = scmp.ge.s32.totalorder %s35, 2
      %s37 = scalar_select %p36, 0, %s35
      %s38 = ssub.s32 %s25, %s37
      %s39 = ssub.s32 %s26, %s33
      %s40 = sor.u32 %s38, %s39
      %p41 = scmp.eq.s32.totalorder %s40, 0
      %s43 = sadd.s32 %s42, 1
      %s44 = scalar_select %p41, %s42, %s43
      %p47 = pneg %p41
      %p48 = scmp.eq.s32.totalorder %s18, 3
      %p49 = por %p47, %p48
      %p50 = scmp.ne.s32.totalorder %s42, %s45
      %p51 = scmp.eq.s32.totalorder %s18, 0
      %p52 = por %p50, %p51
      %p53 = scmp.ne.s32.totalorder %s42, %s45
      %p54 = scmp.eq.s32.totalorder %s23, 3
      %p55 = por %p53, %p54
      %p56 = scmp.ne.s32.totalorder %s45, %s46
      %p57 = scmp.eq.s32.totalorder %s23, 0
      %p58 = por %p56, %p57
      %p59 = scmp.ne.s32.totalorder %s45, %s46
      %p60 = scmp.eq.s32.totalorder %s24, 3
      %p61 = por %p59, %p60
      %p63 = scmp.ne.s32.totalorder %s46, %s62
      %p64 = scmp.eq.s32.totalorder %s24, 0
      %p65 = por %p63, %p64
      %s67 = sadd.s32 %s66, 1
      %p70 = scmp.eq.s32.totalorder %s18, 3
      %p71 = scmp.ne.s32.totalorder %s66, %s68
      %p72 = scmp.eq.s32.totalorder %s18, 0
      %p73 = por %p71, %p72
      %p74 = scmp.ne.s32.totalorder %s66, %s68
      %p75 = scmp.eq.s32.totalorder %s23, 3
      %p76 = por %p74, %p75
      %p77 = scmp.ne.s32.totalorder %s68, %s69
      %p78 = scmp.eq.s32.totalorder %s23, 0
      %p79 = por %p77, %p78
      %p80 = scmp.ne.s32.totalorder %s68, %s69
      %p81 = scmp.eq.s32.totalorder %s24, 3
      %p82 = por %p80, %p81
      %p84 = scmp.ne.s32.totalorder %s69, %s83
      %p85 = scmp.eq.s32.totalorder %s24, 0
      %p86 = por %p84, %p85
      %s88 = sadd.s32 %s87, 1
      %p91 = scmp.eq.s32.totalorder %s18, 3
      %p92 = scmp.ne.s32.totalorder %s87, %s89
      %p93 = scmp.eq.s32.totalorder %s18, 0
      %p94 = por %p92, %p93
      %p95 = scmp.ne.s32.totalorder %s87, %s89
      %p96 = scmp.eq.s32.totalorder %s23, 3
      %p97 = por %p95, %p96
      %p98 = scmp.ne.s32.totalorder %s89, %s90
      %p99 = scmp.eq.s32.totalorder %s23, 0
      %p100 = por %p98, %p99
      %p101 = scmp.ne.s32.totalorder %s89, %s90
      %p102 = scmp.eq.s32.totalorder %s24, 3
      %p103 = por %p101, %p102
      %p105 = scmp.ne.s32.totalorder %s90, %s104
      %p106 = scmp.eq.s32.totalorder %s24, 0
      %p107 = por %p105, %p106
      %s109 = sadd.s32 %s108, 1
      %p112 = scmp.eq.s32.totalorder %s18, 3
      %p113 = scmp.ne.s32.totalorder %s108, %s110
      %p114 = scmp.eq.s32.totalorder %s18, 0
      %p115 = por %p113, %p114
      %p116 = scmp.ne.s32.totalorder %s108, %s110
      %p117 = scmp.eq.s32.totalorder %s23, 3
      %p118 = por %p116, %p117
      %p119 = scmp.ne.s32.totalorder %s110, %s111
      %p120 = scmp.eq.s32.totalorder %s23, 0
      %p121 = por %p119, %p120
      %p122 = scmp.ne.s32.totalorder %s110, %s111
      %p123 = scmp.eq.s32.totalorder %s24, 3
      %p124 = por %p122, %p123
      %p126 = scmp.ne.s32.totalorder %s111, %s125
      %p127 = scmp.eq.s32.totalorder %s24, 0
      %p128 = por %p126, %p127
      %s130 = sadd.s32 %s129, 1
      %p133 = scmp.eq.s32.totalorder %s18, 3
      %p134 = scmp.ne.s32.totalorder %s129, %s131
      %p135 = scmp.eq.s32.totalorder %s18, 0
      %p136 = por %p134, %p135
      %p137 = scmp.ne.s32.totalorder %s129, %s131
      %p138 = scmp.eq.s32.totalorder %s23, 3
      %p139 = por %p137, %p138
      %p140 = scmp.ne.s32.totalorder %s131, %s132
      %p141 = scmp.eq.s32.totalorder %s23, 0
      %p142 = por %p140, %p141
      %p143 = scmp.ne.s32.totalorder %s131, %s132
      %p144 = scmp.eq.s32.totalorder %s24, 3
      %p145 = por %p143, %p144
      %p147 = scmp.ne.s32.totalorder %s132, %s146
      %p148 = scmp.eq.s32.totalorder %s24, 0
      %p149 = por %p147, %p148
      %s151 = sadd.s32 %s150, 1
      %p154 = scmp.eq.s32.totalorder %s18, 3
      %p155 = scmp.ne.s32.totalorder %s150, %s152
      %p156 = scmp.eq.s32.totalorder %s18, 0
      %p157 = por %p155, %p156
      %p158 = scmp.ne.s32.totalorder %s150, %s152
      %p159 = scmp.eq.s32.totalorder %s23, 3
      %p160 = por %p158, %p159
      %p161 = scmp.ne.s32.totalorder %s152, %s153
      %p162 = scmp.eq.s32.totalorder %s23, 0
      %p163 = por %p161, %p162
      %p164 = scmp.ne.s32.totalorder %s152, %s153
      %p165 = scmp.eq.s32.totalorder %s24, 3
      %p166 = por %p164, %p165
      %p168 = scmp.ne.s32.totalorder %s153, %s167
      %p169 = scmp.eq.s32.totalorder %s24, 0
      %p170 = por %p168, %p169
      %s172 = sadd.s32 %s171, 1
      %p175 = scmp.eq.s32.totalorder %s18, 3
      %p176 = scmp.ne.s32.totalorder %s171, %s173
      %p177 = scmp.eq.s32.totalorder %s18, 0
      %p178 = por %p176, %p177
      %p179 = scmp.ne.s32.totalorder %s171, %s173
      %p180 = scmp.eq.s32.totalorder %s23, 3
      %p181 = por %p179, %p180
      %p182 = scmp.ne.s32.totalorder %s173, %s174
      %p183 = scmp.eq.s32.totalorder %s23, 0
      %p184 = por %p182, %p183
      %p185 = scmp.ne.s32.totalorder %s173, %s174
      %p186 = scmp.eq.s32.totalorder %s24, 3
      %p187 = por %p185, %p186
      %p189 = scmp.ne.s32.totalorder %s174, %s188
      %p190 = scmp.eq.s32.totalorder %s24, 0
      %p191 = por %p189, %p190
      %s192 = ssub.s32 %s25, %s37
      %p193 = scmp.eq.s32.totalorder %s192, 0
      %s195 = sadd.s32 %s194, 1
      %s196 = scalar_select %p193, %s194, %s195
      %p199 = pneg %p193
      %p200 = scmp.eq.s32.totalorder %s18, 3
      %p201 = por %p199, %p200
      %p202 = scmp.ne.s32.totalorder %s194, %s197
      %p203 = scmp.eq.s32.totalorder %s18, 0
      %p204 = por %p202, %p203
      %p205 = scmp.ne.s32.totalorder %s194, %s197
      %p206 = scmp.eq.s32.totalorder %s23, 3
      %p207 = por %p205, %p206
      %p208 = scmp.ne.s32.totalorder %s197, %s198
      %p209 = scmp.eq.s32.totalorder %s23, 0
      %p210 = por %p208, %p209
      %p211 = scmp.ne.s32.totalorder %s197, %s198
      %p212 = scmp.eq.s32.totalorder %s24, 3
      %p213 = por %p211, %p212
      %p215 = scmp.ne.s32.totalorder %s198, %s214
      %p216 = scmp.eq.s32.totalorder %s24, 0
      %p217 = por %p215, %p216
      %s218 = ssub.s32 %s25, %s37
      %p219 = scmp.eq.s32.totalorder %s218, 0
      %s221 = sadd.s32 %s220, 1
      %s222 = scalar_select %p219, %s220, %s221
      %p225 = pneg %p219
      %p226 = scmp.eq.s32.totalorder %s18, 3
      %p227 = por %p225, %p226
      %p228 = scmp.ne.s32.totalorder %s220, %s223
      %p229 = scmp.eq.s32.totalorder %s18, 0
      %p230 = por %p228, %p229
      %p231 = scmp.ne.s32.totalorder %s220, %s223
      %p232 = scmp.eq.s32.totalorder %s23, 3
      %p233 = por %p231, %p232
      %p234 = scmp.ne.s32.totalorder %s223, %s224
      %p235 = scmp.eq.s32.totalorder %s23, 0
      %p236 = por %p234, %p235
      %p237 = scmp.ne.s32.totalorder %s223, %s224
      %p238 = scmp.eq.s32.totalorder %s24, 3
      %p239 = por %p237, %p238
      %p241 = scmp.ne.s32.totalorder %s224, %s240
      %p242 = scmp.eq.s32.totalorder %s24, 0
      %p243 = por %p241, %p242
      %p244 = scmp.le.s32.totalorder 1, %s18
      %p245 = scmp.lt.s32.totalorder %s18, 5
      %p246 = pnand %p244, %p245
      %p247 = pneg %p246
      // Predicated region
      $region9: #{avgpool_cnn_forward.1} parent=5 // pred_check
        _
      $region10: #{avgpool_cnn_forward.1} parent=5 // pred_check_branch
        %249 = sbr.rel (%p246) target = $region12
      $region11: #{avgpool_cnn_forward.1} parent=5 // pred_region
        %s250 = ssub.s32 %s18, 1
        // Predicated region
        $region13: #{avgpool_cnn_forward.1} parent=11 // pred_check
          %p251 = pneg %p79
        $region14: #{avgpool_cnn_forward.1} parent=11 // pred_check_branch
          %253 = sbr.rel (%p251) target = $region16
        $region15: #{avgpool_cnn_forward.1} parent=11 // pred_region
          _
        $region16: #{avgpool_cnn_forward.1} parent=11 // pred_fallthru
          _
        // Predicated region
        $region17: #{avgpool_cnn_forward.1} parent=11 // pred_check
          %p254 = pneg %p100
        $region18: #{avgpool_cnn_forward.1} parent=11 // pred_check_branch
          %256 = sbr.rel (%p254) target = $region20
        $region19: #{avgpool_cnn_forward.1} parent=11 // pred_region
          _
        $region20: #{avgpool_cnn_forward.1} parent=11 // pred_fallthru
          _
        // Predicated region
        $region21: #{avgpool_cnn_forward.1} parent=11 // pred_check
          %p257 = pneg %p121
        $region22: #{avgpool_cnn_forward.1} parent=11 // pred_check_branch
          %259 = sbr.rel (%p257) target = $region24
        $region23: #{avgpool_cnn_forward.1} parent=11 // pred_region
          _
        $region24: #{avgpool_cnn_forward.1} parent=11 // pred_fallthru
          _
        // Predicated region
        $region25: #{avgpool_cnn_forward.1} parent=11 // pred_check
          %p260 = pneg %p142
        $region26: #{avgpool_cnn_forward.1} parent=11 // pred_check_branch
          %262 = sbr.rel (%p260) target = $region28
        $region27: #{avgpool_cnn_forward.1} parent=11 // pred_region
          _
        $region28: #{avgpool_cnn_forward.1} parent=11 // pred_fallthru
          _
        // Predicated region
        $region29: #{avgpool_cnn_forward.1} parent=11 // pred_check
          %p263 = pneg %p163
        $region30: #{avgpool_cnn_forward.1} parent=11 // pred_check_branch
          %265 = sbr.rel (%p263) target = $region32
        $region31: #{avgpool_cnn_forward.1} parent=11 // pred_region
          _
        $region32: #{avgpool_cnn_forward.1} parent=11 // pred_fallthru
          _
        // Predicated region
        $region33: #{avgpool_cnn_forward.1} parent=11 // pred_check
          %p266 = pneg %p184
        $region34: #{avgpool_cnn_forward.1} parent=11 // pred_check_branch
          %268 = sbr.rel (%p266) target = $region36
        $region35: #{avgpool_cnn_forward.1} parent=11 // pred_region
          _
        $region36: #{avgpool_cnn_forward.1} parent=11 // pred_fallthru
          _
      $region12: #{avgpool_cnn_forward.1} parent=5 // pred_fallthru
        _
      %p269 = scmp.lt.s32.totalorder %s18, 4
      // Predicated region
      $region37: #{avgpool_cnn_forward.1} parent=5 // pred_check
        %p270 = pneg %p269
      $region38: #{avgpool_cnn_forward.1} parent=5 // pred_check_branch
        %272 = sbr.rel (%p270) target = $region40
      $region39: #{avgpool_cnn_forward.1} parent=5 // pred_region
        // Predicated region
        $region41: #{avgpool_cnn_forward.1} parent=39 // pred_check
          %p273 = pneg %p52
        $region42: #{avgpool_cnn_forward.1} parent=39 // pred_check_branch
          %275 = sbr.rel (%p273) target = $region44
        $region43: #{avgpool_cnn_forward.1} parent=39 // pred_region
          %s276 = smul.u32 36, %s26
          %p277 = scmp.lt.s32.totalorder %s25, 1
          %s278 = scalar_select %p277, %s25, 1
          %p279 = scmp.lt.s32.totalorder %s276, 71
          %s280 = scalar_select %p279, %s276, 71
          %s281 = smul.addr %s278, 72
          %s282 = sadd.s32 %s280, %s281
          %s283 = smul.addr %s282, 4
          %s284 = scalar_lea.vmem %s0, %s283
          %s285 = smul.u32 36, %s26
        $region44: #{avgpool_cnn_forward.1} parent=39 // pred_fallthru
          _
      $region40: #{avgpool_cnn_forward.1} parent=5 // pred_fallthru
        _
      %p286 = scmp.le.s32.totalorder 1, %s18
      %p287 = scmp.lt.s32.totalorder %s18, 5
      %p288 = pnand %p286, %p287
      %p289 = pneg %p288
      // Predicated region
      $region45: #{avgpool_cnn_forward.1} parent=5 // pred_check
        _
      $region46: #{avgpool_cnn_forward.1} parent=5 // pred_check_branch
        %291 = sbr.rel (%p288) target = $region48
      $region47: #{avgpool_cnn_forward.1} parent=5 // pred_region
        %s292 = ssub.s32 %s18, 1
        %s293 = smul.u32 36, %s28
        %p294 = scmp.lt.s32.totalorder %s27, 1
        %s295 = scalar_select %p294, %s27, 1
        %p296 = scmp.lt.s32.totalorder %s293, 71
        %s297 = scalar_select %p296, %s293, 71
        %s298 = smul.addr %s295, 72
        %s299 = sadd.s32 %s297, %s298
        %s300 = smul.addr %s299, 4
        %s301 = scalar_lea.vmem %s0, %s300
        %p302 = pneg %p58
        %p303 = pneg %p55
        %p304 = pneg %p79
        %p305 = pneg %p76
        %p306 = pneg %p100
        %p307 = pneg %p97
        %p308 = pneg %p121
        %p309 = pneg %p118
        %p310 = pneg %p142
        %p311 = pneg %p139
        %p312 = pneg %p163
        %p313 = pneg %p160
        %p314 = pneg %p184
        %p315 = pneg %p181
        %p316 = pneg %p210
        %p317 = pneg %p207
        %p318 = scmp.lt.s32.totalorder %s27, 1
        %s319 = scalar_select %p318, %s27, 1
        %s320 = smul.addr %s319, 10
        %s321 = scalar_lea.vmem %s7, %s320
        %p322 = pneg %p236
        %p323 = pneg %p233
        %s324 = sand.u32 %s223, 1
        %s325 = scalar_lea.sflag [#allocation4], %s324
        %s326 = sand.u32 %s223, 1
        %s327 = scalar_lea.vmem [#allocation3], %s326
        %s328 = smul.u32 36, %s28
        %p329 = scmp.lt.s32.totalorder %s27, 1
        %s330 = scalar_select %p329, %s27, 1
        %p331 = scmp.lt.s32.totalorder %s328, 71
        %s332 = scalar_select %p331, %s328, 71
        %s333 = smul.addr %s330, 72
        %s334 = sadd.s32 %s332, %s333
        %s335 = smul.addr %s334, 4
        %s336 = scalar_lea.vmem %s0, %s335
        %s337 = smul.u32 36, %s28
        %p338 = scmp.lt.s32.totalorder %s27, 1
        %s339 = scalar_select %p338, %s27, 1
        %s340 = smul.addr %s339, 10
        %s341 = scalar_lea.vmem %s7, %s340
        %p343 = scmp.eq.s32.totalorder %s28, 0
        // Predicated region
        $region49: #{avgpool_cnn_forward.1} parent=47 // pred_check
          %p344 = pneg %p343
        $region50: #{avgpool_cnn_forward.1} parent=47 // pred_check_branch
          %346 = sbr.rel (%p344) target = $region52
        $region51: #{avgpool_cnn_forward.1} parent=47 // pred_region
          %347 = vst [vmem:[#allocation2] sm:$0xff] 0.0
          %v348 = vlaneseq
          %vm349 = vcmp.ge.s32.totalorder %v348, 0
          %vm350 = vcmp.lt.s32.totalorder %v348, 256
          %vm351 = vmand %vm349, %vm350
          %352 = vst.msk [vmem:[#allocation2 + $0x8] sm:$0x3] %vm351, 0.0
        $region52: #{avgpool_cnn_forward.1} parent=47 // pred_fallthru
          _
        %v353 = vld [vmem:[%s336] sm:$0xf]
        %v354 = vld [vmem:[%s336 + $0x4] sm:$0xf]
        %v355 = vld [vmem:[%s336 + $0x8] sm:$0xf]
        %v356 = vld [vmem:[%s336 + $0xc] sm:$0xf]
        %v357 = vld [vmem:[%s336 + $0x10] sm:$0xf]
        %v358 = vld [vmem:[%s336 + $0x14] sm:$0xf]
        %v359 = vld [vmem:[%s336 + $0x18] sm:$0xf]
        %v360 = vld [vmem:[%s336 + $0x1c] sm:$0xf]
        %v361 = vld [vmem:[%s336 + $0x20] sm:$0xf]
        %v362 = vld [vmem:[%s336 + $0x24] sm:$0xf]
        %v363 = vld [vmem:[%s336 + $0x28] sm:$0xf]
        %v364 = vld [vmem:[%s336 + $0x2c] sm:$0xf]
        %v365 = vld [vmem:[%s336 + $0x30] sm:$0xf]
        %v366 = vld [vmem:[%s336 + $0x34] sm:$0xf]
        %v367 = vld [vmem:[%s336 + $0x38] sm:$0xf]
        %v368 = vld [vmem:[%s336 + $0x3c] sm:$0xf]
        %v369 = vld [vmem:[%s336 + $0x40] sm:$0xf]
        %v370 = vld [vmem:[%s336 + $0x44] sm:$0xf]
        %v371 = vld [vmem:[%s336 + $0x48] sm:$0xf]
        %v372 = vld [vmem:[%s336 + $0x4c] sm:$0xf]
        %v373 = vld [vmem:[%s336 + $0x50] sm:$0xf]
        %v374 = vld [vmem:[%s336 + $0x54] sm:$0xf]
        %v375 = vld [vmem:[%s336 + $0x58] sm:$0xf]
        %v376 = vld [vmem:[%s336 + $0x5c] sm:$0xf]
        %v377 = vld [vmem:[%s336 + $0x60] sm:$0xf]
        %v378 = vld [vmem:[%s336 + $0x64] sm:$0xf]
        %v379 = vld [vmem:[%s336 + $0x68] sm:$0xf]
        %v380 = vld [vmem:[%s336 + $0x6c] sm:$0xf]
        %v381 = vld [vmem:[%s336 + $0x70] sm:$0xf]
        %v382 = vld [vmem:[%s336 + $0x74] sm:$0xf]
        %v383 = vld [vmem:[%s336 + $0x78] sm:$0xf]
        %v384 = vld [vmem:[%s336 + $0x7c] sm:$0xf]
        %v385 = vld [vmem:[%s336 + $0x80] sm:$0xf]
        %v386 = vld [vmem:[%s336 + $0x84] sm:$0xf]
        %v387 = vld [vmem:[%s336 + $0x88] sm:$0xf]
        %v388 = vld [vmem:[%s336 + $0x8c] sm:$0xf]
        %v389 = vld [vmem:[%s1] sm:$0xf]
        %v390 = vld [vmem:[%s1 + $0x4] sm:$0xf]
        %v391 = vld [vmem:[%s1 + $0x8] sm:$0xf]
        %v392 = vld [vmem:[%s1 + $0xc] sm:$0x3]
        %v393 = vld [vmem:[%s2] sm:$0x1]
        %v395 = vlaneseq
        %v396 = vshrl.u32 %v395, 7
        %v397 = vsub.s32 0, %v396
        %v398 = vrot.slane %v393, %v397
        %v436 = vunpack.c.l.b16 %v353
        %v437 = vunpack.c.l.b16 %v354
        %v438 = vunpack.c.l.b16 %v355
        %v439 = vunpack.c.l.b16 %v356
        %v440 = vunpack.c.l.b16 %v357
        %v441 = vunpack.c.l.b16 %v358
        %v442 = vunpack.c.l.b16 %v359
        %v443 = vunpack.c.l.b16 %v360
        %v444 = vunpack.c.l.b16 %v361
        %v445 = vunpack.c.l.b16 %v362
        %v446 = vunpack.c.l.b16 %v363
        %v447 = vunpack.c.l.b16 %v364
        %v448 = vunpack.c.l.b16 %v365
        %v449 = vunpack.c.l.b16 %v366
        %v450 = vunpack.c.l.b16 %v367
        %v451 = vunpack.c.l.b16 %v368
        %v452 = vunpack.c.l.b16 %v369
        %v453 = vunpack.c.l.b16 %v370
        %v454 = vunpack.c.l.b16 %v371
        %v455 = vunpack.c.l.b16 %v372
        %v456 = vunpack.c.l.b16 %v373
        %v457 = vunpack.c.l.b16 %v374
        %v458 = vunpack.c.l.b16 %v375
        %v459 = vunpack.c.l.b16 %v376
        %v460 = vunpack.c.l.b16 %v377
        %v461 = vunpack.c.l.b16 %v378
        %v462 = vunpack.c.l.b16 %v379
        %v463 = vunpack.c.l.b16 %v380
        %v464 = vunpack.c.l.b16 %v381
        %v465 = vunpack.c.l.b16 %v382
        %v466 = vunpack.c.l.b16 %v383
        %v467 = vunpack.c.l.b16 %v384
        %v468 = vunpack.c.l.b16 %v385
        %v469 = vunpack.c.l.b16 %v386
        %v470 = vunpack.c.l.b16 %v387
        %v471 = vunpack.c.l.b16 %v388
        %v472 = vpack.c.b16 %v437, %v436
        %v473 = vpack.c.b16 %v439, %v438
        %v474 = vpack.c.b16 %v441, %v440
        %v475 = vpack.c.b16 %v443, %v442
        %v476 = vpack.c.b16 %v445, %v444
        %v477 = vpack.c.b16 %v447, %v446
        %v478 = vpack.c.b16 %v449, %v448
        %v479 = vpack.c.b16 %v451, %v450
        %v480 = vpack.c.b16 %v453, %v452
        %v481 = vpack.c.b16 %v455, %v454
        %v482 = vpack.c.b16 %v457, %v456
        %v483 = vpack.c.b16 %v459, %v458
        %v484 = vpack.c.b16 %v461, %v460
        %v485 = vpack.c.b16 %v463, %v462
        %v486 = vpack.c.b16 %v465, %v464
        %v487 = vpack.c.b16 %v467, %v466
        %v488 = vpack.c.b16 %v469, %v468
        %v489 = vpack.c.b16 %v471, %v470
        %v494 = vunpack.c.l.b16 %v389
        %v495 = vunpack.c.l.b16 %v390
        %v496 = vunpack.c.l.b16 %v391
        %v497 = vunpack.c.l.b16 %v392
        %v498 = vpack.c.b16 %v495, %v494
        %v499 = vpack.c.b16 %v497, %v496
        %vm501 = vcmask 220160
        %v503 = vsel %vm501, %v472, 0
        %v506 = vsel %vm501, %v473, 0
        %v509 = vsel %vm501, %v474, 0
        %v512 = vsel %vm501, %v475, 0
        %v515 = vsel %vm501, %v476, 0
        %v518 = vsel %vm501, %v477, 0
        %v521 = vsel %vm501, %v478, 0
        %v524 = vsel %vm501, %v479, 0
        %v527 = vsel %vm501, %v480, 0
        %v530 = vsel %vm501, %v481, 0
        %v533 = vsel %vm501, %v482, 0
        %v536 = vsel %vm501, %v483, 0
        %v539 = vsel %vm501, %v484, 0
        %v542 = vsel %vm501, %v485, 0
        %v545 = vsel %vm501, %v486, 0
        %v548 = vsel %vm501, %v487, 0
        %v551 = vsel %vm501, %v488, 0
        %v554 = vsel %vm501, %v489, 0
        %vm556 = vcmask 1044480
        %vm557 = vcmask 1045504
        %v558 = vsel %vm556, 4294967295, 65535
        %v559 = vsel %vm557, %v558, 0
        %v561 = vand.u32 %v499, %v559
        %563 = vmatprep.subr.bf16.mxu0 0
        %564 = vmatpush1.bf16.msra.mxu0 %v498
        %565 = vmatprep.subr.bf16.mxu0 0
        %566 = vmatpush1.bf16.msra.mxu0 %v561
        %567 = vmatprep.subr.bf16.mxu0 0
        %568 = vmatpush1.bf16.msra.mxu0 0
        %569 = vmatprep.subr.bf16.mxu0 0
        %570 = vmatpush1.bf16.msra.mxu0 0
        %571 = vmatprep.subr.bf16.mxu0 0
        %572 = vmatpush1.bf16.msra.mxu0 0
        %573 = vmatprep.subr.bf16.mxu0 0
        %574 = vmatpush1.bf16.msra.mxu0 0
        %575 = vmatprep.subr.bf16.mxu0 0
        %576 = vmatpush1.bf16.msra.mxu0 0
        %577 = vmatprep.subr.bf16.mxu0 0
        %578 = vmatpush1.bf16.msra.mxu0 0
        %579 = vmatprep.subr.bf16.mxu0 0
        %580 = vmatpush1.bf16.msra.mxu0 0
        %581 = vmatprep.subr.bf16.mxu0 0
        %582 = vmatpush1.bf16.msra.mxu0 0
        %583 = vmatprep.subr.bf16.mxu0 0
        %584 = vmatpush1.bf16.msra.mxu0 0
        %585 = vmatprep.subr.bf16.mxu0 0
        %586 = vmatpush1.bf16.msra.mxu0 0
        %587 = vmatprep.subr.bf16.mxu0 0
        %588 = vmatpush1.bf16.msra.mxu0 0
        %589 = vmatprep.subr.bf16.mxu0 0
        %590 = vmatpush1.bf16.msra.mxu0 0
        %591 = vmatprep.subr.bf16.mxu0 0
        %592 = vmatpush1.bf16.msra.mxu0 0
        %593 = vmatprep.subr.bf16.mxu0 0
        %594 = vmatpush1.bf16.msra.mxu0 0
        %595 = vmatprep.mubr.bf16.mxu0 0
        %596 = vmatmul.mubr.bf16.gmra.mrb[0].mxu0 %v503
        %v597 = vpop.f32.mrb[0].mxu0
        %v598 = vadd.f32 %v398, %v597
        %v599 = vpop.f32.mrb[0].mxu0
        %v600 = vpop.f32.mrb[0].mxu0
        %v601 = vadd.f32 %v398, %v600
        %v602 = vpop.f32.mrb[0].mxu0
        %603 = vmatprep.mubr.bf16.mxu0 0
        %604 = vmatmul.mubr.bf16.gmra.mrb[0].mxu0 %v506
        %v605 = vpop.f32.mrb[0].mxu0
        %v606 = vadd.f32 %v398, %v605
        %v607 = vpop.f32.mrb[0].mxu0
        %v608 = vpop.f32.mrb[0].mxu0
        %v609 = vadd.f32 %v398, %v608
        %v610 = vpop.f32.mrb[0].mxu0
        %611 = vmatprep.mubr.bf16.mxu0 0
        %612 = vmatmul.mubr.bf16.gmra.mrb[0].mxu0 %v509
        %v613 = vpop.f32.mrb[0].mxu0
        %v614 = vadd.f32 %v398, %v613
        %v615 = vpop.f32.mrb[0].mxu0
        %v616 = vpop.f32.mrb[0].mxu0
        %v617 = vadd.f32 %v398, %v616
        %v618 = vpop.f32.mrb[0].mxu0
        %619 = vmatprep.mubr.bf16.mxu0 0
        %620 = vmatmul.mubr.bf16.gmra.mrb[0].mxu0 %v512
        %v621 = vpop.f32.mrb[0].mxu0
        %v622 = vadd.f32 %v398, %v621
        %v623 = vpop.f32.mrb[0].mxu0
        %v624 = vpop.f32.mrb[0].mxu0
        %v625 = vadd.f32 %v398, %v624
        %v626 = vpop.f32.mrb[0].mxu0
        %627 = vmatprep.mubr.bf16.mxu0 0
        %628 = vmatmul.mubr.bf16.gmra.mrb[0].mxu0 %v515
        %v629 = vpop.f32.mrb[0].mxu0
        %v630 = vadd.f32 %v398, %v629
        %v631 = vpop.f32.mrb[0].mxu0
        %v632 = vpop.f32.mrb[0].mxu0
        %v633 = vadd.f32 %v398, %v632
        %v634 = vpop.f32.mrb[0].mxu0
        %635 = vmatprep.mubr.bf16.mxu0 0
        %636 = vmatmul.mubr.bf16.gmra.mrb[0].mxu0 %v518
        %v637 = vpop.f32.mrb[0].mxu0
        %v638 = vadd.f32 %v398, %v637
        %v639 = vpop.f32.mrb[0].mxu0
        %v640 = vpop.f32.mrb[0].mxu0
        %v641 = vadd.f32 %v398, %v640
        %v642 = vpop.f32.mrb[0].mxu0
        %643 = vmatprep.mubr.bf16.mxu0 0
        %644 = vmatmul.mubr.bf16.gmra.mrb[0].mxu0 %v521
        %v645 = vpop.f32.mrb[0].mxu0
        %v646 = vadd.f32 %v398, %v645
        %v647 = vpop.f32.mrb[0].mxu0
        %v648 = vpop.f32.mrb[0].mxu0
        %v649 = vadd.f32 %v398, %v648
        %v650 = vpop.f32.mrb[0].mxu0
        %651 = vmatprep.mubr.bf16.mxu0 0
        %652 = vmatmul.mubr.bf16.gmra.mrb[0].mxu0 %v524
        %v653 = vpop.f32.mrb[0].mxu0
        %v654 = vadd.f32 %v398, %v653
        %v655 = vpop.f32.mrb[0].mxu0
        %v656 = vpop.f32.mrb[0].mxu0
        %v657 = vadd.f32 %v398, %v656
        %v658 = vpop.f32.mrb[0].mxu0
        %659 = vmatprep.mubr.bf16.mxu0 0
        %660 = vmatmul.mubr.bf16.gmra.mrb[0].mxu0 %v527
        %v661 = vpop.f32.mrb[0].mxu0
        %v662 = vadd.f32 %v398, %v661
        %v663 = vpop.f32.mrb[0].mxu0
        %v664 = vpop.f32.mrb[0].mxu0
        %v665 = vadd.f32 %v398, %v664
        %v666 = vpop.f32.mrb[0].mxu0
        %667 = vmatprep.mubr.bf16.mxu0 0
        %668 = vmatmul.mubr.bf16.gmra.mrb[0].mxu0 %v530
        %v669 = vpop.f32.mrb[0].mxu0
        %v670 = vadd.f32 %v398, %v669
        %v671 = vpop.f32.mrb[0].mxu0
        %v672 = vpop.f32.mrb[0].mxu0
        %v673 = vadd.f32 %v398, %v672
        %v674 = vpop.f32.mrb[0].mxu0
        %675 = vmatprep.mubr.bf16.mxu0 0
        %676 = vmatmul.mubr.bf16.gmra.mrb[0].mxu0 %v533
        %v677 = vpop.f32.mrb[0].mxu0
        %v678 = vadd.f32 %v398, %v677
        %v679 = vpop.f32.mrb[0].mxu0
        %v680 = vpop.f32.mrb[0].mxu0
        %v681 = vadd.f32 %v398, %v680
        %v682 = vpop.f32.mrb[0].mxu0
        %683 = vmatprep.mubr.bf16.mxu0 0
        %684 = vmatmul.mubr.bf16.gmra.mrb[0].mxu0 %v536
        %v685 = vpop.f32.mrb[0].mxu0
        %v686 = vadd.f32 %v398, %v685
        %v687 = vpop.f32.mrb[0].mxu0
        %v688 = vpop.f32.mrb[0].mxu0
        %v689 = vadd.f32 %v398, %v688
        %v690 = vpop.f32.mrb[0].mxu0
        %691 = vmatprep.mubr.bf16.mxu0 0
        %692 = vmatmul.mubr.bf16.gmra.mrb[0].mxu0 %v539
        %v693 = vpop.f32.mrb[0].mxu0
        %v694 = vadd.f32 %v398, %v693
        %v695 = vpop.f32.mrb[0].mxu0
        %v696 = vpop.f32.mrb[0].mxu0
        %v697 = vadd.f32 %v398, %v696
        %v698 = vpop.f32.mrb[0].mxu0
        %699 = vmatprep.mubr.bf16.mxu0 0
        %700 = vmatmul.mubr.bf16.gmra.mrb[0].mxu0 %v542
        %v701 = vpop.f32.mrb[0].mxu0
        %v702 = vadd.f32 %v398, %v701
        %v703 = vpop.f32.mrb[0].mxu0
        %v704 = vpop.f32.mrb[0].mxu0
        %v705 = vadd.f32 %v398, %v704
        %v706 = vpop.f32.mrb[0].mxu0
        %707 = vmatprep.mubr.bf16.mxu0 0
        %708 = vmatmul.mubr.bf16.gmra.mrb[0].mxu0 %v545
        %v709 = vpop.f32.mrb[0].mxu0
        %v710 = vadd.f32 %v398, %v709
        %v711 = vpop.f32.mrb[0].mxu0
        %v712 = vpop.f32.mrb[0].mxu0
        %v713 = vadd.f32 %v398, %v712
        %v714 = vpop.f32.mrb[0].mxu0
        %715 = vmatprep.mubr.bf16.mxu0 0
        %716 = vmatmul.mubr.bf16.gmra.mrb[0].mxu0 %v548
        %v717 = vpop.f32.mrb[0].mxu0
        %v718 = vadd.f32 %v398, %v717
        %v719 = vpop.f32.mrb[0].mxu0
        %v720 = vpop.f32.mrb[0].mxu0
        %v721 = vadd.f32 %v398, %v720
        %v722 = vpop.f32.mrb[0].mxu0
        %723 = vmatprep.mubr.bf16.mxu0 0
        %724 = vmatmul.mubr.bf16.gmra.mrb[0].mxu0 %v551
        %v725 = vpop.f32.mrb[0].mxu0
        %v726 = vadd.f32 %v398, %v725
        %v727 = vpop.f32.mrb[0].mxu0
        %v728 = vpop.f32.mrb[0].mxu0
        %v729 = vadd.f32 %v398, %v728
        %v730 = vpop.f32.mrb[0].mxu0
        %731 = vmatprep.mubr.bf16.mxu0 0
        %732 = vmatmul.mubr.bf16.gmra.mrb[0].mxu0 %v554
        %v733 = vpop.f32.mrb[0].mxu0
        %v734 = vadd.f32 %v398, %v733
        %v735 = vpop.f32.mrb[0].mxu0
        %v736 = vpop.f32.mrb[0].mxu0
        %v737 = vadd.f32 %v398, %v736
        %v738 = vpop.f32.mrb[0].mxu0
        %739 = vdwg.mxu0
        %v740 = vxor.u32 %v598, 2147483648
        %v741 = vxor.u32 %v601, 2147483648
        %v742 = vxor.u32 %v606, 2147483648
        %v743 = vxor.u32 %v609, 2147483648
        %v744 = vxor.u32 %v614, 2147483648
        %v745 = vxor.u32 %v617, 2147483648
        %v746 = vxor.u32 %v622, 2147483648
        %v747 = vxor.u32 %v625, 2147483648
        %v748 = vxor.u32 %v630, 2147483648
        %v749 = vxor.u32 %v633, 2147483648
        %v750 = vxor.u32 %v638, 2147483648
        %v751 = vxor.u32 %v641, 2147483648
        %v752 = vxor.u32 %v646, 2147483648
        %v753 = vxor.u32 %v649, 2147483648
        %v754 = vxor.u32 %v654, 2147483648
        %v755 = vxor.u32 %v657, 2147483648
        %v756 = vxor.u32 %v662, 2147483648
        %v757 = vxor.u32 %v665, 2147483648
        %v758 = vxor.u32 %v670, 2147483648
        %v759 = vxor.u32 %v673, 2147483648
        %v760 = vxor.u32 %v678, 2147483648
        %v761 = vxor.u32 %v681, 2147483648
        %v762 = vxor.u32 %v686, 2147483648
        %v763 = vxor.u32 %v689, 2147483648
        %v764 = vxor.u32 %v694, 2147483648
        %v765 = vxor.u32 %v697, 2147483648
        %v766 = vxor.u32 %v702, 2147483648
        %v767 = vxor.u32 %v705, 2147483648
        %v768 = vxor.u32 %v710, 2147483648
        %v769 = vxor.u32 %v713, 2147483648
        %v770 = vxor.u32 %v718, 2147483648
        %v771 = vxor.u32 %v721, 2147483648
        %v772 = vxor.u32 %v726, 2147483648
        %v773 = vxor.u32 %v729, 2147483648
        %v774 = vxor.u32 %v734, 2147483648
        %v775 = vxor.u32 %v737, 2147483648
        %v776 = vmul.f32 %v740, 1.442695
        %v777 = vpow.pop %v776
        %v778 = vmul.f32 %v741, 1.442695
        %v779 = vpow.pop %v778
        %v780 = vmul.f32 %v742, 1.442695
        %v781 = vpow.pop %v780
        %v782 = vmul.f32 %v743, 1.442695
        %v783 = vpow.pop %v782
        %v784 = vmul.f32 %v744, 1.442695
        %v785 = vpow.pop %v784
        %v786 = vmul.f32 %v745, 1.442695
        %v787 = vpow.pop %v786
        %v788 = vmul.f32 %v746, 1.442695
        %v789 = vpow.pop %v788
        %v790 = vmul.f32 %v747, 1.442695
        %v791 = vpow.pop %v790
        %v792 = vmul.f32 %v748, 1.442695
        %v793 = vpow.pop %v792
        %v794 = vmul.f32 %v749, 1.442695
        %v795 = vpow.pop %v794
        %v796 = vmul.f32 %v750, 1.442695
        %v797 = vpow.pop %v796
        %v798 = vmul.f32 %v751, 1.442695
        %v799 = vpow.pop %v798
        %v800 = vmul.f32 %v752, 1.442695
        %v801 = vpow.pop %v800
        %v802 = vmul.f32 %v753, 1.442695
        %v803 = vpow.pop %v802
        %v804 = vmul.f32 %v754, 1.442695
        %v805 = vpow.pop %v804
        %v806 = vmul.f32 %v755, 1.442695
        %v807 = vpow.pop %v806
        %v808 = vmul.f32 %v756, 1.442695
        %v809 = vpow.pop %v808
        %v810 = vmul.f32 %v757, 1.442695
        %v811 = vpow.pop %v810
        %v812 = vmul.f32 %v758, 1.442695
        %v813 = vpow.pop %v812
        %v814 = vmul.f32 %v759, 1.442695
        %v815 = vpow.pop %v814
        %v816 = vmul.f32 %v760, 1.442695
        %v817 = vpow.pop %v816
        %v818 = vmul.f32 %v761, 1.442695
        %v819 = vpow.pop %v818
        %v820 = vmul.f32 %v762, 1.442695
        %v821 = vpow.pop %v820
        %v822 = vmul.f32 %v763, 1.442695
        %v823 = vpow.pop %v822
        %v824 = vmul.f32 %v764, 1.442695
        %v825 = vpow.pop %v824
        %v826 = vmul.f32 %v765, 1.442695
        %v827 = vpow.pop %v826
        %v828 = vmul.f32 %v766, 1.442695
        %v829 = vpow.pop %v828
        %v830 = vmul.f32 %v767, 1.442695
        %v831 = vpow.pop %v830
        %v832 = vmul.f32 %v768, 1.442695
        %v833 = vpow.pop %v832
        %v834 = vmul.f32 %v769, 1.442695
        %v835 = vpow.pop %v834
        %v836 = vmul.f32 %v770, 1.442695
        %v837 = vpow.pop %v836
        %v838 = vmul.f32 %v771, 1.442695
        %v839 = vpow.pop %v838
        %v840 = vmul.f32 %v772, 1.442695
        %v841 = vpow.pop %v840
        %v842 = vmul.f32 %v773, 1.442695
        %v843 = vpow.pop %v842
        %v844 = vmul.f32 %v774, 1.442695
        %v845 = vpow.pop %v844
        %v846 = vmul.f32 %v775, 1.442695
        %v847 = vpow.pop %v846
        %v848 = vadd.f32 %v777, 1.0
        %v849 = vadd.f32 %v779, 1.0
        %v850 = vadd.f32 %v781, 1.0
        %v851 = vadd.f32 %v783, 1.0
        %v852 = vadd.f32 %v785, 1.0
        %v853 = vadd.f32 %v787, 1.0
        %v854 = vadd.f32 %v789, 1.0
        %v855 = vadd.f32 %v791, 1.0
        %v856 = vadd.f32 %v793, 1.0
        %v857 = vadd.f32 %v795, 1.0
        %v858 = vadd.f32 %v797, 1.0
        %v859 = vadd.f32 %v799, 1.0
        %v860 = vadd.f32 %v801, 1.0
        %v861 = vadd.f32 %v803, 1.0
        %v862 = vadd.f32 %v805, 1.0
        %v863 = vadd.f32 %v807, 1.0
        %v864 = vadd.f32 %v809, 1.0
        %v865 = vadd.f32 %v811, 1.0
        %v866 = vadd.f32 %v813, 1.0
        %v867 = vadd.f32 %v815, 1.0
        %v868 = vadd.f32 %v817, 1.0
        %v869 = vadd.f32 %v819, 1.0
        %v870 = vadd.f32 %v821, 1.0
        %v871 = vadd.f32 %v823, 1.0
        %v872 = vadd.f32 %v825, 1.0
        %v873 = vadd.f32 %v827, 1.0
        %v874 = vadd.f32 %v829, 1.0
        %v875 = vadd.f32 %v831, 1.0
        %v876 = vadd.f32 %v833, 1.0
        %v877 = vadd.f32 %v835, 1.0
        %v878 = vadd.f32 %v837, 1.0
        %v879 = vadd.f32 %v839, 1.0
        %v880 = vadd.f32 %v841, 1.0
        %v881 = vadd.f32 %v843, 1.0
        %v882 = vadd.f32 %v845, 1.0
        %v883 = vadd.f32 %v847, 1.0
        %v884 = vrcp.pop %v848
        %v885 = vmul.f32 1.0, %v884
        %v886 = vrcp.pop %v849
        %v887 = vmul.f32 1.0, %v886
        %v888 = vrcp.pop %v850
        %v889 = vmul.f32 1.0, %v888
        %v890 = vrcp.pop %v851
        %v891 = vmul.f32 1.0, %v890
        %v892 = vrcp.pop %v852
        %v893 = vmul.f32 1.0, %v892
        %v894 = vrcp.pop %v853
        %v895 = vmul.f32 1.0, %v894
        %v896 = vrcp.pop %v854
        %v897 = vmul.f32 1.0, %v896
        %v898 = vrcp.pop %v855
        %v899 = vmul.f32 1.0, %v898
        %v900 = vrcp.pop %v856
        %v901 = vmul.f32 1.0, %v900
        %v902 = vrcp.pop %v857
        %v903 = vmul.f32 1.0, %v902
        %v904 = vrcp.pop %v858
        %v905 = vmul.f32 1.0, %v904
        %v906 = vrcp.pop %v859
        %v907 = vmul.f32 1.0, %v906
        %v908 = vrcp.pop %v860
        %v909 = vmul.f32 1.0, %v908
        %v910 = vrcp.pop %v861
        %v911 = vmul.f32 1.0, %v910
        %v912 = vrcp.pop %v862
        %v913 = vmul.f32 1.0, %v912
        %v914 = vrcp.pop %v863
        %v915 = vmul.f32 1.0, %v914
        %v916 = vrcp.pop %v864
        %v917 = vmul.f32 1.0, %v916
        %v918 = vrcp.pop %v865
        %v919 = vmul.f32 1.0, %v918
        %v920 = vrcp.pop %v866
        %v921 = vmul.f32 1.0, %v920
        %v922 = vrcp.pop %v867
        %v923 = vmul.f32 1.0, %v922
        %v924 = vrcp.pop %v868
        %v925 = vmul.f32 1.0, %v924
        %v926 = vrcp.pop %v869
        %v927 = vmul.f32 1.0, %v926
        %v928 = vrcp.pop %v870
        %v929 = vmul.f32 1.0, %v928
        %v930 = vrcp.pop %v871
        %v931 = vmul.f32 1.0, %v930
        %v932 = vrcp.pop %v872
        %v933 = vmul.f32 1.0, %v932
        %v934 = vrcp.pop %v873
        %v935 = vmul.f32 1.0, %v934
        %v936 = vrcp.pop %v874
        %v937 = vmul.f32 1.0, %v936
        %v938 = vrcp.pop %v875
        %v939 = vmul.f32 1.0, %v938
        %v940 = vrcp.pop %v876
        %v941 = vmul.f32 1.0, %v940
        %v942 = vrcp.pop %v877
        %v943 = vmul.f32 1.0, %v942
        %v944 = vrcp.pop %v878
        %v945 = vmul.f32 1.0, %v944
        %v946 = vrcp.pop %v879
        %v947 = vmul.f32 1.0, %v946
        %v948 = vrcp.pop %v880
        %v949 = vmul.f32 1.0, %v948
        %v950 = vrcp.pop %v881
        %v951 = vmul.f32 1.0, %v950
        %v952 = vrcp.pop %v882
        %v953 = vmul.f32 1.0, %v952
        %v954 = vrcp.pop %v883
        %v955 = vmul.f32 1.0, %v954
        %v956 = vmul.f32 %v598, %v885
        %v957 = vmul.f32 %v601, %v887
        %v958 = vmul.f32 %v606, %v889
        %v959 = vmul.f32 %v609, %v891
        %v960 = vmul.f32 %v614, %v893
        %v961 = vmul.f32 %v617, %v895
        %v962 = vmul.f32 %v622, %v897
        %v963 = vmul.f32 %v625, %v899
        %v964 = vmul.f32 %v630, %v901
        %v965 = vmul.f32 %v633, %v903
        %v966 = vmul.f32 %v638, %v905
        %v967 = vmul.f32 %v641, %v907
        %v968 = vmul.f32 %v646, %v909
        %v969 = vmul.f32 %v649, %v911
        %v970 = vmul.f32 %v654, %v913
        %v971 = vmul.f32 %v657, %v915
        %v972 = vmul.f32 %v662, %v917
        %v973 = vmul.f32 %v665, %v919
        %v974 = vmul.f32 %v670, %v921
        %v975 = vmul.f32 %v673, %v923
        %v976 = vmul.f32 %v678, %v925
        %v977 = vmul.f32 %v681, %v927
        %v978 = vmul.f32 %v686, %v929
        %v979 = vmul.f32 %v689, %v931
        %v980 = vmul.f32 %v694, %v933
        %v981 = vmul.f32 %v697, %v935
        %v982 = vmul.f32 %v702, %v937
        %v983 = vmul.f32 %v705, %v939
        %v984 = vmul.f32 %v710, %v941
        %v985 = vmul.f32 %v713, %v943
        %v986 = vmul.f32 %v718, %v945
        %v987 = vmul.f32 %v721, %v947
        %v988 = vmul.f32 %v726, %v949
        %v989 = vmul.f32 %v729, %v951
        %v990 = vmul.f32 %v734, %v953
        %v991 = vmul.f32 %v737, %v955
        %v992 = vpack.c.bf16 %v957, %v956
        %v993 = vpack.c.bf16 %v959, %v958
        %v994 = vpack.c.bf16 %v961, %v960
        %v995 = vpack.c.bf16 %v963, %v962
        %v996 = vpack.c.bf16 %v965, %v964
        %v997 = vpack.c.bf16 %v967, %v966
        %v998 = vpack.c.bf16 %v969, %v968
        %v999 = vpack.c.bf16 %v971, %v970
        %v1000 = vpack.c.bf16 %v973, %v972
        %v1001 = vpack.c.bf16 %v975, %v974
        %v1002 = vpack.c.bf16 %v977, %v976
        %v1003 = vpack.c.bf16 %v979, %v978
        %v1004 = vpack.c.bf16 %v981, %v980
        %v1005 = vpack.c.bf16 %v983, %v982
        %v1006 = vpack.c.bf16 %v985, %v984
        %v1007 = vpack.c.bf16 %v987, %v986
        %v1008 = vpack.c.bf16 %v989, %v988
        %v1009 = vpack.c.bf16 %v991, %v990
        %v1010 = vld [vmem:[%s3] sm:$0xff]
        %v1011 = vld [vmem:[%s3 + $0x8] sm:$0xff]
        %v1012 = vld [vmem:[%s3 + $0x10] sm:$0xff]
        %v1013 = vld [vmem:[%s3 + $0x18] sm:$0xff]
        %v1014 = vld [vmem:[%s3 + $0x20] sm:$0xff]
        %v1015 = vld [vmem:[%s3 + $0x28] sm:$0xff]
        %v1016 = vld [vmem:[%s3 + $0x30] sm:$0xff]
        %v1017 = vld [vmem:[%s3 + $0x38] sm:$0xff]
        %v1018 = vld [vmem:[%s3 + $0x40] sm:$0xff]
        %v1019 = vld [vmem:[%s3 + $0x48] sm:$0xff]
        %v1020 = vld [vmem:[%s3 + $0x50] sm:$0xff]
        %v1021 = vld [vmem:[%s3 + $0x58] sm:$0xff]
        %v1022 = vld [vmem:[%s3 + $0x60] sm:$0xff]
        %v1023 = vld [vmem:[%s3 + $0x68] sm:$0xff]
        %v1024 = vld [vmem:[%s3 + $0x70] sm:$0xff]
        %v1025 = vld [vmem:[%s3 + $0x78] sm:$0xff]
        %v1026 = vld [vmem:[%s3 + $0x80] sm:$0xff]
        %v1027 = vld [vmem:[%s3 + $0x88] sm:$0xff]
        %v1028 = vld [vmem:[%s3 + $0x90] sm:$0xff]
        %v1029 = vld [vmem:[%s3 + $0x98] sm:$0xff]
        %v1030 = vld [vmem:[%s4] sm:$0xff]
        %v1031 = vld [vmem:[%s4 + $0x8] sm:$0x3]
        %v1034 = vlaneseq
        %v1035 = vshrl.u32 %v1034, 7
        %v1036 = vsub.s32 0, %v1035
        %v1037 = vrot.slane %v1030, %v1036
        %v1038 = vlaneseq
        %v1039 = vshrl.u32 %v1038, 7
        %v1040 = vsub.s32 1, %v1039
        %v1041 = vrot.slane %v1030, %v1040
        %v1042 = vlaneseq
        %v1043 = vshrl.u32 %v1042, 7
        %v1044 = vsub.s32 2, %v1043
        %v1045 = vrot.slane %v1030, %v1044
        %v1046 = vlaneseq
        %v1047 = vshrl.u32 %v1046, 7
        %v1048 = vsub.s32 3, %v1047
        %v1049 = vrot.slane %v1030, %v1048
        %v1050 = vlaneseq
        %v1051 = vshrl.u32 %v1050, 7
        %v1052 = vsub.s32 4, %v1051
        %v1053 = vrot.slane %v1030, %v1052
        %v1054 = vlaneseq
        %v1055 = vshrl.u32 %v1054, 7
        %v1056 = vsub.s32 5, %v1055
        %v1057 = vrot.slane %v1030, %v1056
        %v1058 = vlaneseq
        %v1059 = vshrl.u32 %v1058, 7
        %v1060 = vsub.s32 6, %v1059
        %v1061 = vrot.slane %v1030, %v1060
        %v1062 = vlaneseq
        %v1063 = vshrl.u32 %v1062, 7
        %v1064 = vsub.s32 7, %v1063
        %v1065 = vrot.slane %v1030, %v1064
        %v1066 = vlaneseq
        %v1067 = vshrl.u32 %v1066, 7
        %v1068 = vsub.s32 0, %v1067
        %v1069 = vrot.slane %v1031, %v1068
        %v1070 = vlaneseq
        %v1071 = vshrl.u32 %v1070, 7
        %v1072 = vsub.s32 1, %v1071
        %v1073 = vrot.slane %v1031, %v1072
        %v1104 = vunpack.c.l.b16 %v1010
        %v1105 = vunpack.c.h.b16 %v1010
        %v1106 = vunpack.c.l.b16 %v1011
        %v1107 = vunpack.c.h.b16 %v1011
        %v1108 = vunpack.c.l.b16 %v1012
        %v1109 = vunpack.c.h.b16 %v1012
        %v1110 = vunpack.c.l.b16 %v1013
        %v1111 = vunpack.c.h.b16 %v1013
        %v1112 = vunpack.c.l.b16 %v1014
        %v1113 = vunpack.c.h.b16 %v1014
        %v1114 = vunpack.c.l.b16 %v1015
        %v1115 = vunpack.c.h.b16 %v1015
        %v1116 = vunpack.c.l.b16 %v1016
        %v1117 = vunpack.c.h.b16 %v1016
        %v1118 = vunpack.c.l.b16 %v1017
        %v1119 = vunpack.c.h.b16 %v1017
        %v1120 = vunpack.c.l.b16 %v1018
        %v1121 = vunpack.c.h.b16 %v1018
        %v1122 = vunpack.c.l.b16 %v1019
        %v1123 = vunpack.c.h.b16 %v1019
        %v1124 = vunpack.c.l.b16 %v1020
        %v1125 = vunpack.c.h.b16 %v1020
        %v1126 = vunpack.c.l.b16 %v1021
        %v1127 = vunpack.c.h.b16 %v1021
        %v1128 = vunpack.c.l.b16 %v1022
        %v1129 = vunpack.c.h.b16 %v1022
        %v1130 = vunpack.c.l.b16 %v1023
        %v1131 = vunpack.c.h.b16 %v1023
        %v1132 = vunpack.c.l.b16 %v1024
        %v1133 = vunpack.c.h.b16 %v1024
        %v1134 = vunpack.c.l.b16 %v1025
        %v1135 = vunpack.c.h.b16 %v1025
        %v1136 = vunpack.c.l.b16 %v1026
        %v1137 = vunpack.c.h.b16 %v1026
        %v1138 = vunpack.c.l.b16 %v1027
        %v1139 = vunpack.c.h.b16 %v1027
        %v1140 = vunpack.c.l.b16 %v1028
        %v1141 = vunpack.c.h.b16 %v1028
        %v1142 = vunpack.c.l.b16 %v1029
        %v1143 = vunpack.c.h.b16 %v1029
        %v1144 = vpack.c.b16 %v1114, %v1104
        %v1145 = vpack.c.b16 %v1115, %v1105
        %v1146 = vpack.c.b16 %v1116, %v1106
        %v1147 = vpack.c.b16 %v1117, %v1107
        %v1148 = vpack.c.b16 %v1118, %v1108
        %v1149 = vpack.c.b16 %v1119, %v1109
        %v1150 = vpack.c.b16 %v1120, %v1110
        %v1151 = vpack.c.b16 %v1121, %v1111
        %v1152 = vpack.c.b16 %v1122, %v1112
        %v1153 = vpack.c.b16 %v1123, %v1113
        %v1154 = vpack.c.b16 %v1134, %v1124
        %v1155 = vpack.c.b16 %v1135, %v1125
        %v1156 = vpack.c.b16 %v1136, %v1126
        %v1157 = vpack.c.b16 %v1137, %v1127
        %v1158 = vpack.c.b16 %v1138, %v1128
        %v1159 = vpack.c.b16 %v1139, %v1129
        %v1160 = vpack.c.b16 %v1140, %v1130
        %v1161 = vpack.c.b16 %v1141, %v1131
        %v1162 = vpack.c.b16 %v1142, %v1132
        %v1163 = vpack.c.b16 %v1143, %v1133
        %vm1184 = vcmask 261120
        %v1186 = vsel %vm1184, %v992, 0
        %v1189 = vsel %vm1184, %v993, 0
        %v1192 = vsel %vm1184, %v994, 0
        %v1195 = vsel %vm1184, %v995, 0
        %v1198 = vsel %vm1184, %v996, 0
        %v1201 = vsel %vm1184, %v997, 0
        %v1204 = vsel %vm1184, %v998, 0
        %v1207 = vsel %vm1184, %v999, 0
        %v1210 = vsel %vm1184, %v1000, 0
        %v1213 = vsel %vm1184, %v1001, 0
        %v1216 = vsel %vm1184, %v1002, 0
        %v1219 = vsel %vm1184, %v1003, 0
        %v1222 = vsel %vm1184, %v1004, 0
        %v1225 = vsel %vm1184, %v1005, 0
        %v1228 = vsel %vm1184, %v1006, 0
        %v1231 = vsel %vm1184, %v1007, 0
        %v1234 = vsel %vm1184, %v1008, 0
        %v1237 = vsel %vm1184, %v1009, 0
        %1239 = vmatprep.subr.bf16.mxu0 %v1145
        %1240 = vmatpush1.bf16.msra.mxu0 %v1144
        %1241 = vmatprep.subr.bf16.mxu0 %v1155
        %1242 = vmatpush1.bf16.msra.mxu0 %v1154
        %1243 = vmatprep.subr.bf16.mxu0 0
        %1244 = vmatpush1.bf16.msra.mxu0 0
        %1245 = vmatprep.subr.bf16.mxu0 0
        %1246 = vmatpush1.bf16.msra.mxu0 0
        %1247 = vmatprep.subr.bf16.mxu0 0
        %1248 = vmatpush1.bf16.msra.mxu0 0
        %1249 = vmatprep.subr.bf16.mxu0 0
        %1250 = vmatpush1.bf16.msra.mxu0 0
        %1251 = vmatprep.subr.bf16.mxu0 0
        %1252 = vmatpush1.bf16.msra.mxu0 0
        %1253 = vmatprep.subr.bf16.mxu0 0
        %1254 = vmatpush1.bf16.msra.mxu0 0
        %1255 = vmatprep.subr.bf16.mxu0 0
        %1256 = vmatpush1.bf16.msra.mxu0 0
        %1257 = vmatprep.subr.bf16.mxu0 0
        %1258 = vmatpush1.bf16.msra.mxu0 0
        %1259 = vmatprep.subr.bf16.mxu0 0
        %1260 = vmatpush1.bf16.msra.mxu0 0
        %1261 = vmatprep.subr.bf16.mxu0 0
        %1262 = vmatpush1.bf16.msra.mxu0 0
        %1263 = vmatprep.subr.bf16.mxu0 0
        %1264 = vmatpush1.bf16.msra.mxu0 0
        %1265 = vmatprep.subr.bf16.mxu0 0
        %1266 = vmatpush1.bf16.msra.mxu0 0
        %1267 = vmatprep.subr.bf16.mxu0 0
        %1268 = vmatpush1.bf16.msra.mxu0 0
        %1269 = vmatprep.subr.bf16.mxu0 0
        %1270 = vmatpush1.bf16.msra.mxu0 0
        %1271 = vmatprep.mubr.bf16.mxu0 0
        %1272 = vmatmul.mubr.bf16.gmra.mrb[0].mxu0 %v1186
        %v1273 = vpop.f32.mrb[0].mxu0
        %v1274 = vadd.f32 %v1037, %v1273
        %v1275 = vpop.f32.mrb[0].mxu0
        %v1276 = vadd.f32 %v1041, %v1275
        %v1277 = vpop.f32.mrb[0].mxu0
        %v1278 = vadd.f32 %v1037, %v1277
        %v1279 = vpop.f32.mrb[0].mxu0
        %v1280 = vadd.f32 %v1041, %v1279
        %1281 = vmatprep.mubr.bf16.mxu0 0
        %1282 = vmatmul.mubr.bf16.gmra.mrb[0].mxu0 %v1189
        %v1283 = vpop.f32.mrb[0].mxu0
        %v1284 = vadd.f32 %v1037, %v1283
        %v1285 = vpop.f32.mrb[0].mxu0
        %v1286 = vadd.f32 %v1041, %v1285
        %v1287 = vpop.f32.mrb[0].mxu0
        %v1288 = vadd.f32 %v1037, %v1287
        %v1289 = vpop.f32.mrb[0].mxu0
        %v1290 = vadd.f32 %v1041, %v1289
        %1291 = vmatprep.mubr.bf16.mxu0 0
        %1292 = vmatmul.mubr.bf16.gmra.mrb[0].mxu0 %v1192
        %v1293 = vpop.f32.mrb[0].mxu0
        %v1294 = vadd.f32 %v1037, %v1293
        %v1295 = vpop.f32.mrb[0].mxu0
        %v1296 = vadd.f32 %v1041, %v1295
        %v1297 = vpop.f32.mrb[0].mxu0
        %v1298 = vadd.f32 %v1037, %v1297
        %v1299 = vpop.f32.mrb[0].mxu0
        %v1300 = vadd.f32 %v1041, %v1299
        %1301 = vmatprep.mubr.bf16.mxu0 0
        %1302 = vmatmul.mubr.bf16.gmra.mrb[0].mxu0 %v1195
        %v1303 = vpop.f32.mrb[0].mxu0
        %v1304 = vadd.f32 %v1037, %v1303
        %v1305 = vpop.f32.mrb[0].mxu0
        %v1306 = vadd.f32 %v1041, %v1305
        %v1307 = vpop.f32.mrb[0].mxu0
        %v1308 = vadd.f32 %v1037, %v1307
        %v1309 = vpop.f32.mrb[0].mxu0
        %v1310 = vadd.f32 %v1041, %v1309
        %1311 = vmatprep.mubr.bf16.mxu0 0
        %1312 = vmatmul.mubr.bf16.gmra.mrb[0].mxu0 %v1198
        %v1313 = vpop.f32.mrb[0].mxu0
        %v1314 = vadd.f32 %v1037, %v1313
        %v1315 = vpop.f32.mrb[0].mxu0
        %v1316 = vadd.f32 %v1041, %v1315
        %v1317 = vpop.f32.mrb[0].mxu0
        %v1318 = vadd.f32 %v1037, %v1317
        %v1319 = vpop.f32.mrb[0].mxu0
        %v1320 = vadd.f32 %v1041, %v1319
        %1321 = vmatprep.mubr.bf16.mxu0 0
        %1322 = vmatmul.mubr.bf16.gmra.mrb[0].mxu0 %v1201
        %v1323 = vpop.f32.mrb[0].mxu0
        %v1324 = vadd.f32 %v1037, %v1323
        %v1325 = vpop.f32.mrb[0].mxu0
        %v1326 = vadd.f32 %v1041, %v1325
        %v1327 = vpop.f32.mrb[0].mxu0
        %v1328 = vadd.f32 %v1037, %v1327
        %v1329 = vpop.f32.mrb[0].mxu0
        %v1330 = vadd.f32 %v1041, %v1329
        %1331 = vmatprep.mubr.bf16.mxu0 0
        %1332 = vmatmul.mubr.bf16.gmra.mrb[0].mxu0 %v1204
        %v1333 = vpop.f32.mrb[0].mxu0
        %v1334 = vadd.f32 %v1037, %v1333
        %v1335 = vpop.f32.mrb[0].mxu0
        %v1336 = vadd.f32 %v1041, %v1335
        %v1337 = vpop.f32.mrb[0].mxu0
        %v1338 = vadd.f32 %v1037, %v1337
        %v1339 = vpop.f32.mrb[0].mxu0
        %v1340 = vadd.f32 %v1041, %v1339
        %1341 = vmatprep.mubr.bf16.mxu0 0
        %1342 = vmatmul.mubr.bf16.gmra.mrb[0].mxu0 %v1207
        %v1343 = vpop.f32.mrb[0].mxu0
        %v1344 = vadd.f32 %v1037, %v1343
        %v1345 = vpop.f32.mrb[0].mxu0
        %v1346 = vadd.f32 %v1041, %v1345
        %v1347 = vpop.f32.mrb[0].mxu0
        %v1348 = vadd.f32 %v1037, %v1347
        %v1349 = vpop.f32.mrb[0].mxu0
        %v1350 = vadd.f32 %v1041, %v1349
        %1351 = vmatprep.mubr.bf16.mxu0 0
        %1352 = vmatmul.mubr.bf16.gmra.mrb[0].mxu0 %v1210
        %v1353 = vpop.f32.mrb[0].mxu0
        %v1354 = vadd.f32 %v1037, %v1353
        %v1355 = vpop.f32.mrb[0].mxu0
        %v1356 = vadd.f32 %v1041, %v1355
        %v1357 = vpop.f32.mrb[0].mxu0
        %v1358 = vadd.f32 %v1037, %v1357
        %v1359 = vpop.f32.mrb[0].mxu0
        %v1360 = vadd.f32 %v1041, %v1359
        %1361 = vmatprep.mubr.bf16.mxu0 0
        %1362 = vmatmul.mubr.bf16.gmra.mrb[0].mxu0 %v1213
        %v1363 = vpop.f32.mrb[0].mxu0
        %v1364 = vadd.f32 %v1037, %v1363
        %v1365 = vpop.f32.mrb[0].mxu0
        %v1366 = vadd.f32 %v1041, %v1365
        %v1367 = vpop.f32.mrb[0].mxu0
        %v1368 = vadd.f32 %v1037, %v1367
        %v1369 = vpop.f32.mrb[0].mxu0
        %v1370 = vadd.f32 %v1041, %v1369
        %1371 = vmatprep.mubr.bf16.mxu0 0
        %1372 = vmatmul.mubr.bf16.gmra.mrb[0].mxu0 %v1216
        %v1373 = vpop.f32.mrb[0].mxu0
        %v1374 = vadd.f32 %v1037, %v1373
        %v1375 = vpop.f32.mrb[0].mxu0
        %v1376 = vadd.f32 %v1041, %v1375
        %v1377 = vpop.f32.mrb[0].mxu0
        %v1378 = vadd.f32 %v1037, %v1377
        %v1379 = vpop.f32.mrb[0].mxu0
        %v1380 = vadd.f32 %v1041, %v1379
        %1381 = vmatprep.mubr.bf16.mxu0 0
        %1382 = vmatmul.mubr.bf16.gmra.mrb[0].mxu0 %v1219
        %v1383 = vpop.f32.mrb[0].mxu0
        %v1384 = vadd.f32 %v1037, %v1383
        %v1385 = vpop.f32.mrb[0].mxu0
        %v1386 = vadd.f32 %v1041, %v1385
        %v1387 = vpop.f32.mrb[0].mxu0
        %v1388 = vadd.f32 %v1037, %v1387
        %v1389 = vpop.f32.mrb[0].mxu0
        %v1390 = vadd.f32 %v1041, %v1389
        %1391 = vmatprep.mubr.bf16.mxu0 0
        %1392 = vmatmul.mubr.bf16.gmra.mrb[0].mxu0 %v1222
        %v1393 = vpop.f32.mrb[0].mxu0
        %v1394 = vadd.f32 %v1037, %v1393
        %v1395 = vpop.f32.mrb[0].mxu0
        %v1396 = vadd.f32 %v1041, %v1395
        %v1397 = vpop.f32.mrb[0].mxu0
        %v1398 = vadd.f32 %v1037, %v1397
        %v1399 = vpop.f32.mrb[0].mxu0
        %v1400 = vadd.f32 %v1041, %v1399
        %1401 = vmatprep.mubr.bf16.mxu0 0
        %1402 = vmatmul.mubr.bf16.gmra.mrb[0].mxu0 %v1225
        %v1403 = vpop.f32.mrb[0].mxu0
        %v1404 = vadd.f32 %v1037, %v1403
        %v1405 = vpop.f32.mrb[0].mxu0
        %v1406 = vadd.f32 %v1041, %v1405
        %v1407 = vpop.f32.mrb[0].mxu0
        %v1408 = vadd.f32 %v1037, %v1407
        %v1409 = vpop.f32.mrb[0].mxu0
        %v1410 = vadd.f32 %v1041, %v1409
        %1411 = vmatprep.mubr.bf16.mxu0 0
        %1412 = vmatmul.mubr.bf16.gmra.mrb[0].mxu0 %v1228
        %v1413 = vpop.f32.mrb[0].mxu0
        %v1414 = vadd.f32 %v1037, %v1413
        %v1415 = vpop.f32.mrb[0].mxu0
        %v1416 = vadd.f32 %v1041, %v1415
        %v1417 = vpop.f32.mrb[0].mxu0
        %v1418 = vadd.f32 %v1037, %v1417
        %v1419 = vpop.f32.mrb[0].mxu0
        %v1420 = vadd.f32 %v1041, %v1419
        %1421 = vmatprep.mubr.bf16.mxu0 0
        %1422 = vmatmul.mubr.bf16.gmra.mrb[0].mxu0 %v1231
        %v1423 = vpop.f32.mrb[0].mxu0
        %v1424 = vadd.f32 %v1037, %v1423
        %v1425 = vpop.f32.mrb[0].mxu0
        %v1426 = vadd.f32 %v1041, %v1425
        %v1427 = vpop.f32.mrb[0].mxu0
        %v1428 = vadd.f32 %v1037, %v1427
        %v1429 = vpop.f32.mrb[0].mxu0
        %v1430 = vadd.f32 %v1041, %v1429
        %1431 = vmatprep.mubr.bf16.mxu0 0
        %1432 = vmatmul.mubr.bf16.gmra.mrb[0].mxu0 %v1234
        %v1433 = vpop.f32.mrb[0].mxu0
        %v1434 = vadd.f32 %v1037, %v1433
        %v1435 = vpop.f32.mrb[0].mxu0
        %v1436 = vadd.f32 %v1041, %v1435
        %v1437 = vpop.f32.mrb[0].mxu0
        %v1438 = vadd.f32 %v1037, %v1437
        %v1439 = vpop.f32.mrb[0].mxu0
        %v1440 = vadd.f32 %v1041, %v1439
        %1441 = vmatprep.mubr.bf16.mxu0 0
        %1442 = vmatmul.mubr.bf16.gmra.mrb[0].mxu0 %v1237
        %v1443 = vpop.f32.mrb[0].mxu0
        %v1444 = vadd.f32 %v1037, %v1443
        %v1445 = vpop.f32.mrb[0].mxu0
        %v1446 = vadd.f32 %v1041, %v1445
        %v1447 = vpop.f32.mrb[0].mxu0
        %v1448 = vadd.f32 %v1037, %v1447
        %v1449 = vpop.f32.mrb[0].mxu0
        %v1450 = vadd.f32 %v1041, %v1449
        %1451 = vdwg.mxu0
        %1452 = vmatprep.subr.bf16.mxu0 %v1147
        %1453 = vmatpush1.bf16.msra.mxu0 %v1146
        %1454 = vmatprep.subr.bf16.mxu0 %v1157
        %1455 = vmatpush1.bf16.msra.mxu0 %v1156
        %1456 = vmatprep.subr.bf16.mxu0 0
        %1457 = vmatpush1.bf16.msra.mxu0 0
        %1458 = vmatprep.subr.bf16.mxu0 0
        %1459 = vmatpush1.bf16.msra.mxu0 0
        %1460 = vmatprep.subr.bf16.mxu0 0
        %1461 = vmatpush1.bf16.msra.mxu0 0
        %1462 = vmatprep.subr.bf16.mxu0 0
        %1463 = vmatpush1.bf16.msra.mxu0 0
        %1464 = vmatprep.subr.bf16.mxu0 0
        %1465 = vmatpush1.bf16.msra.mxu0 0
        %1466 = vmatprep.subr.bf16.mxu0 0
        %1467 = vmatpush1.bf16.msra.mxu0 0
        %1468 = vmatprep.subr.bf16.mxu0 0
        %1469 = vmatpush1.bf16.msra.mxu0 0
        %1470 = vmatprep.subr.bf16.mxu0 0
        %1471 = vmatpush1.bf16.msra.mxu0 0
        %1472 = vmatprep.subr.bf16.mxu0 0
        %1473 = vmatpush1.bf16.msra.mxu0 0
        %1474 = vmatprep.subr.bf16.mxu0 0
        %1475 = vmatpush1.bf16.msra.mxu0 0
        %1476 = vmatprep.subr.bf16.mxu0 0
        %1477 = vmatpush1.bf16.msra.mxu0 0
        %1478 = vmatprep.subr.bf16.mxu0 0
        %1479 = vmatpush1.bf16.msra.mxu0 0
        %1480 = vmatprep.subr.bf16.mxu0 0
        %1481 = vmatpush1.bf16.msra.mxu0 0
        %1482 = vmatprep.subr.bf16.mxu0 0
        %1483 = vmatpush1.bf16.msra.mxu0 0
        %1484 = vmatprep.mubr.bf16.mxu0 0
        %1485 = vmatmul.mubr.bf16.gmra.mrb[0].mxu0 %v1186
        %v1486 = vpop.f32.mrb[0].mxu0
        %v1487 = vadd.f32 %v1045, %v1486
        %v1488 = vpop.f32.mrb[0].mxu0
        %v1489 = vadd.f32 %v1049, %v1488
        %v1490 = vpop.f32.mrb[0].mxu0
        %v1491 = vadd.f32 %v1045, %v1490
        %v1492 = vpop.f32.mrb[0].mxu0
        %v1493 = vadd.f32 %v1049, %v1492
        %1494 = vmatprep.mubr.bf16.mxu0 0
        %1495 = vmatmul.mubr.bf16.gmra.mrb[0].mxu0 %v1189
        %v1496 = vpop.f32.mrb[0].mxu0
        %v1497 = vadd.f32 %v1045, %v1496
        %v1498 = vpop.f32.mrb[0].mxu0
        %v1499 = vadd.f32 %v1049, %v1498
        %v1500 = vpop.f32.mrb[0].mxu0
        %v1501 = vadd.f32 %v1045, %v1500
        %v1502 = vpop.f32.mrb[0].mxu0
        %v1503 = vadd.f32 %v1049, %v1502
        %1504 = vmatprep.mubr.bf16.mxu0 0
        %1505 = vmatmul.mubr.bf16.gmra.mrb[0].mxu0 %v1192
        %v1506 = vpop.f32.mrb[0].mxu0
        %v1507 = vadd.f32 %v1045, %v1506
        %v1508 = vpop.f32.mrb[0].mxu0
        %v1509 = vadd.f32 %v1049, %v1508
        %v1510 = vpop.f32.mrb[0].mxu0
        %v1511 = vadd.f32 %v1045, %v1510
        %v1512 = vpop.f32.mrb[0].mxu0
        %v1513 = vadd.f32 %v1049, %v1512
        %1514 = vmatprep.mubr.bf16.mxu0 0
        %1515 = vmatmul.mubr.bf16.gmra.mrb[0].mxu0 %v1195
        %v1516 = vpop.f32.mrb[0].mxu0
        %v1517 = vadd.f32 %v1045, %v1516
        %v1518 = vpop.f32.mrb[0].mxu0
        %v1519 = vadd.f32 %v1049, %v1518
        %v1520 = vpop.f32.mrb[0].mxu0
        %v1521 = vadd.f32 %v1045, %v1520
        %v1522 = vpop.f32.mrb[0].mxu0
        %v1523 = vadd.f32 %v1049, %v1522
        %1524 = vmatprep.mubr.bf16.mxu0 0
        %1525 = vmatmul.mubr.bf16.gmra.mrb[0].mxu0 %v1198
        %v1526 = vpop.f32.mrb[0].mxu0
        %v1527 = vadd.f32 %v1045, %v1526
        %v1528 = vpop.f32.mrb[0].mxu0
        %v1529 = vadd.f32 %v1049, %v1528
        %v1530 = vpop.f32.mrb[0].mxu0
        %v1531 = vadd.f32 %v1045, %v1530
        %v1532 = vpop.f32.mrb[0].mxu0
        %v1533 = vadd.f32 %v1049, %v1532
        %1534 = vmatprep.mubr.bf16.mxu0 0
        %1535 = vmatmul.mubr.bf16.gmra.mrb[0].mxu0 %v1201
        %v1536 = vpop.f32.mrb[0].mxu0
        %v1537 = vadd.f32 %v1045, %v1536
        %v1538 = vpop.f32.mrb[0].mxu0
        %v1539 = vadd.f32 %v1049, %v1538
        %v1540 = vpop.f32.mrb[0].mxu0
        %v1541 = vadd.f32 %v1045, %v1540
        %v1542 = vpop.f32.mrb[0].mxu0
        %v1543 = vadd.f32 %v1049, %v1542
        %1544 = vmatprep.mubr.bf16.mxu0 0
        %1545 = vmatmul.mubr.bf16.gmra.mrb[0].mxu0 %v1204
        %v1546 = vpop.f32.mrb[0].mxu0
        %v1547 = vadd.f32 %v1045, %v1546
        %v1548 = vpop.f32.mrb[0].mxu0
        %v1549 = vadd.f32 %v1049, %v1548
        %v1550 = vpop.f32.mrb[0].mxu0
        %v1551 = vadd.f32 %v1045, %v1550
        %v1552 = vpop.f32.mrb[0].mxu0
        %v1553 = vadd.f32 %v1049, %v1552
        %1554 = vmatprep.mubr.bf16.mxu0 0
        %1555 = vmatmul.mubr.bf16.gmra.mrb[0].mxu0 %v1207
        %v1556 = vpop.f32.mrb[0].mxu0
        %v1557 = vadd.f32 %v1045, %v1556
        %v1558 = vpop.f32.mrb[0].mxu0
        %v1559 = vadd.f32 %v1049, %v1558
        %v1560 = vpop.f32.mrb[0].mxu0
        %v1561 = vadd.f32 %v1045, %v1560
        %v1562 = vpop.f32.mrb[0].mxu0
        %v1563 = vadd.f32 %v1049, %v1562
        %1564 = vmatprep.mubr.bf16.mxu0 0
        %1565 = vmatmul.mubr.bf16.gmra.mrb[0].mxu0 %v1210
        %v1566 = vpop.f32.mrb[0].mxu0
        %v1567 = vadd.f32 %v1045, %v1566
        %v1568 = vpop.f32.mrb[0].mxu0
        %v1569 = vadd.f32 %v1049, %v1568
        %v1570 = vpop.f32.mrb[0].mxu0
        %v1571 = vadd.f32 %v1045, %v1570
        %v1572 = vpop.f32.mrb[0].mxu0
        %v1573 = vadd.f32 %v1049, %v1572
        %1574 = vmatprep.mubr.bf16.mxu0 0
        %1575 = vmatmul.mubr.bf16.gmra.mrb[0].mxu0 %v1213
        %v1576 = vpop.f32.mrb[0].mxu0
        %v1577 = vadd.f32 %v1045, %v1576
        %v1578 = vpop.f32.mrb[0].mxu0
        %v1579 = vadd.f32 %v1049, %v1578
        %v1580 = vpop.f32.mrb[0].mxu0
        %v1581 = vadd.f32 %v1045, %v1580
        %v1582 = vpop.f32.mrb[0].mxu0
        %v1583 = vadd.f32 %v1049, %v1582
        %1584 = vmatprep.mubr.bf16.mxu0 0
        %1585 = vmatmul.mubr.bf16.gmra.mrb[0].mxu0 %v1216
        %v1586 = vpop.f32.mrb[0].mxu0
        %v1587 = vadd.f32 %v1045, %v1586
        %v1588 = vpop.f32.mrb[0].mxu0
        %v1589 = vadd.f32 %v1049, %v1588
        %v1590 = vpop.f32.mrb[0].mxu0
        %v1591 = vadd.f32 %v1045, %v1590
        %v1592 = vpop.f32.mrb[0].mxu0
        %v1593 = vadd.f32 %v1049, %v1592
        %1594 = vmatprep.mubr.bf16.mxu0 0
        %1595 = vmatmul.mubr.bf16.gmra.mrb[0].mxu0 %v1219
        %v1596 = vpop.f32.mrb[0].mxu0
        %v1597 = vadd.f32 %v1045, %v1596
        %v1598 = vpop.f32.mrb[0].mxu0
        %v1599 = vadd.f32 %v1049, %v1598
        %v1600 = vpop.f32.mrb[0].mxu0
        %v1601 = vadd.f32 %v1045, %v1600
        %v1602 = vpop.f32.mrb[0].mxu0
        %v1603 = vadd.f32 %v1049, %v1602
        %1604 = vmatprep.mubr.bf16.mxu0 0
        %1605 = vmatmul.mubr.bf16.gmra.mrb[0].mxu0 %v1222
        %v1606 = vpop.f32.mrb[0].mxu0
        %v1607 = vadd.f32 %v1045, %v1606
        %v1608 = vpop.f32.mrb[0].mxu0
        %v1609 = vadd.f32 %v1049, %v1608
        %v1610 = vpop.f32.mrb[0].mxu0
        %v1611 = vadd.f32 %v1045, %v1610
        %v1612 = vpop.f32.mrb[0].mxu0
        %v1613 = vadd.f32 %v1049, %v1612
        %1614 = vmatprep.mubr.bf16.mxu0 0
        %1615 = vmatmul.mubr.bf16.gmra.mrb[0].mxu0 %v1225
        %v1616 = vpop.f32.mrb[0].mxu0
        %v1617 = vadd.f32 %v1045, %v1616
        %v1618 = vpop.f32.mrb[0].mxu0
        %v1619 = vadd.f32 %v1049, %v1618
        %v1620 = vpop.f32.mrb[0].mxu0
        %v1621 = vadd.f32 %v1045, %v1620
        %v1622 = vpop.f32.mrb[0].mxu0
        %v1623 = vadd.f32 %v1049, %v1622
        %1624 = vmatprep.mubr.bf16.mxu0 0
        %1625 = vmatmul.mubr.bf16.gmra.mrb[0].mxu0 %v1228
        %v1626 = vpop.f32.mrb[0].mxu0
        %v1627 = vadd.f32 %v1045, %v1626
        %v1628 = vpop.f32.mrb[0].mxu0
        %v1629 = vadd.f32 %v1049, %v1628
        %v1630 = vpop.f32.mrb[0].mxu0
        %v1631 = vadd.f32 %v1045, %v1630
        %v1632 = vpop.f32.mrb[0].mxu0
        %v1633 = vadd.f32 %v1049, %v1632
        %1634 = vmatprep.mubr.bf16.mxu0 0
        %1635 = vmatmul.mubr.bf16.gmra.mrb[0].mxu0 %v1231
        %v1636 = vpop.f32.mrb[0].mxu0
        %v1637 = vadd.f32 %v1045, %v1636
        %v1638 = vpop.f32.mrb[0].mxu0
        %v1639 = vadd.f32 %v1049, %v1638
        %v1640 = vpop.f32.mrb[0].mxu0
        %v1641 = vadd.f32 %v1045, %v1640
        %v1642 = vpop.f32.mrb[0].mxu0
        %v1643 = vadd.f32 %v1049, %v1642
        %1644 = vmatprep.mubr.bf16.mxu0 0
        %1645 = vmatmul.mubr.bf16.gmra.mrb[0].mxu0 %v1234
        %v1646 = vpop.f32.mrb[0].mxu0
        %v1647 = vadd.f32 %v1045, %v1646
        %v1648 = vpop.f32.mrb[0].mxu0
        %v1649 = vadd.f32 %v1049, %v1648
        %v1650 = vpop.f32.mrb[0].mxu0
        %v1651 = vadd.f32 %v1045, %v1650
        %v1652 = vpop.f32.mrb[0].mxu0
        %v1653 = vadd.f32 %v1049, %v1652
        %1654 = vmatprep.mubr.bf16.mxu0 0
        %1655 = vmatmul.mubr.bf16.gmra.mrb[0].mxu0 %v1237
        %v1656 = vpop.f32.mrb[0].mxu0
        %v1657 = vadd.f32 %v1045, %v1656
        %v1658 = vpop.f32.mrb[0].mxu0
        %v1659 = vadd.f32 %v1049, %v1658
        %v1660 = vpop.f32.mrb[0].mxu0
        %v1661 = vadd.f32 %v1045, %v1660
        %v1662 = vpop.f32.mrb[0].mxu0
        %v1663 = vadd.f32 %v1049, %v1662
        %1664 = vdwg.mxu0
        %1665 = vmatprep.subr.bf16.mxu0 %v1149
        %1666 = vmatpush1.bf16.msra.mxu0 %v1148
        %1667 = vmatprep.subr.bf16.mxu0 %v1159
        %1668 = vmatpush1.bf16.msra.mxu0 %v1158
        %1669 = vmatprep.subr.bf16.mxu0 0
        %1670 = vmatpush1.bf16.msra.mxu0 0
        %1671 = vmatprep.subr.bf16.mxu0 0
        %1672 = vmatpush1.bf16.msra.mxu0 0
        %1673 = vmatprep.subr.bf16.mxu0 0
        %1674 = vmatpush1.bf16.msra.mxu0 0
        %1675 = vmatprep.subr.bf16.mxu0 0
        %1676 = vmatpush1.bf16.msra.mxu0 0
        %1677 = vmatprep.subr.bf16.mxu0 0
        %1678 = vmatpush1.bf16.msra.mxu0 0
        %1679 = vmatprep.subr.bf16.mxu0 0
        %1680 = vmatpush1.bf16.msra.mxu0 0
        %1681 = vmatprep.subr.bf16.mxu0 0
        %1682 = vmatpush1.bf16.msra.mxu0 0
        %1683 = vmatprep.subr.bf16.mxu0 0
        %1684 = vmatpush1.bf16.msra.mxu0 0
        %1685 = vmatprep.subr.bf16.mxu0 0
        %1686 = vmatpush1.bf16.msra.mxu0 0
        %1687 = vmatprep.subr.bf16.mxu0 0
        %1688 = vmatpush1.bf16.msra.mxu0 0
        %1689 = vmatprep.subr.bf16.mxu0 0
        %1690 = vmatpush1.bf16.msra.mxu0 0
        %1691 = vmatprep.subr.bf16.mxu0 0
        %1692 = vmatpush1.bf16.msra.mxu0 0
        %1693 = vmatprep.subr.bf16.mxu0 0
        %1694 = vmatpush1.bf16.msra.mxu0 0
        %1695 = vmatprep.subr.bf16.mxu0 0
        %1696 = vmatpush1.bf16.msra.mxu0 0
        %1697 = vmatprep.mubr.bf16.mxu0 0
        %1698 = vmatmul.mubr.bf16.gmra.mrb[0].mxu0 %v1186
        %v1699 = vpop.f32.mrb[0].mxu0
        %v1700 = vadd.f32 %v1053, %v1699
        %v1701 = vpop.f32.mrb[0].mxu0
        %v1702 = vadd.f32 %v1057, %v1701
        %v1703 = vpop.f32.mrb[0].mxu0
        %v1704 = vadd.f32 %v1053, %v1703
        %v1705 = vpop.f32.mrb[0].mxu0
        %v1706 = vadd.f32 %v1057, %v1705
        %1707 = vmatprep.mubr.bf16.mxu0 0
        %1708 = vmatmul.mubr.bf16.gmra.mrb[0].mxu0 %v1189
        %v1709 = vpop.f32.mrb[0].mxu0
        %v1710 = vadd.f32 %v1053, %v1709
        %v1711 = vpop.f32.mrb[0].mxu0
        %v1712 = vadd.f32 %v1057, %v1711
        %v1713 = vpop.f32.mrb[0].mxu0
        %v1714 = vadd.f32 %v1053, %v1713
        %v1715 = vpop.f32.mrb[0].mxu0
        %v1716 = vadd.f32 %v1057, %v1715
        %1717 = vmatprep.mubr.bf16.mxu0 0
        %1718 = vmatmul.mubr.bf16.gmra.mrb[0].mxu0 %v1192
        %v1719 = vpop.f32.mrb[0].mxu0
        %v1720 = vadd.f32 %v1053, %v1719
        %v1721 = vpop.f32.mrb[0].mxu0
        %v1722 = vadd.f32 %v1057, %v1721
        %v1723 = vpop.f32.mrb[0].mxu0
        %v1724 = vadd.f32 %v1053, %v1723
        %v1725 = vpop.f32.mrb[0].mxu0
        %v1726 = vadd.f32 %v1057, %v1725
        %1727 = vmatprep.mubr.bf16.mxu0 0
        %1728 = vmatmul.mubr.bf16.gmra.mrb[0].mxu0 %v1195
        %v1729 = vpop.f32.mrb[0].mxu0
        %v1730 = vadd.f32 %v1053, %v1729
        %v1731 = vpop.f32.mrb[0].mxu0
        %v1732 = vadd.f32 %v1057, %v1731
        %v1733 = vpop.f32.mrb[0].mxu0
        %v1734 = vadd.f32 %v1053, %v1733
        %v1735 = vpop.f32.mrb[0].mxu0
        %v1736 = vadd.f32 %v1057, %v1735
        %1737 = vmatprep.mubr.bf16.mxu0 0
        %1738 = vmatmul.mubr.bf16.gmra.mrb[0].mxu0 %v1198
        %v1739 = vpop.f32.mrb[0].mxu0
        %v1740 = vadd.f32 %v1053, %v1739
        %v1741 = vpop.f32.mrb[0].mxu0
        %v1742 = vadd.f32 %v1057, %v1741
        %v1743 = vpop.f32.mrb[0].mxu0
        %v1744 = vadd.f32 %v1053, %v1743
        %v1745 = vpop.f32.mrb[0].mxu0
        %v1746 = vadd.f32 %v1057, %v1745
        %1747 = vmatprep.mubr.bf16.mxu0 0
        %1748 = vmatmul.mubr.bf16.gmra.mrb[0].mxu0 %v1201
        %v1749 = vpop.f32.mrb[0].mxu0
        %v1750 = vadd.f32 %v1053, %v1749
        %v1751 = vpop.f32.mrb[0].mxu0
        %v1752 = vadd.f32 %v1057, %v1751
        %v1753 = vpop.f32.mrb[0].mxu0
        %v1754 = vadd.f32 %v1053, %v1753
        %v1755 = vpop.f32.mrb[0].mxu0
        %v1756 = vadd.f32 %v1057, %v1755
        %1757 = vmatprep.mubr.bf16.mxu0 0
        %1758 = vmatmul.mubr.bf16.gmra.mrb[0].mxu0 %v1204
        %v1759 = vpop.f32.mrb[0].mxu0
        %v1760 = vadd.f32 %v1053, %v1759
        %v1761 = vpop.f32.mrb[0].mxu0
        %v1762 = vadd.f32 %v1057, %v1761
        %v1763 = vpop.f32.mrb[0].mxu0
        %v1764 = vadd.f32 %v1053, %v1763
        %v1765 = vpop.f32.mrb[0].mxu0
        %v1766 = vadd.f32 %v1057, %v1765
        %1767 = vmatprep.mubr.bf16.mxu0 0
        %1768 = vmatmul.mubr.bf16.gmra.mrb[0].mxu0 %v1207
        %v1769 = vpop.f32.mrb[0].mxu0
        %v1770 = vadd.f32 %v1053, %v1769
        %v1771 = vpop.f32.mrb[0].mxu0
        %v1772 = vadd.f32 %v1057, %v1771
        %v1773 = vpop.f32.mrb[0].mxu0
        %v1774 = vadd.f32 %v1053, %v1773
        %v1775 = vpop.f32.mrb[0].mxu0
        %v1776 = vadd.f32 %v1057, %v1775
        %1777 = vmatprep.mubr.bf16.mxu0 0
        %1778 = vmatmul.mubr.bf16.gmra.mrb[0].mxu0 %v1210
        %v1779 = vpop.f32.mrb[0].mxu0
        %v1780 = vadd.f32 %v1053, %v1779
        %v1781 = vpop.f32.mrb[0].mxu0
        %v1782 = vadd.f32 %v1057, %v1781
        %v1783 = vpop.f32.mrb[0].mxu0
        %v1784 = vadd.f32 %v1053, %v1783
        %v1785 = vpop.f32.mrb[0].mxu0
        %v1786 = vadd.f32 %v1057, %v1785
        %1787 = vmatprep.mubr.bf16.mxu0 0
        %1788 = vmatmul.mubr.bf16.gmra.mrb[0].mxu0 %v1213
        %v1789 = vpop.f32.mrb[0].mxu0
        %v1790 = vadd.f32 %v1053, %v1789
        %v1791 = vpop.f32.mrb[0].mxu0
        %v1792 = vadd.f32 %v1057, %v1791
        %v1793 = vpop.f32.mrb[0].mxu0
        %v1794 = vadd.f32 %v1053, %v1793
        %v1795 = vpop.f32.mrb[0].mxu0
        %v1796 = vadd.f32 %v1057, %v1795
        %1797 = vmatprep.mubr.bf16.mxu0 0
        %1798 = vmatmul.mubr.bf16.gmra.mrb[0].mxu0 %v1216
        %v1799 = vpop.f32.mrb[0].mxu0
        %v1800 = vadd.f32 %v1053, %v1799
        %v1801 = vpop.f32.mrb[0].mxu0
        %v1802 = vadd.f32 %v1057, %v1801
        %v1803 = vpop.f32.mrb[0].mxu0
        %v1804 = vadd.f32 %v1053, %v1803
        %v1805 = vpop.f32.mrb[0].mxu0
        %v1806 = vadd.f32 %v1057, %v1805
        %1807 = vmatprep.mubr.bf16.mxu0 0
        %1808 = vmatmul.mubr.bf16.gmra.mrb[0].mxu0 %v1219
        %v1809 = vpop.f32.mrb[0].mxu0
        %v1810 = vadd.f32 %v1053, %v1809
        %v1811 = vpop.f32.mrb[0].mxu0
        %v1812 = vadd.f32 %v1057, %v1811
        %v1813 = vpop.f32.mrb[0].mxu0
        %v1814 = vadd.f32 %v1053, %v1813
        %v1815 = vpop.f32.mrb[0].mxu0
        %v1816 = vadd.f32 %v1057, %v1815
        %1817 = vmatprep.mubr.bf16.mxu0 0
        %1818 = vmatmul.mubr.bf16.gmra.mrb[0].mxu0 %v1222
        %v1819 = vpop.f32.mrb[0].mxu0
        %v1820 = vadd.f32 %v1053, %v1819
        %v1821 = vpop.f32.mrb[0].mxu0
        %v1822 = vadd.f32 %v1057, %v1821
        %v1823 = vpop.f32.mrb[0].mxu0
        %v1824 = vadd.f32 %v1053, %v1823
        %v1825 = vpop.f32.mrb[0].mxu0
        %v1826 = vadd.f32 %v1057, %v1825
        %1827 = vmatprep.mubr.bf16.mxu0 0
        %1828 = vmatmul.mubr.bf16.gmra.mrb[0].mxu0 %v1225
        %v1829 = vpop.f32.mrb[0].mxu0
        %v1830 = vadd.f32 %v1053, %v1829
        %v1831 = vpop.f32.mrb[0].mxu0
        %v1832 = vadd.f32 %v1057, %v1831
        %v1833 = vpop.f32.mrb[0].mxu0
        %v1834 = vadd.f32 %v1053, %v1833
        %v1835 = vpop.f32.mrb[0].mxu0
        %v1836 = vadd.f32 %v1057, %v1835
        %1837 = vmatprep.mubr.bf16.mxu0 0
        %1838 = vmatmul.mubr.bf16.gmra.mrb[0].mxu0 %v1228
        %v1839 = vpop.f32.mrb[0].mxu0
        %v1840 = vadd.f32 %v1053, %v1839
        %v1841 = vpop.f32.mrb[0].mxu0
        %v1842 = vadd.f32 %v1057, %v1841
        %v1843 = vpop.f32.mrb[0].mxu0
        %v1844 = vadd.f32 %v1053, %v1843
        %v1845 = vpop.f32.mrb[0].mxu0
        %v1846 = vadd.f32 %v1057, %v1845
        %1847 = vmatprep.mubr.bf16.mxu0 0
        %1848 = vmatmul.mubr.bf16.gmra.mrb[0].mxu0 %v1231
        %v1849 = vpop.f32.mrb[0].mxu0
        %v1850 = vadd.f32 %v1053, %v1849
        %v1851 = vpop.f32.mrb[0].mxu0
        %v1852 = vadd.f32 %v1057, %v1851
        %v1853 = vpop.f32.mrb[0].mxu0
        %v1854 = vadd.f32 %v1053, %v1853
        %v1855 = vpop.f32.mrb[0].mxu0
        %v1856 = vadd.f32 %v1057, %v1855
        %1857 = vmatprep.mubr.bf16.mxu0 0
        %1858 = vmatmul.mubr.bf16.gmra.mrb[0].mxu0 %v1234
        %v1859 = vpop.f32.mrb[0].mxu0
        %v1860 = vadd.f32 %v1053, %v1859
        %v1861 = vpop.f32.mrb[0].mxu0
        %v1862 = vadd.f32 %v1057, %v1861
        %v1863 = vpop.f32.mrb[0].mxu0
        %v1864 = vadd.f32 %v1053, %v1863
        %v1865 = vpop.f32.mrb[0].mxu0
        %v1866 = vadd.f32 %v1057, %v1865
        %1867 = vmatprep.mubr.bf16.mxu0 0
        %1868 = vmatmul.mubr.bf16.gmra.mrb[0].mxu0 %v1237
        %v1869 = vpop.f32.mrb[0].mxu0
        %v1870 = vadd.f32 %v1053, %v1869
        %v1871 = vpop.f32.mrb[0].mxu0
        %v1872 = vadd.f32 %v1057, %v1871
        %v1873 = vpop.f32.mrb[0].mxu0
        %v1874 = vadd.f32 %v1053, %v1873
        %v1875 = vpop.f32.mrb[0].mxu0
        %v1876 = vadd.f32 %v1057, %v1875
        %1877 = vdwg.mxu0
        %1878 = vmatprep.subr.bf16.mxu0 %v1151
        %1879 = vmatpush1.bf16.msra.mxu0 %v1150
        %1880 = vmatprep.subr.bf16.mxu0 %v1161
        %1881 = vmatpush1.bf16.msra.mxu0 %v1160
        %1882 = vmatprep.subr.bf16.mxu0 0
        %1883 = vmatpush1.bf16.msra.mxu0 0
        %1884 = vmatprep.subr.bf16.mxu0 0
        %1885 = vmatpush1.bf16.msra.mxu0 0
        %1886 = vmatprep.subr.bf16.mxu0 0
        %1887 = vmatpush1.bf16.msra.mxu0 0
        %1888 = vmatprep.subr.bf16.mxu0 0
        %1889 = vmatpush1.bf16.msra.mxu0 0
        %1890 = vmatprep.subr.bf16.mxu0 0
        %1891 = vmatpush1.bf16.msra.mxu0 0
        %1892 = vmatprep.subr.bf16.mxu0 0
        %1893 = vmatpush1.bf16.msra.mxu0 0
        %1894 = vmatprep.subr.bf16.mxu0 0
        %1895 = vmatpush1.bf16.msra.mxu0 0
        %1896 = vmatprep.subr.bf16.mxu0 0
        %1897 = vmatpush1.bf16.msra.mxu0 0
        %1898 = vmatprep.subr.bf16.mxu0 0
        %1899 = vmatpush1.bf16.msra.mxu0 0
        %1900 = vmatprep.subr.bf16.mxu0 0
        %1901 = vmatpush1.bf16.msra.mxu0 0
        %1902 = vmatprep.subr.bf16.mxu0 0
        %1903 = vmatpush1.bf16.msra.mxu0 0
        %1904 = vmatprep.subr.bf16.mxu0 0
        %1905 = vmatpush1.bf16.msra.mxu0 0
        %1906 = vmatprep.subr.bf16.mxu0 0
        %1907 = vmatpush1.bf16.msra.mxu0 0
        %1908 = vmatprep.subr.bf16.mxu0 0
        %1909 = vmatpush1.bf16.msra.mxu0 0
        %1910 = vmatprep.mubr.bf16.mxu0 0
        %1911 = vmatmul.mubr.bf16.gmra.mrb[0].mxu0 %v1186
        %v1912 = vpop.f32.mrb[0].mxu0
        %v1913 = vadd.f32 %v1061, %v1912
        %v1914 = vpop.f32.mrb[0].mxu0
        %v1915 = vadd.f32 %v1065, %v1914
        %v1916 = vpop.f32.mrb[0].mxu0
        %v1917 = vadd.f32 %v1061, %v1916
        %v1918 = vpop.f32.mrb[0].mxu0
        %v1919 = vadd.f32 %v1065, %v1918
        %1920 = vmatprep.mubr.bf16.mxu0 0
        %1921 = vmatmul.mubr.bf16.gmra.mrb[0].mxu0 %v1189
        %v1922 = vpop.f32.mrb[0].mxu0
        %v1923 = vadd.f32 %v1061, %v1922
        %v1924 = vpop.f32.mrb[0].mxu0
        %v1925 = vadd.f32 %v1065, %v1924
        %v1926 = vpop.f32.mrb[0].mxu0
        %v1927 = vadd.f32 %v1061, %v1926
        %v1928 = vpop.f32.mrb[0].mxu0
        %v1929 = vadd.f32 %v1065, %v1928
        %1930 = vmatprep.mubr.bf16.mxu0 0
        %1931 = vmatmul.mubr.bf16.gmra.mrb[0].mxu0 %v1192
        %v1932 = vpop.f32.mrb[0].mxu0
        %v1933 = vadd.f32 %v1061, %v1932
        %v1934 = vpop.f32.mrb[0].mxu0
        %v1935 = vadd.f32 %v1065, %v1934
        %v1936 = vpop.f32.mrb[0].mxu0
        %v1937 = vadd.f32 %v1061, %v1936
        %v1938 = vpop.f32.mrb[0].mxu0
        %v1939 = vadd.f32 %v1065, %v1938
        %1940 = vmatprep.mubr.bf16.mxu0 0
        %1941 = vmatmul.mubr.bf16.gmra.mrb[0].mxu0 %v1195
        %v1942 = vpop.f32.mrb[0].mxu0
        %v1943 = vadd.f32 %v1061, %v1942
        %v1944 = vpop.f32.mrb[0].mxu0
        %v1945 = vadd.f32 %v1065, %v1944
        %v1946 = vpop.f32.mrb[0].mxu0
        %v1947 = vadd.f32 %v1061, %v1946
        %v1948 = vpop.f32.mrb[0].mxu0
        %v1949 = vadd.f32 %v1065, %v1948
        %1950 = vmatprep.mubr.bf16.mxu0 0
        %1951 = vmatmul.mubr.bf16.gmra.mrb[0].mxu0 %v1198
        %v1952 = vpop.f32.mrb[0].mxu0
        %v1953 = vadd.f32 %v1061, %v1952
        %v1954 = vpop.f32.mrb[0].mxu0
        %v1955 = vadd.f32 %v1065, %v1954
        %v1956 = vpop.f32.mrb[0].mxu0
        %v1957 = vadd.f32 %v1061, %v1956
        %v1958 = vpop.f32.mrb[0].mxu0
        %v1959 = vadd.f32 %v1065, %v1958
        %1960 = vmatprep.mubr.bf16.mxu0 0
        %1961 = vmatmul.mubr.bf16.gmra.mrb[0].mxu0 %v1201
        %v1962 = vpop.f32.mrb[0].mxu0
        %v1963 = vadd.f32 %v1061, %v1962
        %v1964 = vpop.f32.mrb[0].mxu0
        %v1965 = vadd.f32 %v1065, %v1964
        %v1966 = vpop.f32.mrb[0].mxu0
        %v1967 = vadd.f32 %v1061, %v1966
        %v1968 = vpop.f32.mrb[0].mxu0
        %v1969 = vadd.f32 %v1065, %v1968
        %1970 = vmatprep.mubr.bf16.mxu0 0
        %1971 = vmatmul.mubr.bf16.gmra.mrb[0].mxu0 %v1204
        %v1972 = vpop.f32.mrb[0].mxu0
        %v1973 = vadd.f32 %v1061, %v1972
        %v1974 = vpop.f32.mrb[0].mxu0
        %v1975 = vadd.f32 %v1065, %v1974
        %v1976 = vpop.f32.mrb[0].mxu0
        %v1977 = vadd.f32 %v1061, %v1976
        %v1978 = vpop.f32.mrb[0].mxu0
        %v1979 = vadd.f32 %v1065, %v1978
        %1980 = vmatprep.mubr.bf16.mxu0 0
        %1981 = vmatmul.mubr.bf16.gmra.mrb[0].mxu0 %v1207
        %v1982 = vpop.f32.mrb[0].mxu0
        %v1983 = vadd.f32 %v1061, %v1982
        %v1984 = vpop.f32.mrb[0].mxu0
        %v1985 = vadd.f32 %v1065, %v1984
        %v1986 = vpop.f32.mrb[0].mxu0
        %v1987 = vadd.f32 %v1061, %v1986
        %v1988 = vpop.f32.mrb[0].mxu0
        %v1989 = vadd.f32 %v1065, %v1988
        %1990 = vmatprep.mubr.bf16.mxu0 0
        %1991 = vmatmul.mubr.bf16.gmra.mrb[0].mxu0 %v1210
        %v1992 = vpop.f32.mrb[0].mxu0
        %v1993 = vadd.f32 %v1061, %v1992
        %v1994 = vpop.f32.mrb[0].mxu0
        %v1995 = vadd.f32 %v1065, %v1994
        %v1996 = vpop.f32.mrb[0].mxu0
        %v1997 = vadd.f32 %v1061, %v1996
        %v1998 = vpop.f32.mrb[0].mxu0
        %v1999 = vadd.f32 %v1065, %v1998
        %2000 = vmatprep.mubr.bf16.mxu0 0
        %2001 = vmatmul.mubr.bf16.gmra.mrb[0].mxu0 %v1213
        %v2002 = vpop.f32.mrb[0].mxu0
        %v2003 = vadd.f32 %v1061, %v2002
        %v2004 = vpop.f32.mrb[0].mxu0
        %v2005 = vadd.f32 %v1065, %v2004
        %v2006 = vpop.f32.mrb[0].mxu0
        %v2007 = vadd.f32 %v1061, %v2006
        %v2008 = vpop.f32.mrb[0].mxu0
        %v2009 = vadd.f32 %v1065, %v2008
        %2010 = vmatprep.mubr.bf16.mxu0 0
        %2011 = vmatmul.mubr.bf16.gmra.mrb[0].mxu0 %v1216
        %v2012 = vpop.f32.mrb[0].mxu0
        %v2013 = vadd.f32 %v1061, %v2012
        %v2014 = vpop.f32.mrb[0].mxu0
        %v2015 = vadd.f32 %v1065, %v2014
        %v2016 = vpop.f32.mrb[0].mxu0
        %v2017 = vadd.f32 %v1061, %v2016
        %v2018 = vpop.f32.mrb[0].mxu0
        %v2019 = vadd.f32 %v1065, %v2018
        %2020 = vmatprep.mubr.bf16.mxu0 0
        %2021 = vmatmul.mubr.bf16.gmra.mrb[0].mxu0 %v1219
        %v2022 = vpop.f32.mrb[0].mxu0
        %v2023 = vadd.f32 %v1061, %v2022
        %v2024 = vpop.f32.mrb[0].mxu0
        %v2025 = vadd.f32 %v1065, %v2024
        %v2026 = vpop.f32.mrb[0].mxu0
        %v2027 = vadd.f32 %v1061, %v2026
        %v2028 = vpop.f32.mrb[0].mxu0
        %v2029 = vadd.f32 %v1065, %v2028
        %2030 = vmatprep.mubr.bf16.mxu0 0
        %2031 = vmatmul.mubr.bf16.gmra.mrb[0].mxu0 %v1222
        %v2032 = vpop.f32.mrb[0].mxu0
        %v2033 = vadd.f32 %v1061, %v2032
        %v2034 = vpop.f32.mrb[0].mxu0
        %v2035 = vadd.f32 %v1065, %v2034
        %v2036 = vpop.f32.mrb[0].mxu0
        %v2037 = vadd.f32 %v1061, %v2036
        %v2038 = vpop.f32.mrb[0].mxu0
        %v2039 = vadd.f32 %v1065, %v2038
        %2040 = vmatprep.mubr.bf16.mxu0 0
        %2041 = vmatmul.mubr.bf16.gmra.mrb[0].mxu0 %v1225
        %v2042 = vpop.f32.mrb[0].mxu0
        %v2043 = vadd.f32 %v1061, %v2042
        %v2044 = vpop.f32.mrb[0].mxu0
        %v2045 = vadd.f32 %v1065, %v2044
        %v2046 = vpop.f32.mrb[0].mxu0
        %v2047 = vadd.f32 %v1061, %v2046
        %v2048 = vpop.f32.mrb[0].mxu0
        %v2049 = vadd.f32 %v1065, %v2048
        %2050 = vmatprep.mubr.bf16.mxu0 0
        %2051 = vmatmul.mubr.bf16.gmra.mrb[0].mxu0 %v1228
        %v2052 = vpop.f32.mrb[0].mxu0
        %v2053 = vadd.f32 %v1061, %v2052
        %v2054 = vpop.f32.mrb[0].mxu0
        %v2055 = vadd.f32 %v1065, %v2054
        %v2056 = vpop.f32.mrb[0].mxu0
        %v2057 = vadd.f32 %v1061, %v2056
        %v2058 = vpop.f32.mrb[0].mxu0
        %v2059 = vadd.f32 %v1065, %v2058
        %2060 = vmatprep.mubr.bf16.mxu0 0
        %2061 = vmatmul.mubr.bf16.gmra.mrb[0].mxu0 %v1231
        %v2062 = vpop.f32.mrb[0].mxu0
        %v2063 = vadd.f32 %v1061, %v2062
        %v2064 = vpop.f32.mrb[0].mxu0
        %v2065 = vadd.f32 %v1065, %v2064
        %v2066 = vpop.f32.mrb[0].mxu0
        %v2067 = vadd.f32 %v1061, %v2066
        %v2068 = vpop.f32.mrb[0].mxu0
        %v2069 = vadd.f32 %v1065, %v2068
        %2070 = vmatprep.mubr.bf16.mxu0 0
        %2071 = vmatmul.mubr.bf16.gmra.mrb[0].mxu0 %v1234
        %v2072 = vpop.f32.mrb[0].mxu0
        %v2073 = vadd.f32 %v1061, %v2072
        %v2074 = vpop.f32.mrb[0].mxu0
        %v2075 = vadd.f32 %v1065, %v2074
        %v2076 = vpop.f32.mrb[0].mxu0
        %v2077 = vadd.f32 %v1061, %v2076
        %v2078 = vpop.f32.mrb[0].mxu0
        %v2079 = vadd.f32 %v1065, %v2078
        %2080 = vmatprep.mubr.bf16.mxu0 0
        %2081 = vmatmul.mubr.bf16.gmra.mrb[0].mxu0 %v1237
        %v2082 = vpop.f32.mrb[0].mxu0
        %v2083 = vadd.f32 %v1061, %v2082
        %v2084 = vpop.f32.mrb[0].mxu0
        %v2085 = vadd.f32 %v1065, %v2084
        %v2086 = vpop.f32.mrb[0].mxu0
        %v2087 = vadd.f32 %v1061, %v2086
        %v2088 = vpop.f32.mrb[0].mxu0
        %v2089 = vadd.f32 %v1065, %v2088
        %2090 = vdwg.mxu0
        %2091 = vmatprep.subr.bf16.mxu0 %v1153
        %2092 = vmatpush1.bf16.msra.mxu0 %v1152
        %2093 = vmatprep.subr.bf16.mxu0 %v1163
        %2094 = vmatpush1.bf16.msra.mxu0 %v1162
        %2095 = vmatprep.subr.bf16.mxu0 0
        %2096 = vmatpush1.bf16.msra.mxu0 0
        %2097 = vmatprep.subr.bf16.mxu0 0
        %2098 = vmatpush1.bf16.msra.mxu0 0
        %2099 = vmatprep.subr.bf16.mxu0 0
        %2100 = vmatpush1.bf16.msra.mxu0 0
        %2101 = vmatprep.subr.bf16.mxu0 0
        %2102 = vmatpush1.bf16.msra.mxu0 0
        %2103 = vmatprep.subr.bf16.mxu0 0
        %2104 = vmatpush1.bf16.msra.mxu0 0
        %2105 = vmatprep.subr.bf16.mxu0 0
        %2106 = vmatpush1.bf16.msra.mxu0 0
        %2107 = vmatprep.subr.bf16.mxu0 0
        %2108 = vmatpush1.bf16.msra.mxu0 0
        %2109 = vmatprep.subr.bf16.mxu0 0
        %2110 = vmatpush1.bf16.msra.mxu0 0
        %2111 = vmatprep.subr.bf16.mxu0 0
        %2112 = vmatpush1.bf16.msra.mxu0 0
        %2113 = vmatprep.subr.bf16.mxu0 0
        %2114 = vmatpush1.bf16.msra.mxu0 0
        %2115 = vmatprep.subr.bf16.mxu0 0
        %2116 = vmatpush1.bf16.msra.mxu0 0
        %2117 = vmatprep.subr.bf16.mxu0 0
        %2118 = vmatpush1.bf16.msra.mxu0 0
        %2119 = vmatprep.subr.bf16.mxu0 0
        %2120 = vmatpush1.bf16.msra.mxu0 0
        %2121 = vmatprep.subr.bf16.mxu0 0
        %2122 = vmatpush1.bf16.msra.mxu0 0
        %2123 = vmatprep.mubr.bf16.mxu0 0
        %2124 = vmatmul.mubr.bf16.gmra.mrb[0].mxu0 %v1186
        %v2125 = vpop.f32.mrb[0].mxu0
        %v2126 = vadd.f32 %v1069, %v2125
        %v2127 = vpop.f32.mrb[0].mxu0
        %v2128 = vadd.f32 %v1073, %v2127
        %v2129 = vpop.f32.mrb[0].mxu0
        %v2130 = vadd.f32 %v1069, %v2129
        %v2131 = vpop.f32.mrb[0].mxu0
        %v2132 = vadd.f32 %v1073, %v2131
        %2133 = vmatprep.mubr.bf16.mxu0 0
        %2134 = vmatmul.mubr.bf16.gmra.mrb[0].mxu0 %v1189
        %v2135 = vpop.f32.mrb[0].mxu0
        %v2136 = vadd.f32 %v1069, %v2135
        %v2137 = vpop.f32.mrb[0].mxu0
        %v2138 = vadd.f32 %v1073, %v2137
        %v2139 = vpop.f32.mrb[0].mxu0
        %v2140 = vadd.f32 %v1069, %v2139
        %v2141 = vpop.f32.mrb[0].mxu0
        %v2142 = vadd.f32 %v1073, %v2141
        %2143 = vmatprep.mubr.bf16.mxu0 0
        %2144 = vmatmul.mubr.bf16.gmra.mrb[0].mxu0 %v1192
        %v2145 = vpop.f32.mrb[0].mxu0
        %v2146 = vadd.f32 %v1069, %v2145
        %v2147 = vpop.f32.mrb[0].mxu0
        %v2148 = vadd.f32 %v1073, %v2147
        %v2149 = vpop.f32.mrb[0].mxu0
        %v2150 = vadd.f32 %v1069, %v2149
        %v2151 = vpop.f32.mrb[0].mxu0
        %v2152 = vadd.f32 %v1073, %v2151
        %2153 = vmatprep.mubr.bf16.mxu0 0
        %2154 = vmatmul.mubr.bf16.gmra.mrb[0].mxu0 %v1195
        %v2155 = vpop.f32.mrb[0].mxu0
        %v2156 = vadd.f32 %v1069, %v2155
        %v2157 = vpop.f32.mrb[0].mxu0
        %v2158 = vadd.f32 %v1073, %v2157
        %v2159 = vpop.f32.mrb[0].mxu0
        %v2160 = vadd.f32 %v1069, %v2159
        %v2161 = vpop.f32.mrb[0].mxu0
        %v2162 = vadd.f32 %v1073, %v2161
        %2163 = vmatprep.mubr.bf16.mxu0 0
        %2164 = vmatmul.mubr.bf16.gmra.mrb[0].mxu0 %v1198
        %v2165 = vpop.f32.mrb[0].mxu0
        %v2166 = vadd.f32 %v1069, %v2165
        %v2167 = vpop.f32.mrb[0].mxu0
        %v2168 = vadd.f32 %v1073, %v2167
        %v2169 = vpop.f32.mrb[0].mxu0
        %v2170 = vadd.f32 %v1069, %v2169
        %v2171 = vpop.f32.mrb[0].mxu0
        %v2172 = vadd.f32 %v1073, %v2171
        %2173 = vmatprep.mubr.bf16.mxu0 0
        %2174 = vmatmul.mubr.bf16.gmra.mrb[0].mxu0 %v1201
        %v2175 = vpop.f32.mrb[0].mxu0
        %v2176 = vadd.f32 %v1069, %v2175
        %v2177 = vpop.f32.mrb[0].mxu0
        %v2178 = vadd.f32 %v1073, %v2177
        %v2179 = vpop.f32.mrb[0].mxu0
        %v2180 = vadd.f32 %v1069, %v2179
        %v2181 = vpop.f32.mrb[0].mxu0
        %v2182 = vadd.f32 %v1073, %v2181
        %2183 = vmatprep.mubr.bf16.mxu0 0
        %2184 = vmatmul.mubr.bf16.gmra.mrb[0].mxu0 %v1204
        %v2185 = vpop.f32.mrb[0].mxu0
        %v2186 = vadd.f32 %v1069, %v2185
        %v2187 = vpop.f32.mrb[0].mxu0
        %v2188 = vadd.f32 %v1073, %v2187
        %v2189 = vpop.f32.mrb[0].mxu0
        %v2190 = vadd.f32 %v1069, %v2189
        %v2191 = vpop.f32.mrb[0].mxu0
        %v2192 = vadd.f32 %v1073, %v2191
        %2193 = vmatprep.mubr.bf16.mxu0 0
        %2194 = vmatmul.mubr.bf16.gmra.mrb[0].mxu0 %v1207
        %v2195 = vpop.f32.mrb[0].mxu0
        %v2196 = vadd.f32 %v1069, %v2195
        %v2197 = vpop.f32.mrb[0].mxu0
        %v2198 = vadd.f32 %v1073, %v2197
        %v2199 = vpop.f32.mrb[0].mxu0
        %v2200 = vadd.f32 %v1069, %v2199
        %v2201 = vpop.f32.mrb[0].mxu0
        %v2202 = vadd.f32 %v1073, %v2201
        %2203 = vmatprep.mubr.bf16.mxu0 0
        %2204 = vmatmul.mubr.bf16.gmra.mrb[0].mxu0 %v1210
        %v2205 = vpop.f32.mrb[0].mxu0
        %v2206 = vadd.f32 %v1069, %v2205
        %v2207 = vpop.f32.mrb[0].mxu0
        %v2208 = vadd.f32 %v1073, %v2207
        %v2209 = vpop.f32.mrb[0].mxu0
        %v2210 = vadd.f32 %v1069, %v2209
        %v2211 = vpop.f32.mrb[0].mxu0
        %v2212 = vadd.f32 %v1073, %v2211
        %2213 = vmatprep.mubr.bf16.mxu0 0
        %2214 = vmatmul.mubr.bf16.gmra.mrb[0].mxu0 %v1213
        %v2215 = vpop.f32.mrb[0].mxu0
        %v2216 = vadd.f32 %v1069, %v2215
        %v2217 = vpop.f32.mrb[0].mxu0
        %v2218 = vadd.f32 %v1073, %v2217
        %v2219 = vpop.f32.mrb[0].mxu0
        %v2220 = vadd.f32 %v1069, %v2219
        %v2221 = vpop.f32.mrb[0].mxu0
        %v2222 = vadd.f32 %v1073, %v2221
        %2223 = vmatprep.mubr.bf16.mxu0 0
        %2224 = vmatmul.mubr.bf16.gmra.mrb[0].mxu0 %v1216
        %v2225 = vpop.f32.mrb[0].mxu0
        %v2226 = vadd.f32 %v1069, %v2225
        %v2227 = vpop.f32.mrb[0].mxu0
        %v2228 = vadd.f32 %v1073, %v2227
        %v2229 = vpop.f32.mrb[0].mxu0
        %v2230 = vadd.f32 %v1069, %v2229
        %v2231 = vpop.f32.mrb[0].mxu0
        %v2232 = vadd.f32 %v1073, %v2231
        %2233 = vmatprep.mubr.bf16.mxu0 0
        %2234 = vmatmul.mubr.bf16.gmra.mrb[0].mxu0 %v1219
        %v2235 = vpop.f32.mrb[0].mxu0
        %v2236 = vadd.f32 %v1069, %v2235
        %v2237 = vpop.f32.mrb[0].mxu0
        %v2238 = vadd.f32 %v1073, %v2237
        %v2239 = vpop.f32.mrb[0].mxu0
        %v2240 = vadd.f32 %v1069, %v2239
        %v2241 = vpop.f32.mrb[0].mxu0
        %v2242 = vadd.f32 %v1073, %v2241
        %2243 = vmatprep.mubr.bf16.mxu0 0
        %2244 = vmatmul.mubr.bf16.gmra.mrb[0].mxu0 %v1222
        %v2245 = vpop.f32.mrb[0].mxu0
        %v2246 = vadd.f32 %v1069, %v2245
        %v2247 = vpop.f32.mrb[0].mxu0
        %v2248 = vadd.f32 %v1073, %v2247
        %v2249 = vpop.f32.mrb[0].mxu0
        %v2250 = vadd.f32 %v1069, %v2249
        %v2251 = vpop.f32.mrb[0].mxu0
        %v2252 = vadd.f32 %v1073, %v2251
        %2253 = vmatprep.mubr.bf16.mxu0 0
        %2254 = vmatmul.mubr.bf16.gmra.mrb[0].mxu0 %v1225
        %v2255 = vpop.f32.mrb[0].mxu0
        %v2256 = vadd.f32 %v1069, %v2255
        %v2257 = vpop.f32.mrb[0].mxu0
        %v2258 = vadd.f32 %v1073, %v2257
        %v2259 = vpop.f32.mrb[0].mxu0
        %v2260 = vadd.f32 %v1069, %v2259
        %v2261 = vpop.f32.mrb[0].mxu0
        %v2262 = vadd.f32 %v1073, %v2261
        %2263 = vmatprep.mubr.bf16.mxu0 0
        %2264 = vmatmul.mubr.bf16.gmra.mrb[0].mxu0 %v1228
        %v2265 = vpop.f32.mrb[0].mxu0
        %v2266 = vadd.f32 %v1069, %v2265
        %v2267 = vpop.f32.mrb[0].mxu0
        %v2268 = vadd.f32 %v1073, %v2267
        %v2269 = vpop.f32.mrb[0].mxu0
        %v2270 = vadd.f32 %v1069, %v2269
        %v2271 = vpop.f32.mrb[0].mxu0
        %v2272 = vadd.f32 %v1073, %v2271
        %2273 = vmatprep.mubr.bf16.mxu0 0
        %2274 = vmatmul.mubr.bf16.gmra.mrb[0].mxu0 %v1231
        %v2275 = vpop.f32.mrb[0].mxu0
        %v2276 = vadd.f32 %v1069, %v2275
        %v2277 = vpop.f32.mrb[0].mxu0
        %v2278 = vadd.f32 %v1073, %v2277
        %v2279 = vpop.f32.mrb[0].mxu0
        %v2280 = vadd.f32 %v1069, %v2279
        %v2281 = vpop.f32.mrb[0].mxu0
        %v2282 = vadd.f32 %v1073, %v2281
        %2283 = vmatprep.mubr.bf16.mxu0 0
        %2284 = vmatmul.mubr.bf16.gmra.mrb[0].mxu0 %v1234
        %v2285 = vpop.f32.mrb[0].mxu0
        %v2286 = vadd.f32 %v1069, %v2285
        %v2287 = vpop.f32.mrb[0].mxu0
        %v2288 = vadd.f32 %v1073, %v2287
        %v2289 = vpop.f32.mrb[0].mxu0
        %v2290 = vadd.f32 %v1069, %v2289
        %v2291 = vpop.f32.mrb[0].mxu0
        %v2292 = vadd.f32 %v1073, %v2291
        %2293 = vmatprep.mubr.bf16.mxu0 0
        %2294 = vmatmul.mubr.bf16.gmra.mrb[0].mxu0 %v1237
        %v2295 = vpop.f32.mrb[0].mxu0
        %v2296 = vadd.f32 %v1069, %v2295
        %v2297 = vpop.f32.mrb[0].mxu0
        %v2298 = vadd.f32 %v1073, %v2297
        %v2299 = vpop.f32.mrb[0].mxu0
        %v2300 = vadd.f32 %v1069, %v2299
        %v2301 = vpop.f32.mrb[0].mxu0
        %v2302 = vadd.f32 %v1073, %v2301
        %2303 = vdwg.mxu0
        %v2304 = vxor.u32 %v1274, 2147483648
        %v2305 = vxor.u32 %v1276, 2147483648
        %v2306 = vxor.u32 %v1487, 2147483648
        %v2307 = vxor.u32 %v1489, 2147483648
        %v2308 = vxor.u32 %v1700, 2147483648
        %v2309 = vxor.u32 %v1702, 2147483648
        %v2310 = vxor.u32 %v1913, 2147483648
        %v2311 = vxor.u32 %v1915, 2147483648
        %v2312 = vxor.u32 %v2126, 2147483648
        %v2313 = vxor.u32 %v2128, 2147483648
        %v2314 = vxor.u32 %v1278, 2147483648
        %v2315 = vxor.u32 %v1280, 2147483648
        %v2316 = vxor.u32 %v1491, 2147483648
        %v2317 = vxor.u32 %v1493, 2147483648
        %v2318 = vxor.u32 %v1704, 2147483648
        %v2319 = vxor.u32 %v1706, 2147483648
        %v2320 = vxor.u32 %v1917, 2147483648
        %v2321 = vxor.u32 %v1919, 2147483648
        %v2322 = vxor.u32 %v2130, 2147483648
        %v2323 = vxor.u32 %v2132, 2147483648
        %v2324 = vxor.u32 %v1284, 2147483648
        %v2325 = vxor.u32 %v1286, 2147483648
        %v2326 = vxor.u32 %v1497, 2147483648
        %v2327 = vxor.u32 %v1499, 2147483648
        %v2328 = vxor.u32 %v1710, 2147483648
        %v2329 = vxor.u32 %v1712, 2147483648
        %v2330 = vxor.u32 %v1923, 2147483648
        %v2331 = vxor.u32 %v1925, 2147483648
        %v2332 = vxor.u32 %v2136, 2147483648
        %v2333 = vxor.u32 %v2138, 2147483648
        %v2334 = vxor.u32 %v1288, 2147483648
        %v2335 = vxor.u32 %v1290, 2147483648
        %v2336 = vxor.u32 %v1501, 2147483648
        %v2337 = vxor.u32 %v1503, 2147483648
        %v2338 = vxor.u32 %v1714, 2147483648
        %v2339 = vxor.u32 %v1716, 2147483648
        %v2340 = vxor.u32 %v1927, 2147483648
        %v2341 = vxor.u32 %v1929, 2147483648
        %v2342 = vxor.u32 %v2140, 2147483648
        %v2343 = vxor.u32 %v2142, 2147483648
        %v2344 = vxor.u32 %v1294, 2147483648
        %v2345 = vxor.u32 %v1296, 2147483648
        %v2346 = vxor.u32 %v1507, 2147483648
        %v2347 = vxor.u32 %v1509, 2147483648
        %v2348 = vxor.u32 %v1720, 2147483648
        %v2349 = vxor.u32 %v1722, 2147483648
        %v2350 = vxor.u32 %v1933, 2147483648
        %v2351 = vxor.u32 %v1935, 2147483648
        %v2352 = vxor.u32 %v2146, 2147483648
        %v2353 = vxor.u32 %v2148, 2147483648
        %v2354 = vxor.u32 %v1298, 2147483648
        %v2355 = vxor.u32 %v1300, 2147483648
        %v2356 = vxor.u32 %v1511, 2147483648
        %v2357 = vxor.u32 %v1513, 2147483648
        %v2358 = vxor.u32 %v1724, 2147483648
        %v2359 = vxor.u32 %v1726, 2147483648
        %v2360 = vxor.u32 %v1937, 2147483648
        %v2361 = vxor.u32 %v1939, 2147483648
        %v2362 = vxor.u32 %v2150, 2147483648
        %v2363 = vxor.u32 %v2152, 2147483648
        %v2364 = vxor.u32 %v1304, 2147483648
        %v2365 = vxor.u32 %v1306, 2147483648
        %v2366 = vxor.u32 %v1517, 2147483648
        %v2367 = vxor.u32 %v1519, 2147483648
        %v2368 = vxor.u32 %v1730, 2147483648
        %v2369 = vxor.u32 %v1732, 2147483648
        %v2370 = vxor.u32 %v1943, 2147483648
        %v2371 = vxor.u32 %v1945, 2147483648
        %v2372 = vxor.u32 %v2156, 2147483648
        %v2373 = vxor.u32 %v2158, 2147483648
        %v2374 = vxor.u32 %v1308, 2147483648
        %v2375 = vxor.u32 %v1310, 2147483648
        %v2376 = vxor.u32 %v1521, 2147483648
        %v2377 = vxor.u32 %v1523, 2147483648
        %v2378 = vxor.u32 %v1734, 2147483648
        %v2379 = vxor.u32 %v1736, 2147483648
        %v2380 = vxor.u32 %v1947, 2147483648
        %v2381 = vxor.u32 %v1949, 2147483648
        %v2382 = vxor.u32 %v2160, 2147483648
        %v2383 = vxor.u32 %v2162, 2147483648
        %v2384 = vxor.u32 %v1314, 2147483648
        %v2385 = vxor.u32 %v1316, 2147483648
        %v2386 = vxor.u32 %v1527, 2147483648
        %v2387 = vxor.u32 %v1529, 2147483648
        %v2388 = vxor.u32 %v1740, 2147483648
        %v2389 = vxor.u32 %v1742, 2147483648
        %v2390 = vxor.u32 %v1953, 2147483648
        %v2391 = vxor.u32 %v1955, 2147483648
        %v2392 = vxor.u32 %v2166, 2147483648
        %v2393 = vxor.u32 %v2168, 2147483648
        %v2394 = vxor.u32 %v1318, 2147483648
        %v2395 = vxor.u32 %v1320, 2147483648
        %v2396 = vxor.u32 %v1531, 2147483648
        %v2397 = vxor.u32 %v1533, 2147483648
        %v2398 = vxor.u32 %v1744, 2147483648
        %v2399 = vxor.u32 %v1746, 2147483648
        %v2400 = vxor.u32 %v1957, 2147483648
        %v2401 = vxor.u32 %v1959, 2147483648
        %v2402 = vxor.u32 %v2170, 2147483648
        %v2403 = vxor.u32 %v2172, 2147483648
        %v2404 = vxor.u32 %v1324, 2147483648
        %v2405 = vxor.u32 %v1326, 2147483648
        %v2406 = vxor.u32 %v1537, 2147483648
        %v2407 = vxor.u32 %v1539, 2147483648
        %v2408 = vxor.u32 %v1750, 2147483648
        %v2409 = vxor.u32 %v1752, 2147483648
        %v2410 = vxor.u32 %v1963, 2147483648
        %v2411 = vxor.u32 %v1965, 2147483648
        %v2412 = vxor.u32 %v2176, 2147483648
        %v2413 = vxor.u32 %v2178, 2147483648
        %v2414 = vxor.u32 %v1328, 2147483648
        %v2415 = vxor.u32 %v1330, 2147483648
        %v2416 = vxor.u32 %v1541, 2147483648
        %v2417 = vxor.u32 %v1543, 2147483648
        %v2418 = vxor.u32 %v1754, 2147483648
        %v2419 = vxor.u32 %v1756, 2147483648
        %v2420 = vxor.u32 %v1967, 2147483648
        %v2421 = vxor.u32 %v1969, 2147483648
        %v2422 = vxor.u32 %v2180, 2147483648
        %v2423 = vxor.u32 %v2182, 2147483648
        %v2424 = vxor.u32 %v1334, 2147483648
        %v2425 = vxor.u32 %v1336, 2147483648
        %v2426 = vxor.u32 %v1547, 2147483648
        %v2427 = vxor.u32 %v1549, 2147483648
        %v2428 = vxor.u32 %v1760, 2147483648
        %v2429 = vxor.u32 %v1762, 2147483648
        %v2430 = vxor.u32 %v1973, 2147483648
        %v2431 = vxor.u32 %v1975, 2147483648
        %v2432 = vxor.u32 %v2186, 2147483648
        %v2433 = vxor.u32 %v2188, 2147483648
        %v2434 = vxor.u32 %v1338, 2147483648
        %v2435 = vxor.u32 %v1340, 2147483648
        %v2436 = vxor.u32 %v1551, 2147483648
        %v2437 = vxor.u32 %v1553, 2147483648
        %v2438 = vxor.u32 %v1764, 2147483648
        %v2439 = vxor.u32 %v1766, 2147483648
        %v2440 = vxor.u32 %v1977, 2147483648
        %v2441 = vxor.u32 %v1979, 2147483648
        %v2442 = vxor.u32 %v2190, 2147483648
        %v2443 = vxor.u32 %v2192, 2147483648
        %v2444 = vxor.u32 %v1344, 2147483648
        %v2445 = vxor.u32 %v1346, 2147483648
        %v2446 = vxor.u32 %v1557, 2147483648
        %v2447 = vxor.u32 %v1559, 2147483648
        %v2448 = vxor.u32 %v1770, 2147483648
        %v2449 = vxor.u32 %v1772, 2147483648
        %v2450 = vxor.u32 %v1983, 2147483648
        %v2451 = vxor.u32 %v1985, 2147483648
        %v2452 = vxor.u32 %v2196, 2147483648
        %v2453 = vxor.u32 %v2198, 2147483648
        %v2454 = vxor.u32 %v1348, 2147483648
        %v2455 = vxor.u32 %v1350, 2147483648
        %v2456 = vxor.u32 %v1561, 2147483648
        %v2457 = vxor.u32 %v1563, 2147483648
        %v2458 = vxor.u32 %v1774, 2147483648
        %v2459 = vxor.u32 %v1776, 2147483648
        %v2460 = vxor.u32 %v1987, 2147483648
        %v2461 = vxor.u32 %v1989, 2147483648
        %v2462 = vxor.u32 %v2200, 2147483648
        %v2463 = vxor.u32 %v2202, 2147483648
        %v2464 = vxor.u32 %v1354, 2147483648
        %v2465 = vxor.u32 %v1356, 2147483648
        %v2466 = vxor.u32 %v1567, 2147483648
        %v2467 = vxor.u32 %v1569, 2147483648
        %v2468 = vxor.u32 %v1780, 2147483648
        %v2469 = vxor.u32 %v1782, 2147483648
        %v2470 = vxor.u32 %v1993, 2147483648
        %v2471 = vxor.u32 %v1995, 2147483648
        %v2472 = vxor.u32 %v2206, 2147483648
        %v2473 = vxor.u32 %v2208, 2147483648
        %v2474 = vxor.u32 %v1358, 2147483648
        %v2475 = vxor.u32 %v1360, 2147483648
        %v2476 = vxor.u32 %v1571, 2147483648
        %v2477 = vxor.u32 %v1573, 2147483648
        %v2478 = vxor.u32 %v1784, 2147483648
        %v2479 = vxor.u32 %v1786, 2147483648
        %v2480 = vxor.u32 %v1997, 2147483648
        %v2481 = vxor.u32 %v1999, 2147483648
        %v2482 = vxor.u32 %v2210, 2147483648
        %v2483 = vxor.u32 %v2212, 2147483648
        %v2484 = vxor.u32 %v1364, 2147483648
        %v2485 = vxor.u32 %v1366, 2147483648
        %v2486 = vxor.u32 %v1577, 2147483648
        %v2487 = vxor.u32 %v1579, 2147483648
        %v2488 = vxor.u32 %v1790, 2147483648
        %v2489 = vxor.u32 %v1792, 2147483648
        %v2490 = vxor.u32 %v2003, 2147483648
        %v2491 = vxor.u32 %v2005, 2147483648
        %v2492 = vxor.u32 %v2216, 2147483648
        %v2493 = vxor.u32 %v2218, 2147483648
        %v2494 = vxor.u32 %v1368, 2147483648
        %v2495 = vxor.u32 %v1370, 2147483648
        %v2496 = vxor.u32 %v1581, 2147483648
        %v2497 = vxor.u32 %v1583, 2147483648
        %v2498 = vxor.u32 %v1794, 2147483648
        %v2499 = vxor.u32 %v1796, 2147483648
        %v2500 = vxor.u32 %v2007, 2147483648
        %v2501 = vxor.u32 %v2009, 2147483648
        %v2502 = vxor.u32 %v2220, 2147483648
        %v2503 = vxor.u32 %v2222, 2147483648
        %v2504 = vxor.u32 %v1374, 2147483648
        %v2505 = vxor.u32 %v1376, 2147483648
        %v2506 = vxor.u32 %v1587, 2147483648
        %v2507 = vxor.u32 %v1589, 2147483648
        %v2508 = vxor.u32 %v1800, 2147483648
        %v2509 = vxor.u32 %v1802, 2147483648
        %v2510 = vxor.u32 %v2013, 2147483648
        %v2511 = vxor.u32 %v2015, 2147483648
        %v2512 = vxor.u32 %v2226, 2147483648
        %v2513 = vxor.u32 %v2228, 2147483648
        %v2514 = vxor.u32 %v1378, 2147483648
        %v2515 = vxor.u32 %v1380, 2147483648
        %v2516 = vxor.u32 %v1591, 2147483648
        %v2517 = vxor.u32 %v1593, 2147483648
        %v2518 = vxor.u32 %v1804, 2147483648
        %v2519 = vxor.u32 %v1806, 2147483648
        %v2520 = vxor.u32 %v2017, 2147483648
        %v2521 = vxor.u32 %v2019, 2147483648
        %v2522 = vxor.u32 %v2230, 2147483648
        %v2523 = vxor.u32 %v2232, 2147483648
        %v2524 = vxor.u32 %v1384, 2147483648
        %v2525 = vxor.u32 %v1386, 2147483648
        %v2526 = vxor.u32 %v1597, 2147483648
        %v2527 = vxor.u32 %v1599, 2147483648
        %v2528 = vxor.u32 %v1810, 2147483648
        %v2529 = vxor.u32 %v1812, 2147483648
        %v2530 = vxor.u32 %v2023, 2147483648
        %v2531 = vxor.u32 %v2025, 2147483648
        %v2532 = vxor.u32 %v2236, 2147483648
        %v2533 = vxor.u32 %v2238, 2147483648
        %v2534 = vxor.u32 %v1388, 2147483648
        %v2535 = vxor.u32 %v1390, 2147483648
        %v2536 = vxor.u32 %v1601, 2147483648
        %v2537 = vxor.u32 %v1603, 2147483648
        %v2538 = vxor.u32 %v1814, 2147483648
        %v2539 = vxor.u32 %v1816, 2147483648
        %v2540 = vxor.u32 %v2027, 2147483648
        %v2541 = vxor.u32 %v2029, 2147483648
        %v2542 = vxor.u32 %v2240, 2147483648
        %v2543 = vxor.u32 %v2242, 2147483648
        %v2544 = vxor.u32 %v1394, 2147483648
        %v2545 = vxor.u32 %v1396, 2147483648
        %v2546 = vxor.u32 %v1607, 2147483648
        %v2547 = vxor.u32 %v1609, 2147483648
        %v2548 = vxor.u32 %v1820, 2147483648
        %v2549 = vxor.u32 %v1822, 2147483648
        %v2550 = vxor.u32 %v2033, 2147483648
        %v2551 = vxor.u32 %v2035, 2147483648
        %v2552 = vxor.u32 %v2246, 2147483648
        %v2553 = vxor.u32 %v2248, 2147483648
        %v2554 = vxor.u32 %v1398, 2147483648
        %v2555 = vxor.u32 %v1400, 2147483648
        %v2556 = vxor.u32 %v1611, 2147483648
        %v2557 = vxor.u32 %v1613, 2147483648
        %v2558 = vxor.u32 %v1824, 2147483648
        %v2559 = vxor.u32 %v1826, 2147483648
        %v2560 = vxor.u32 %v2037, 2147483648
        %v2561 = vxor.u32 %v2039, 2147483648
        %v2562 = vxor.u32 %v2250, 2147483648
        %v2563 = vxor.u32 %v2252, 2147483648
        %v2564 = vxor.u32 %v1404, 2147483648
        %v2565 = vxor.u32 %v1406, 2147483648
        %v2566 = vxor.u32 %v1617, 2147483648
        %v2567 = vxor.u32 %v1619, 2147483648
        %v2568 = vxor.u32 %v1830, 2147483648
        %v2569 = vxor.u32 %v1832, 2147483648
        %v2570 = vxor.u32 %v2043, 2147483648
        %v2571 = vxor.u32 %v2045, 2147483648
        %v2572 = vxor.u32 %v2256, 2147483648
        %v2573 = vxor.u32 %v2258, 2147483648
        %v2574 = vxor.u32 %v1408, 2147483648
        %v2575 = vxor.u32 %v1410, 2147483648
        %v2576 = vxor.u32 %v1621, 2147483648
        %v2577 = vxor.u32 %v1623, 2147483648
        %v2578 = vxor.u32 %v1834, 2147483648
        %v2579 = vxor.u32 %v1836, 2147483648
        %v2580 = vxor.u32 %v2047, 2147483648
        %v2581 = vxor.u32 %v2049, 2147483648
        %v2582 = vxor.u32 %v2260, 2147483648
        %v2583 = vxor.u32 %v2262, 2147483648
        %v2584 = vxor.u32 %v1414, 2147483648
        %v2585 = vxor.u32 %v1416, 2147483648
        %v2586 = vxor.u32 %v1627, 2147483648
        %v2587 = vxor.u32 %v1629, 2147483648
        %v2588 = vxor.u32 %v1840, 2147483648
        %v2589 = vxor.u32 %v1842, 2147483648
        %v2590 = vxor.u32 %v2053, 2147483648
        %v2591 = vxor.u32 %v2055, 2147483648
        %v2592 = vxor.u32 %v2266, 2147483648
        %v2593 = vxor.u32 %v2268, 2147483648
        %v2594 = vxor.u32 %v1418, 2147483648
        %v2595 = vxor.u32 %v1420, 2147483648
        %v2596 = vxor.u32 %v1631, 2147483648
        %v2597 = vxor.u32 %v1633, 2147483648
        %v2598 = vxor.u32 %v1844, 2147483648
        %v2599 = vxor.u32 %v1846, 2147483648
        %v2600 = vxor.u32 %v2057, 2147483648
        %v2601 = vxor.u32 %v2059, 2147483648
        %v2602 = vxor.u32 %v2270, 2147483648
        %v2603 = vxor.u32 %v2272, 2147483648
        %v2604 = vxor.u32 %v1424, 2147483648
        %v2605 = vxor.u32 %v1426, 2147483648
        %v2606 = vxor.u32 %v1637, 2147483648
        %v2607 = vxor.u32 %v1639, 2147483648
        %v2608 = vxor.u32 %v1850, 2147483648
        %v2609 = vxor.u32 %v1852, 2147483648
        %v2610 = vxor.u32 %v2063, 2147483648
        %v2611 = vxor.u32 %v2065, 2147483648
        %v2612 = vxor.u32 %v2276, 2147483648
        %v2613 = vxor.u32 %v2278, 2147483648
        %v2614 = vxor.u32 %v1428, 2147483648
        %v2615 = vxor.u32 %v1430, 2147483648
        %v2616 = vxor.u32 %v1641, 2147483648
        %v2617 = vxor.u32 %v1643, 2147483648
        %v2618 = vxor.u32 %v1854, 2147483648
        %v2619 = vxor.u32 %v1856, 2147483648
        %v2620 = vxor.u32 %v2067, 2147483648
        %v2621 = vxor.u32 %v2069, 2147483648
        %v2622 = vxor.u32 %v2280, 2147483648
        %v2623 = vxor.u32 %v2282, 2147483648
        %v2624 = vxor.u32 %v1434, 2147483648
        %v2625 = vxor.u32 %v1436, 2147483648
        %v2626 = vxor.u32 %v1647, 2147483648
        %v2627 = vxor.u32 %v1649, 2147483648
        %v2628 = vxor.u32 %v1860, 2147483648
        %v2629 = vxor.u32 %v1862, 2147483648
        %v2630 = vxor.u32 %v2073, 2147483648
        %v2631 = vxor.u32 %v2075, 2147483648
        %v2632 = vxor.u32 %v2286, 2147483648
        %v2633 = vxor.u32 %v2288, 2147483648
        %v2634 = vxor.u32 %v1438, 2147483648
        %v2635 = vxor.u32 %v1440, 2147483648
        %v2636 = vxor.u32 %v1651, 2147483648
        %v2637 = vxor.u32 %v1653, 2147483648
        %v2638 = vxor.u32 %v1864, 2147483648
        %v2639 = vxor.u32 %v1866, 2147483648
        %v2640 = vxor.u32 %v2077, 2147483648
        %v2641 = vxor.u32 %v2079, 2147483648
        %v2642 = vxor.u32 %v2290, 2147483648
        %v2643 = vxor.u32 %v2292, 2147483648
        %v2644 = vxor.u32 %v1444, 2147483648
        %v2645 = vxor.u32 %v1446, 2147483648
        %v2646 = vxor.u32 %v1657, 2147483648
        %v2647 = vxor.u32 %v1659, 2147483648
        %v2648 = vxor.u32 %v1870, 2147483648
        %v2649 = vxor.u32 %v1872, 2147483648
        %v2650 = vxor.u32 %v2083, 2147483648
        %v2651 = vxor.u32 %v2085, 2147483648
        %v2652 = vxor.u32 %v2296, 2147483648
        %v2653 = vxor.u32 %v2298, 2147483648
        %v2654 = vxor.u32 %v1448, 2147483648
        %v2655 = vxor.u32 %v1450, 2147483648
        %v2656 = vxor.u32 %v1661, 2147483648
        %v2657 = vxor.u32 %v1663, 2147483648
        %v2658 = vxor.u32 %v1874, 2147483648
        %v2659 = vxor.u32 %v1876, 2147483648
        %v2660 = vxor.u32 %v2087, 2147483648
        %v2661 = vxor.u32 %v2089, 2147483648
        %v2662 = vxor.u32 %v2300, 2147483648
        %v2663 = vxor.u32 %v2302, 2147483648
        %v2664 = vmul.f32 %v2304, 1.442695
        %v2665 = vpow.pop %v2664
        %v2666 = vmul.f32 %v2305, 1.442695
        %v2667 = vpow.pop %v2666
        %v2668 = vmul.f32 %v2306, 1.442695
        %v2669 = vpow.pop %v2668
        %v2670 = vmul.f32 %v2307, 1.442695
        %v2671 = vpow.pop %v2670
        %v2672 = vmul.f32 %v2308, 1.442695
        %v2673 = vpow.pop %v2672
        %v2674 = vmul.f32 %v2309, 1.442695
        %v2675 = vpow.pop %v2674
        %v2676 = vmul.f32 %v2310, 1.442695
        %v2677 = vpow.pop %v2676
        %v2678 = vmul.f32 %v2311, 1.442695
        %v2679 = vpow.pop %v2678
        %v2680 = vmul.f32 %v2312, 1.442695
        %v2681 = vpow.pop %v2680
        %v2682 = vmul.f32 %v2313, 1.442695
        %v2683 = vpow.pop %v2682
        %v2684 = vmul.f32 %v2314, 1.442695
        %v2685 = vpow.pop %v2684
        %v2686 = vmul.f32 %v2315, 1.442695
        %v2687 = vpow.pop %v2686
        %v2688 = vmul.f32 %v2316, 1.442695
        %v2689 = vpow.pop %v2688
        %v2690 = vmul.f32 %v2317, 1.442695
        %v2691 = vpow.pop %v2690
        %v2692 = vmul.f32 %v2318, 1.442695
        %v2693 = vpow.pop %v2692
        %v2694 = vmul.f32 %v2319, 1.442695
        %v2695 = vpow.pop %v2694
        %v2696 = vmul.f32 %v2320, 1.442695
        %v2697 = vpow.pop %v2696
        %v2698 = vmul.f32 %v2321, 1.442695
        %v2699 = vpow.pop %v2698
        %v2700 = vmul.f32 %v2322, 1.442695
        %v2701 = vpow.pop %v2700
        %v2702 = vmul.f32 %v2323, 1.442695
        %v2703 = vpow.pop %v2702
        %v2704 = vmul.f32 %v2324, 1.442695
        %v2705 = vpow.pop %v2704
        %v2706 = vmul.f32 %v2325, 1.442695
        %v2707 = vpow.pop %v2706
        %v2708 = vmul.f32 %v2326, 1.442695
        %v2709 = vpow.pop %v2708
        %v2710 = vmul.f32 %v2327, 1.442695
        %v2711 = vpow.pop %v2710
        %v2712 = vmul.f32 %v2328, 1.442695
        %v2713 = vpow.pop %v2712
        %v2714 = vmul.f32 %v2329, 1.442695
        %v2715 = vpow.pop %v2714
        %v2716 = vmul.f32 %v2330, 1.442695
        %v2717 = vpow.pop %v2716
        %v2718 = vmul.f32 %v2331, 1.442695
        %v2719 = vpow.pop %v2718
        %v2720 = vmul.f32 %v2332, 1.442695
        %v2721 = vpow.pop %v2720
        %v2722 = vmul.f32 %v2333, 1.442695
        %v2723 = vpow.pop %v2722
        %v2724 = vmul.f32 %v2334, 1.442695
        %v2725 = vpow.pop %v2724
        %v2726 = vmul.f32 %v2335, 1.442695
        %v2727 = vpow.pop %v2726
        %v2728 = vmul.f32 %v2336, 1.442695
        %v2729 = vpow.pop %v2728
        %v2730 = vmul.f32 %v2337, 1.442695
        %v2731 = vpow.pop %v2730
        %v2732 = vmul.f32 %v2338, 1.442695
        %v2733 = vpow.pop %v2732
        %v2734 = vmul.f32 %v2339, 1.442695
        %v2735 = vpow.pop %v2734
        %v2736 = vmul.f32 %v2340, 1.442695
        %v2737 = vpow.pop %v2736
        %v2738 = vmul.f32 %v2341, 1.442695
        %v2739 = vpow.pop %v2738
        %v2740 = vmul.f32 %v2342, 1.442695
        %v2741 = vpow.pop %v2740
        %v2742 = vmul.f32 %v2343, 1.442695
        %v2743 = vpow.pop %v2742
        %v2744 = vmul.f32 %v2344, 1.442695
        %v2745 = vpow.pop %v2744
        %v2746 = vmul.f32 %v2345, 1.442695
        %v2747 = vpow.pop %v2746
        %v2748 = vmul.f32 %v2346, 1.442695
        %v2749 = vpow.pop %v2748
        %v2750 = vmul.f32 %v2347, 1.442695
        %v2751 = vpow.pop %v2750
        %v2752 = vmul.f32 %v2348, 1.442695
        %v2753 = vpow.pop %v2752
        %v2754 = vmul.f32 %v2349, 1.442695
        %v2755 = vpow.pop %v2754
        %v2756 = vmul.f32 %v2350, 1.442695
        %v2757 = vpow.pop %v2756
        %v2758 = vmul.f32 %v2351, 1.442695
        %v2759 = vpow.pop %v2758
        %v2760 = vmul.f32 %v2352, 1.442695
        %v2761 = vpow.pop %v2760
        %v2762 = vmul.f32 %v2353, 1.442695
        %v2763 = vpow.pop %v2762
        %v2764 = vmul.f32 %v2354, 1.442695
        %v2765 = vpow.pop %v2764
        %v2766 = vmul.f32 %v2355, 1.442695
        %v2767 = vpow.pop %v2766
        %v2768 = vmul.f32 %v2356, 1.442695
        %v2769 = vpow.pop %v2768
        %v2770 = vmul.f32 %v2357, 1.442695
        %v2771 = vpow.pop %v2770
        %v2772 = vmul.f32 %v2358, 1.442695
        %v2773 = vpow.pop %v2772
        %v2774 = vmul.f32 %v2359, 1.442695
        %v2775 = vpow.pop %v2774
        %v2776 = vmul.f32 %v2360, 1.442695
        %v2777 = vpow.pop %v2776
        %v2778 = vmul.f32 %v2361, 1.442695
        %v2779 = vpow.pop %v2778
        %v2780 = vmul.f32 %v2362, 1.442695
        %v2781 = vpow.pop %v2780
        %v2782 = vmul.f32 %v2363, 1.442695
        %v2783 = vpow.pop %v2782
        %v2784 = vmul.f32 %v2364, 1.442695
        %v2785 = vpow.pop %v2784
        %v2786 = vmul.f32 %v2365, 1.442695
        %v2787 = vpow.pop %v2786
        %v2788 = vmul.f32 %v2366, 1.442695
        %v2789 = vpow.pop %v2788
        %v2790 = vmul.f32 %v2367, 1.442695
        %v2791 = vpow.pop %v2790
        %v2792 = vmul.f32 %v2368, 1.442695
        %v2793 = vpow.pop %v2792
        %v2794 = vmul.f32 %v2369, 1.442695
        %v2795 = vpow.pop %v2794
        %v2796 = vmul.f32 %v2370, 1.442695
        %v2797 = vpow.pop %v2796
        %v2798 = vmul.f32 %v2371, 1.442695
        %v2799 = vpow.pop %v2798
        %v2800 = vmul.f32 %v2372, 1.442695
        %v2801 = vpow.pop %v2800
        %v2802 = vmul.f32 %v2373, 1.442695
        %v2803 = vpow.pop %v2802
        %v2804 = vmul.f32 %v2374, 1.442695
        %v2805 = vpow.pop %v2804
        %v2806 = vmul.f32 %v2375, 1.442695
        %v2807 = vpow.pop %v2806
        %v2808 = vmul.f32 %v2376, 1.442695
        %v2809 = vpow.pop %v2808
        %v2810 = vmul.f32 %v2377, 1.442695
        %v2811 = vpow.pop %v2810
        %v2812 = vmul.f32 %v2378, 1.442695
        %v2813 = vpow.pop %v2812
        %v2814 = vmul.f32 %v2379, 1.442695
        %v2815 = vpow.pop %v2814
        %v2816 = vmul.f32 %v2380, 1.442695
        %v2817 = vpow.pop %v2816
        %v2818 = vmul.f32 %v2381, 1.442695
        %v2819 = vpow.pop %v2818
        %v2820 = vmul.f32 %v2382, 1.442695
        %v2821 = vpow.pop %v2820
        %v2822 = vmul.f32 %v2383, 1.442695
        %v2823 = vpow.pop %v2822
        %v2824 = vmul.f32 %v2384, 1.442695
        %v2825 = vpow.pop %v2824
        %v2826 = vmul.f32 %v2385, 1.442695
        %v2827 = vpow.pop %v2826
        %v2828 = vmul.f32 %v2386, 1.442695
        %v2829 = vpow.pop %v2828
        %v2830 = vmul.f32 %v2387, 1.442695
        %v2831 = vpow.pop %v2830
        %v2832 = vmul.f32 %v2388, 1.442695
        %v2833 = vpow.pop %v2832
        %v2834 = vmul.f32 %v2389, 1.442695
        %v2835 = vpow.pop %v2834
        %v2836 = vmul.f32 %v2390, 1.442695
        %v2837 = vpow.pop %v2836
        %v2838 = vmul.f32 %v2391, 1.442695
        %v2839 = vpow.pop %v2838
        %v2840 = vmul.f32 %v2392, 1.442695
        %v2841 = vpow.pop %v2840
        %v2842 = vmul.f32 %v2393, 1.442695
        %v2843 = vpow.pop %v2842
        %v2844 = vmul.f32 %v2394, 1.442695
        %v2845 = vpow.pop %v2844
        %v2846 = vmul.f32 %v2395, 1.442695
        %v2847 = vpow.pop %v2846
        %v2848 = vmul.f32 %v2396, 1.442695
        %v2849 = vpow.pop %v2848
        %v2850 = vmul.f32 %v2397, 1.442695
        %v2851 = vpow.pop %v2850
        %v2852 = vmul.f32 %v2398, 1.442695
        %v2853 = vpow.pop %v2852
        %v2854 = vmul.f32 %v2399, 1.442695
        %v2855 = vpow.pop %v2854
        %v2856 = vmul.f32 %v2400, 1.442695
        %v2857 = vpow.pop %v2856
        %v2858 = vmul.f32 %v2401, 1.442695
        %v2859 = vpow.pop %v2858
        %v2860 = vmul.f32 %v2402, 1.442695
        %v2861 = vpow.pop %v2860
        %v2862 = vmul.f32 %v2403, 1.442695
        %v2863 = vpow.pop %v2862
        %v2864 = vmul.f32 %v2404, 1.442695
        %v2865 = vpow.pop %v2864
        %v2866 = vmul.f32 %v2405, 1.442695
        %v2867 = vpow.pop %v2866
        %v2868 = vmul.f32 %v2406, 1.442695
        %v2869 = vpow.pop %v2868
        %v2870 = vmul.f32 %v2407, 1.442695
        %v2871 = vpow.pop %v2870
        %v2872 = vmul.f32 %v2408, 1.442695
        %v2873 = vpow.pop %v2872
        %v2874 = vmul.f32 %v2409, 1.442695
        %v2875 = vpow.pop %v2874
        %v2876 = vmul.f32 %v2410, 1.442695
        %v2877 = vpow.pop %v2876
        %v2878 = vmul.f32 %v2411, 1.442695
        %v2879 = vpow.pop %v2878
        %v2880 = vmul.f32 %v2412, 1.442695
        %v2881 = vpow.pop %v2880
        %v2882 = vmul.f32 %v2413, 1.442695
        %v2883 = vpow.pop %v2882
        %v2884 = vmul.f32 %v2414, 1.442695
        %v2885 = vpow.pop %v2884
        %v2886 = vmul.f32 %v2415, 1.442695
        %v2887 = vpow.pop %v2886
        %v2888 = vmul.f32 %v2416, 1.442695
        %v2889 = vpow.pop %v2888
        %v2890 = vmul.f32 %v2417, 1.442695
        %v2891 = vpow.pop %v2890
        %v2892 = vmul.f32 %v2418, 1.442695
        %v2893 = vpow.pop %v2892
        %v2894 = vmul.f32 %v2419, 1.442695
        %v2895 = vpow.pop %v2894
        %v2896 = vmul.f32 %v2420, 1.442695
        %v2897 = vpow.pop %v2896
        %v2898 = vmul.f32 %v2421, 1.442695
        %v2899 = vpow.pop %v2898
        %v2900 = vmul.f32 %v2422, 1.442695
        %v2901 = vpow.pop %v2900
        %v2902 = vmul.f32 %v2423, 1.442695
        %v2903 = vpow.pop %v2902
        %v2904 = vmul.f32 %v2424, 1.442695
        %v2905 = vpow.pop %v2904
        %v2906 = vmul.f32 %v2425, 1.442695
        %v2907 = vpow.pop %v2906
        %v2908 = vmul.f32 %v2426, 1.442695
        %v2909 = vpow.pop %v2908
        %v2910 = vmul.f32 %v2427, 1.442695
        %v2911 = vpow.pop %v2910
        %v2912 = vmul.f32 %v2428, 1.442695
        %v2913 = vpow.pop %v2912
        %v2914 = vmul.f32 %v2429, 1.442695
        %v2915 = vpow.pop %v2914
        %v2916 = vmul.f32 %v2430, 1.442695
        %v2917 = vpow.pop %v2916
        %v2918 = vmul.f32 %v2431, 1.442695
        %v2919 = vpow.pop %v2918
        %v2920 = vmul.f32 %v2432, 1.442695
        %v2921 = vpow.pop %v2920
        %v2922 = vmul.f32 %v2433, 1.442695
        %v2923 = vpow.pop %v2922
        %v2924 = vmul.f32 %v2434, 1.442695
        %v2925 = vpow.pop %v2924
        %v2926 = vmul.f32 %v2435, 1.442695
        %v2927 = vpow.pop %v2926
        %v2928 = vmul.f32 %v2436, 1.442695
        %v2929 = vpow.pop %v2928
        %v2930 = vmul.f32 %v2437, 1.442695
        %v2931 = vpow.pop %v2930
        %v2932 = vmul.f32 %v2438, 1.442695
        %v2933 = vpow.pop %v2932
        %v2934 = vmul.f32 %v2439, 1.442695
        %v2935 = vpow.pop %v2934
        %v2936 = vmul.f32 %v2440, 1.442695
        %v2937 = vpow.pop %v2936
        %v2938 = vmul.f32 %v2441, 1.442695
        %v2939 = vpow.pop %v2938
        %v2940 = vmul.f32 %v2442, 1.442695
        %v2941 = vpow.pop %v2940
        %v2942 = vmul.f32 %v2443, 1.442695
        %v2943 = vpow.pop %v2942
        %v2944 = vmul.f32 %v2444, 1.442695
        %v2945 = vpow.pop %v2944
        %v2946 = vmul.f32 %v2445, 1.442695
        %v2947 = vpow.pop %v2946
        %v2948 = vmul.f32 %v2446, 1.442695
        %v2949 = vpow.pop %v2948
        %v2950 = vmul.f32 %v2447, 1.442695
        %v2951 = vpow.pop %v2950
        %v2952 = vmul.f32 %v2448, 1.442695
        %v2953 = vpow.pop %v2952
        %v2954 = vmul.f32 %v2449, 1.442695
        %v2955 = vpow.pop %v2954
        %v2956 = vmul.f32 %v2450, 1.442695
        %v2957 = vpow.pop %v2956
        %v2958 = vmul.f32 %v2451, 1.442695
        %v2959 = vpow.pop %v2958
        %v2960 = vmul.f32 %v2452, 1.442695
        %v2961 = vpow.pop %v2960
        %v2962 = vmul.f32 %v2453, 1.442695
        %v2963 = vpow.pop %v2962
        %v2964 = vmul.f32 %v2454, 1.442695
        %v2965 = vpow.pop %v2964
        %v2966 = vmul.f32 %v2455, 1.442695
        %v2967 = vpow.pop %v2966
        %v2968 = vmul.f32 %v2456, 1.442695
        %v2969 = vpow.pop %v2968
        %v2970 = vmul.f32 %v2457, 1.442695
        %v2971 = vpow.pop %v2970
        %v2972 = vmul.f32 %v2458, 1.442695
        %v2973 = vpow.pop %v2972
        %v2974 = vmul.f32 %v2459, 1.442695
        %v2975 = vpow.pop %v2974
        %v2976 = vmul.f32 %v2460, 1.442695
        %v2977 = vpow.pop %v2976
        %v2978 = vmul.f32 %v2461, 1.442695
        %v2979 = vpow.pop %v2978
        %v2980 = vmul.f32 %v2462, 1.442695
        %v2981 = vpow.pop %v2980
        %v2982 = vmul.f32 %v2463, 1.442695
        %v2983 = vpow.pop %v2982
        %v2984 = vmul.f32 %v2464, 1.442695
        %v2985 = vpow.pop %v2984
        %v2986 = vmul.f32 %v2465, 1.442695
        %v2987 = vpow.pop %v2986
        %v2988 = vmul.f32 %v2466, 1.442695
        %v2989 = vpow.pop %v2988
        %v2990 = vmul.f32 %v2467, 1.442695
        %v2991 = vpow.pop %v2990
        %v2992 = vmul.f32 %v2468, 1.442695
        %v2993 = vpow.pop %v2992
        %v2994 = vmul.f32 %v2469, 1.442695
        %v2995 = vpow.pop %v2994
        %v2996 = vmul.f32 %v2470, 1.442695
        %v2997 = vpow.pop %v2996
        %v2998 = vmul.f32 %v2471, 1.442695
        %v2999 = vpow.pop %v2998
        %v3000 = vmul.f32 %v2472, 1.442695
        %v3001 = vpow.pop %v3000
        %v3002 = vmul.f32 %v2473, 1.442695
        %v3003 = vpow.pop %v3002
        %v3004 = vmul.f32 %v2474, 1.442695
        %v3005 = vpow.pop %v3004
        %v3006 = vmul.f32 %v2475, 1.442695
        %v3007 = vpow.pop %v3006
        %v3008 = vmul.f32 %v2476, 1.442695
        %v3009 = vpow.pop %v3008
        %v3010 = vmul.f32 %v2477, 1.442695
        %v3011 = vpow.pop %v3010
        %v3012 = vmul.f32 %v2478, 1.442695
        %v3013 = vpow.pop %v3012
        %v3014 = vmul.f32 %v2479, 1.442695
        %v3015 = vpow.pop %v3014
        %v3016 = vmul.f32 %v2480, 1.442695
        %v3017 = vpow.pop %v3016
        %v3018 = vmul.f32 %v2481, 1.442695
        %v3019 = vpow.pop %v3018
        %v3020 = vmul.f32 %v2482, 1.442695
        %v3021 = vpow.pop %v3020
        %v3022 = vmul.f32 %v2483, 1.442695
        %v3023 = vpow.pop %v3022
        %v3024 = vmul.f32 %v2484, 1.442695
        %v3025 = vpow.pop %v3024
        %v3026 = vmul.f32 %v2485, 1.442695
        %v3027 = vpow.pop %v3026
        %v3028 = vmul.f32 %v2486, 1.442695
        %v3029 = vpow.pop %v3028
        %v3030 = vmul.f32 %v2487, 1.442695
        %v3031 = vpow.pop %v3030
        %v3032 = vmul.f32 %v2488, 1.442695
        %v3033 = vpow.pop %v3032
        %v3034 = vmul.f32 %v2489, 1.442695
        %v3035 = vpow.pop %v3034
        %v3036 = vmul.f32 %v2490, 1.442695
        %v3037 = vpow.pop %v3036
        %v3038 = vmul.f32 %v2491, 1.442695
        %v3039 = vpow.pop %v3038
        %v3040 = vmul.f32 %v2492, 1.442695
        %v3041 = vpow.pop %v3040
        %v3042 = vmul.f32 %v2493, 1.442695
        %v3043 = vpow.pop %v3042
        %v3044 = vmul.f32 %v2494, 1.442695
        %v3045 = vpow.pop %v3044
        %v3046 = vmul.f32 %v2495, 1.442695
        %v3047 = vpow.pop %v3046
        %v3048 = vmul.f32 %v2496, 1.442695
        %v3049 = vpow.pop %v3048
        %v3050 = vmul.f32 %v2497, 1.442695
        %v3051 = vpow.pop %v3050
        %v3052 = vmul.f32 %v2498, 1.442695
        %v3053 = vpow.pop %v3052
        %v3054 = vmul.f32 %v2499, 1.442695
        %v3055 = vpow.pop %v3054
        %v3056 = vmul.f32 %v2500, 1.442695
        %v3057 = vpow.pop %v3056
        %v3058 = vmul.f32 %v2501, 1.442695
        %v3059 = vpow.pop %v3058
        %v3060 = vmul.f32 %v2502, 1.442695
        %v3061 = vpow.pop %v3060
        %v3062 = vmul.f32 %v2503, 1.442695
        %v3063 = vpow.pop %v3062
        %v3064 = vmul.f32 %v2504, 1.442695
        %v3065 = vpow.pop %v3064
        %v3066 = vmul.f32 %v2505, 1.442695
        %v3067 = vpow.pop %v3066
        %v3068 = vmul.f32 %v2506, 1.442695
        %v3069 = vpow.pop %v3068
        %v3070 = vmul.f32 %v2507, 1.442695
        %v3071 = vpow.pop %v3070
        %v3072 = vmul.f32 %v2508, 1.442695
        %v3073 = vpow.pop %v3072
        %v3074 = vmul.f32 %v2509, 1.442695
        %v3075 = vpow.pop %v3074
        %v3076 = vmul.f32 %v2510, 1.442695
        %v3077 = vpow.pop %v3076
        %v3078 = vmul.f32 %v2511, 1.442695
        %v3079 = vpow.pop %v3078
        %v3080 = vmul.f32 %v2512, 1.442695
        %v3081 = vpow.pop %v3080
        %v3082 = vmul.f32 %v2513, 1.442695
        %v3083 = vpow.pop %v3082
        %v3084 = vmul.f32 %v2514, 1.442695
        %v3085 = vpow.pop %v3084
        %v3086 = vmul.f32 %v2515, 1.442695
        %v3087 = vpow.pop %v3086
        %v3088 = vmul.f32 %v2516, 1.442695
        %v3089 = vpow.pop %v3088
        %v3090 = vmul.f32 %v2517, 1.442695
        %v3091 = vpow.pop %v3090
        %v3092 = vmul.f32 %v2518, 1.442695
        %v3093 = vpow.pop %v3092
        %v3094 = vmul.f32 %v2519, 1.442695
        %v3095 = vpow.pop %v3094
        %v3096 = vmul.f32 %v2520, 1.442695
        %v3097 = vpow.pop %v3096
        %v3098 = vmul.f32 %v2521, 1.442695
        %v3099 = vpow.pop %v3098
        %v3100 = vmul.f32 %v2522, 1.442695
        %v3101 = vpow.pop %v3100
        %v3102 = vmul.f32 %v2523, 1.442695
        %v3103 = vpow.pop %v3102
        %v3104 = vmul.f32 %v2524, 1.442695
        %v3105 = vpow.pop %v3104
        %v3106 = vmul.f32 %v2525, 1.442695
        %v3107 = vpow.pop %v3106
        %v3108 = vmul.f32 %v2526, 1.442695
        %v3109 = vpow.pop %v3108
        %v3110 = vmul.f32 %v2527, 1.442695
        %v3111 = vpow.pop %v3110
        %v3112 = vmul.f32 %v2528, 1.442695
        %v3113 = vpow.pop %v3112
        %v3114 = vmul.f32 %v2529, 1.442695
        %v3115 = vpow.pop %v3114
        %v3116 = vmul.f32 %v2530, 1.442695
        %v3117 = vpow.pop %v3116
        %v3118 = vmul.f32 %v2531, 1.442695
        %v3119 = vpow.pop %v3118
        %v3120 = vmul.f32 %v2532, 1.442695
        %v3121 = vpow.pop %v3120
        %v3122 = vmul.f32 %v2533, 1.442695
        %v3123 = vpow.pop %v3122
        %v3124 = vmul.f32 %v2534, 1.442695
        %v3125 = vpow.pop %v3124
        %v3126 = vmul.f32 %v2535, 1.442695
        %v3127 = vpow.pop %v3126
        %v3128 = vmul.f32 %v2536, 1.442695
        %v3129 = vpow.pop %v3128
        %v3130 = vmul.f32 %v2537, 1.442695
        %v3131 = vpow.pop %v3130
        %v3132 = vmul.f32 %v2538, 1.442695
        %v3133 = vpow.pop %v3132
        %v3134 = vmul.f32 %v2539, 1.442695
        %v3135 = vpow.pop %v3134
        %v3136 = vmul.f32 %v2540, 1.442695
        %v3137 = vpow.pop %v3136
        %v3138 = vmul.f32 %v2541, 1.442695
        %v3139 = vpow.pop %v3138
        %v3140 = vmul.f32 %v2542, 1.442695
        %v3141 = vpow.pop %v3140
        %v3142 = vmul.f32 %v2543, 1.442695
        %v3143 = vpow.pop %v3142
        %v3144 = vmul.f32 %v2544, 1.442695
        %v3145 = vpow.pop %v3144
        %v3146 = vmul.f32 %v2545, 1.442695
        %v3147 = vpow.pop %v3146
        %v3148 = vmul.f32 %v2546, 1.442695
        %v3149 = vpow.pop %v3148
        %v3150 = vmul.f32 %v2547, 1.442695
        %v3151 = vpow.pop %v3150
        %v3152 = vmul.f32 %v2548, 1.442695
        %v3153 = vpow.pop %v3152
        %v3154 = vmul.f32 %v2549, 1.442695
        %v3155 = vpow.pop %v3154
        %v3156 = vmul.f32 %v2550, 1.442695
        %v3157 = vpow.pop %v3156
        %v3158 = vmul.f32 %v2551, 1.442695
        %v3159 = vpow.pop %v3158
        %v3160 = vmul.f32 %v2552, 1.442695
        %v3161 = vpow.pop %v3160
        %v3162 = vmul.f32 %v2553, 1.442695
        %v3163 = vpow.pop %v3162
        %v3164 = vmul.f32 %v2554, 1.442695
        %v3165 = vpow.pop %v3164
        %v3166 = vmul.f32 %v2555, 1.442695
        %v3167 = vpow.pop %v3166
        %v3168 = vmul.f32 %v2556, 1.442695
        %v3169 = vpow.pop %v3168
        %v3170 = vmul.f32 %v2557, 1.442695
        %v3171 = vpow.pop %v3170
        %v3172 = vmul.f32 %v2558, 1.442695
        %v3173 = vpow.pop %v3172
        %v3174 = vmul.f32 %v2559, 1.442695
        %v3175 = vpow.pop %v3174
        %v3176 = vmul.f32 %v2560, 1.442695
        %v3177 = vpow.pop %v3176
        %v3178 = vmul.f32 %v2561, 1.442695
        %v3179 = vpow.pop %v3178
        %v3180 = vmul.f32 %v2562, 1.442695
        %v3181 = vpow.pop %v3180
        %v3182 = vmul.f32 %v2563, 1.442695
        %v3183 = vpow.pop %v3182
        %v3184 = vmul.f32 %v2564, 1.442695
        %v3185 = vpow.pop %v3184
        %v3186 = vmul.f32 %v2565, 1.442695
        %v3187 = vpow.pop %v3186
        %v3188 = vmul.f32 %v2566, 1.442695
        %v3189 = vpow.pop %v3188
        %v3190 = vmul.f32 %v2567, 1.442695
        %v3191 = vpow.pop %v3190
        %v3192 = vmul.f32 %v2568, 1.442695
        %v3193 = vpow.pop %v3192
        %v3194 = vmul.f32 %v2569, 1.442695
        %v3195 = vpow.pop %v3194
        %v3196 = vmul.f32 %v2570, 1.442695
        %v3197 = vpow.pop %v3196
        %v3198 = vmul.f32 %v2571, 1.442695
        %v3199 = vpow.pop %v3198
        %v3200 = vmul.f32 %v2572, 1.442695
        %v3201 = vpow.pop %v3200
        %v3202 = vmul.f32 %v2573, 1.442695
        %v3203 = vpow.pop %v3202
        %v3204 = vmul.f32 %v2574, 1.442695
        %v3205 = vpow.pop %v3204
        %v3206 = vmul.f32 %v2575, 1.442695
        %v3207 = vpow.pop %v3206
        %v3208 = vmul.f32 %v2576, 1.442695
        %v3209 = vpow.pop %v3208
        %v3210 = vmul.f32 %v2577, 1.442695
        %v3211 = vpow.pop %v3210
        %v3212 = vmul.f32 %v2578, 1.442695
        %v3213 = vpow.pop %v3212
        %v3214 = vmul.f32 %v2579, 1.442695
        %v3215 = vpow.pop %v3214
        %v3216 = vmul.f32 %v2580, 1.442695
        %v3217 = vpow.pop %v3216
        %v3218 = vmul.f32 %v2581, 1.442695
        %v3219 = vpow.pop %v3218
        %v3220 = vmul.f32 %v2582, 1.442695
        %v3221 = vpow.pop %v3220
        %v3222 = vmul.f32 %v2583, 1.442695
        %v3223 = vpow.pop %v3222
        %v3224 = vmul.f32 %v2584, 1.442695
        %v3225 = vpow.pop %v3224
        %v3226 = vmul.f32 %v2585, 1.442695
        %v3227 = vpow.pop %v3226
        %v3228 = vmul.f32 %v2586, 1.442695
        %v3229 = vpow.pop %v3228
        %v3230 = vmul.f32 %v2587, 1.442695
        %v3231 = vpow.pop %v3230
        %v3232 = vmul.f32 %v2588, 1.442695
        %v3233 = vpow.pop %v3232
        %v3234 = vmul.f32 %v2589, 1.442695
        %v3235 = vpow.pop %v3234
        %v3236 = vmul.f32 %v2590, 1.442695
        %v3237 = vpow.pop %v3236
        %v3238 = vmul.f32 %v2591, 1.442695
        %v3239 = vpow.pop %v3238
        %v3240 = vmul.f32 %v2592, 1.442695
        %v3241 = vpow.pop %v3240
        %v3242 = vmul.f32 %v2593, 1.442695
        %v3243 = vpow.pop %v3242
        %v3244 = vmul.f32 %v2594, 1.442695
        %v3245 = vpow.pop %v3244
        %v3246 = vmul.f32 %v2595, 1.442695
        %v3247 = vpow.pop %v3246
        %v3248 = vmul.f32 %v2596, 1.442695
        %v3249 = vpow.pop %v3248
        %v3250 = vmul.f32 %v2597, 1.442695
        %v3251 = vpow.pop %v3250
        %v3252 = vmul.f32 %v2598, 1.442695
        %v3253 = vpow.pop %v3252
        %v3254 = vmul.f32 %v2599, 1.442695
        %v3255 = vpow.pop %v3254
        %v3256 = vmul.f32 %v2600, 1.442695
        %v3257 = vpow.pop %v3256
        %v3258 = vmul.f32 %v2601, 1.442695
        %v3259 = vpow.pop %v3258
        %v3260 = vmul.f32 %v2602, 1.442695
        %v3261 = vpow.pop %v3260
        %v3262 = vmul.f32 %v2603, 1.442695
        %v3263 = vpow.pop %v3262
        %v3264 = vmul.f32 %v2604, 1.442695
        %v3265 = vpow.pop %v3264
        %v3266 = vmul.f32 %v2605, 1.442695
        %v3267 = vpow.pop %v3266
        %v3268 = vmul.f32 %v2606, 1.442695
        %v3269 = vpow.pop %v3268
        %v3270 = vmul.f32 %v2607, 1.442695
        %v3271 = vpow.pop %v3270
        %v3272 = vmul.f32 %v2608, 1.442695
        %v3273 = vpow.pop %v3272
        %v3274 = vmul.f32 %v2609, 1.442695
        %v3275 = vpow.pop %v3274
        %v3276 = vmul.f32 %v2610, 1.442695
        %v3277 = vpow.pop %v3276
        %v3278 = vmul.f32 %v2611, 1.442695
        %v3279 = vpow.pop %v3278
        %v3280 = vmul.f32 %v2612, 1.442695
        %v3281 = vpow.pop %v3280
        %v3282 = vmul.f32 %v2613, 1.442695
        %v3283 = vpow.pop %v3282
        %v3284 = vmul.f32 %v2614, 1.442695
        %v3285 = vpow.pop %v3284
        %v3286 = vmul.f32 %v2615, 1.442695
        %v3287 = vpow.pop %v3286
        %v3288 = vmul.f32 %v2616, 1.442695
        %v3289 = vpow.pop %v3288
        %v3290 = vmul.f32 %v2617, 1.442695
        %v3291 = vpow.pop %v3290
        %v3292 = vmul.f32 %v2618, 1.442695
        %v3293 = vpow.pop %v3292
        %v3294 = vmul.f32 %v2619, 1.442695
        %v3295 = vpow.pop %v3294
        %v3296 = vmul.f32 %v2620, 1.442695
        %v3297 = vpow.pop %v3296
        %v3298 = vmul.f32 %v2621, 1.442695
        %v3299 = vpow.pop %v3298
        %v3300 = vmul.f32 %v2622, 1.442695
        %v3301 = vpow.pop %v3300
        %v3302 = vmul.f32 %v2623, 1.442695
        %v3303 = vpow.pop %v3302
        %v3304 = vmul.f32 %v2624, 1.442695
        %v3305 = vpow.pop %v3304
        %v3306 = vmul.f32 %v2625, 1.442695
        %v3307 = vpow.pop %v3306
        %v3308 = vmul.f32 %v2626, 1.442695
        %v3309 = vpow.pop %v3308
        %v3310 = vmul.f32 %v2627, 1.442695
        %v3311 = vpow.pop %v3310
        %v3312 = vmul.f32 %v2628, 1.442695
        %v3313 = vpow.pop %v3312
        %v3314 = vmul.f32 %v2629, 1.442695
        %v3315 = vpow.pop %v3314
        %v3316 = vmul.f32 %v2630, 1.442695
        %v3317 = vpow.pop %v3316
        %v3318 = vmul.f32 %v2631, 1.442695
        %v3319 = vpow.pop %v3318
        %v3320 = vmul.f32 %v2632, 1.442695
        %v3321 = vpow.pop %v3320
        %v3322 = vmul.f32 %v2633, 1.442695
        %v3323 = vpow.pop %v3322
        %v3324 = vmul.f32 %v2634, 1.442695
        %v3325 = vpow.pop %v3324
        %v3326 = vmul.f32 %v2635, 1.442695
        %v3327 = vpow.pop %v3326
        %v3328 = vmul.f32 %v2636, 1.442695
        %v3329 = vpow.pop %v3328
        %v3330 = vmul.f32 %v2637, 1.442695
        %v3331 = vpow.pop %v3330
        %v3332 = vmul.f32 %v2638, 1.442695
        %v3333 = vpow.pop %v3332
        %v3334 = vmul.f32 %v2639, 1.442695
        %v3335 = vpow.pop %v3334
        %v3336 = vmul.f32 %v2640, 1.442695
        %v3337 = vpow.pop %v3336
        %v3338 = vmul.f32 %v2641, 1.442695
        %v3339 = vpow.pop %v3338
        %v3340 = vmul.f32 %v2642, 1.442695
        %v3341 = vpow.pop %v3340
        %v3342 = vmul.f32 %v2643, 1.442695
        %v3343 = vpow.pop %v3342
        %v3344 = vmul.f32 %v2644, 1.442695
        %v3345 = vpow.pop %v3344
        %v3346 = vmul.f32 %v2645, 1.442695
        %v3347 = vpow.pop %v3346
        %v3348 = vmul.f32 %v2646, 1.442695
        %v3349 = vpow.pop %v3348
        %v3350 = vmul.f32 %v2647, 1.442695
        %v3351 = vpow.pop %v3350
        %v3352 = vmul.f32 %v2648, 1.442695
        %v3353 = vpow.pop %v3352
        %v3354 = vmul.f32 %v2649, 1.442695
        %v3355 = vpow.pop %v3354
        %v3356 = vmul.f32 %v2650, 1.442695
        %v3357 = vpow.pop %v3356
        %v3358 = vmul.f32 %v2651, 1.442695
        %v3359 = vpow.pop %v3358
        %v3360 = vmul.f32 %v2652, 1.442695
        %v3361 = vpow.pop %v3360
        %v3362 = vmul.f32 %v2653, 1.442695
        %v3363 = vpow.pop %v3362
        %v3364 = vmul.f32 %v2654, 1.442695
        %v3365 = vpow.pop %v3364
        %v3366 = vmul.f32 %v2655, 1.442695
        %v3367 = vpow.pop %v3366
        %v3368 = vmul.f32 %v2656, 1.442695
        %v3369 = vpow.pop %v3368
        %v3370 = vmul.f32 %v2657, 1.442695
        %v3371 = vpow.pop %v3370
        %v3372 = vmul.f32 %v2658, 1.442695
        %v3373 = vpow.pop %v3372
        %v3374 = vmul.f32 %v2659, 1.442695
        %v3375 = vpow.pop %v3374
        %v3376 = vmul.f32 %v2660, 1.442695
        %v3377 = vpow.pop %v3376
        %v3378 = vmul.f32 %v2661, 1.442695
        %v3379 = vpow.pop %v3378
        %v3380 = vmul.f32 %v2662, 1.442695
        %v3381 = vpow.pop %v3380
        %v3382 = vmul.f32 %v2663, 1.442695
        %v3383 = vpow.pop %v3382
        %v3384 = vadd.f32 %v2665, 1.0
        %v3385 = vadd.f32 %v2667, 1.0
        %v3386 = vadd.f32 %v2669, 1.0
        %v3387 = vadd.f32 %v2671, 1.0
        %v3388 = vadd.f32 %v2673, 1.0
        %v3389 = vadd.f32 %v2675, 1.0
        %v3390 = vadd.f32 %v2677, 1.0
        %v3391 = vadd.f32 %v2679, 1.0
        %v3392 = vadd.f32 %v2681, 1.0
        %v3393 = vadd.f32 %v2683, 1.0
        %v3394 = vadd.f32 %v2685, 1.0
        %v3395 = vadd.f32 %v2687, 1.0
        %v3396 = vadd.f32 %v2689, 1.0
        %v3397 = vadd.f32 %v2691, 1.0
        %v3398 = vadd.f32 %v2693, 1.0
        %v3399 = vadd.f32 %v2695, 1.0
        %v3400 = vadd.f32 %v2697, 1.0
        %v3401 = vadd.f32 %v2699, 1.0
        %v3402 = vadd.f32 %v2701, 1.0
        %v3403 = vadd.f32 %v2703, 1.0
        %v3404 = vadd.f32 %v2705, 1.0
        %v3405 = vadd.f32 %v2707, 1.0
        %v3406 = vadd.f32 %v2709, 1.0
        %v3407 = vadd.f32 %v2711, 1.0
        %v3408 = vadd.f32 %v2713, 1.0
        %v3409 = vadd.f32 %v2715, 1.0
        %v3410 = vadd.f32 %v2717, 1.0
        %v3411 = vadd.f32 %v2719, 1.0
        %v3412 = vadd.f32 %v2721, 1.0
        %v3413 = vadd.f32 %v2723, 1.0
        %v3414 = vadd.f32 %v2725, 1.0
        %v3415 = vadd.f32 %v2727, 1.0
        %v3416 = vadd.f32 %v2729, 1.0
        %v3417 = vadd.f32 %v2731, 1.0
        %v3418 = vadd.f32 %v2733, 1.0
        %v3419 = vadd.f32 %v2735, 1.0
        %v3420 = vadd.f32 %v2737, 1.0
        %v3421 = vadd.f32 %v2739, 1.0
        %v3422 = vadd.f32 %v2741, 1.0
        %v3423 = vadd.f32 %v2743, 1.0
        %v3424 = vadd.f32 %v2745, 1.0
        %v3425 = vadd.f32 %v2747, 1.0
        %v3426 = vadd.f32 %v2749, 1.0
        %v3427 = vadd.f32 %v2751, 1.0
        %v3428 = vadd.f32 %v2753, 1.0
        %v3429 = vadd.f32 %v2755, 1.0
        %v3430 = vadd.f32 %v2757, 1.0
        %v3431 = vadd.f32 %v2759, 1.0
        %v3432 = vadd.f32 %v2761, 1.0
        %v3433 = vadd.f32 %v2763, 1.0
        %v3434 = vadd.f32 %v2765, 1.0
        %v3435 = vadd.f32 %v2767, 1.0
        %v3436 = vadd.f32 %v2769, 1.0
        %v3437 = vadd.f32 %v2771, 1.0
        %v3438 = vadd.f32 %v2773, 1.0
        %v3439 = vadd.f32 %v2775, 1.0
        %v3440 = vadd.f32 %v2777, 1.0
        %v3441 = vadd.f32 %v2779, 1.0
        %v3442 = vadd.f32 %v2781, 1.0
        %v3443 = vadd.f32 %v2783, 1.0
        %v3444 = vadd.f32 %v2785, 1.0
        %v3445 = vadd.f32 %v2787, 1.0
        %v3446 = vadd.f32 %v2789, 1.0
        %v3447 = vadd.f32 %v2791, 1.0
        %v3448 = vadd.f32 %v2793, 1.0
        %v3449 = vadd.f32 %v2795, 1.0
        %v3450 = vadd.f32 %v2797, 1.0
        %v3451 = vadd.f32 %v2799, 1.0
        %v3452 = vadd.f32 %v2801, 1.0
        %v3453 = vadd.f32 %v2803, 1.0
        %v3454 = vadd.f32 %v2805, 1.0
        %v3455 = vadd.f32 %v2807, 1.0
        %v3456 = vadd.f32 %v2809, 1.0
        %v3457 = vadd.f32 %v2811, 1.0
        %v3458 = vadd.f32 %v2813, 1.0
        %v3459 = vadd.f32 %v2815, 1.0
        %v3460 = vadd.f32 %v2817, 1.0
        %v3461 = vadd.f32 %v2819, 1.0
        %v3462 = vadd.f32 %v2821, 1.0
        %v3463 = vadd.f32 %v2823, 1.0
        %v3464 = vadd.f32 %v2825, 1.0
        %v3465 = vadd.f32 %v2827, 1.0
        %v3466 = vadd.f32 %v2829, 1.0
        %v3467 = vadd.f32 %v2831, 1.0
        %v3468 = vadd.f32 %v2833, 1.0
        %v3469 = vadd.f32 %v2835, 1.0
        %v3470 = vadd.f32 %v2837, 1.0
        %v3471 = vadd.f32 %v2839, 1.0
        %v3472 = vadd.f32 %v2841, 1.0
        %v3473 = vadd.f32 %v2843, 1.0
        %v3474 = vadd.f32 %v2845, 1.0
        %v3475 = vadd.f32 %v2847, 1.0
        %v3476 = vadd.f32 %v2849, 1.0
        %v3477 = vadd.f32 %v2851, 1.0
        %v3478 = vadd.f32 %v2853, 1.0
        %v3479 = vadd.f32 %v2855, 1.0
        %v3480 = vadd.f32 %v2857, 1.0
        %v3481 = vadd.f32 %v2859, 1.0
        %v3482 = vadd.f32 %v2861, 1.0
        %v3483 = vadd.f32 %v2863, 1.0
        %v3484 = vadd.f32 %v2865, 1.0
        %v3485 = vadd.f32 %v2867, 1.0
        %v3486 = vadd.f32 %v2869, 1.0
        %v3487 = vadd.f32 %v2871, 1.0
        %v3488 = vadd.f32 %v2873, 1.0
        %v3489 = vadd.f32 %v2875, 1.0
        %v3490 = vadd.f32 %v2877, 1.0
        %v3491 = vadd.f32 %v2879, 1.0
        %v3492 = vadd.f32 %v2881, 1.0
        %v3493 = vadd.f32 %v2883, 1.0
        %v3494 = vadd.f32 %v2885, 1.0
        %v3495 = vadd.f32 %v2887, 1.0
        %v3496 = vadd.f32 %v2889, 1.0
        %v3497 = vadd.f32 %v2891, 1.0
        %v3498 = vadd.f32 %v2893, 1.0
        %v3499 = vadd.f32 %v2895, 1.0
        %v3500 = vadd.f32 %v2897, 1.0
        %v3501 = vadd.f32 %v2899, 1.0
        %v3502 = vadd.f32 %v2901, 1.0
        %v3503 = vadd.f32 %v2903, 1.0
        %v3504 = vadd.f32 %v2905, 1.0
        %v3505 = vadd.f32 %v2907, 1.0
        %v3506 = vadd.f32 %v2909, 1.0
        %v3507 = vadd.f32 %v2911, 1.0
        %v3508 = vadd.f32 %v2913, 1.0
        %v3509 = vadd.f32 %v2915, 1.0
        %v3510 = vadd.f32 %v2917, 1.0
        %v3511 = vadd.f32 %v2919, 1.0
        %v3512 = vadd.f32 %v2921, 1.0
        %v3513 = vadd.f32 %v2923, 1.0
        %v3514 = vadd.f32 %v2925, 1.0
        %v3515 = vadd.f32 %v2927, 1.0
        %v3516 = vadd.f32 %v2929, 1.0
        %v3517 = vadd.f32 %v2931, 1.0
        %v3518 = vadd.f32 %v2933, 1.0
        %v3519 = vadd.f32 %v2935, 1.0
        %v3520 = vadd.f32 %v2937, 1.0
        %v3521 = vadd.f32 %v2939, 1.0
        %v3522 = vadd.f32 %v2941, 1.0
        %v3523 = vadd.f32 %v2943, 1.0
        %v3524 = vadd.f32 %v2945, 1.0
        %v3525 = vadd.f32 %v2947, 1.0
        %v3526 = vadd.f32 %v2949, 1.0
        %v3527 = vadd.f32 %v2951, 1.0
        %v3528 = vadd.f32 %v2953, 1.0
        %v3529 = vadd.f32 %v2955, 1.0
        %v3530 = vadd.f32 %v2957, 1.0
        %v3531 = vadd.f32 %v2959, 1.0
        %v3532 = vadd.f32 %v2961, 1.0
        %v3533 = vadd.f32 %v2963, 1.0
        %v3534 = vadd.f32 %v2965, 1.0
        %v3535 = vadd.f32 %v2967, 1.0
        %v3536 = vadd.f32 %v2969, 1.0
        %v3537 = vadd.f32 %v2971, 1.0
        %v3538 = vadd.f32 %v2973, 1.0
        %v3539 = vadd.f32 %v2975, 1.0
        %v3540 = vadd.f32 %v2977, 1.0
        %v3541 = vadd.f32 %v2979, 1.0
        %v3542 = vadd.f32 %v2981, 1.0
        %v3543 = vadd.f32 %v2983, 1.0
        %v3544 = vadd.f32 %v2985, 1.0
        %v3545 = vadd.f32 %v2987, 1.0
        %v3546 = vadd.f32 %v2989, 1.0
        %v3547 = vadd.f32 %v2991, 1.0
        %v3548 = vadd.f32 %v2993, 1.0
        %v3549 = vadd.f32 %v2995, 1.0
        %v3550 = vadd.f32 %v2997, 1.0
        %v3551 = vadd.f32 %v2999, 1.0
        %v3552 = vadd.f32 %v3001, 1.0
        %v3553 = vadd.f32 %v3003, 1.0
        %v3554 = vadd.f32 %v3005, 1.0
        %v3555 = vadd.f32 %v3007, 1.0
        %v3556 = vadd.f32 %v3009, 1.0
        %v3557 = vadd.f32 %v3011, 1.0
        %v3558 = vadd.f32 %v3013, 1.0
        %v3559 = vadd.f32 %v3015, 1.0
        %v3560 = vadd.f32 %v3017, 1.0
        %v3561 = vadd.f32 %v3019, 1.0
        %v3562 = vadd.f32 %v3021, 1.0
        %v3563 = vadd.f32 %v3023, 1.0
        %v3564 = vadd.f32 %v3025, 1.0
        %v3565 = vadd.f32 %v3027, 1.0
        %v3566 = vadd.f32 %v3029, 1.0
        %v3567 = vadd.f32 %v3031, 1.0
        %v3568 = vadd.f32 %v3033, 1.0
        %v3569 = vadd.f32 %v3035, 1.0
        %v3570 = vadd.f32 %v3037, 1.0
        %v3571 = vadd.f32 %v3039, 1.0
        %v3572 = vadd.f32 %v3041, 1.0
        %v3573 = vadd.f32 %v3043, 1.0
        %v3574 = vadd.f32 %v3045, 1.0
        %v3575 = vadd.f32 %v3047, 1.0
        %v3576 = vadd.f32 %v3049, 1.0
        %v3577 = vadd.f32 %v3051, 1.0
        %v3578 = vadd.f32 %v3053, 1.0
        %v3579 = vadd.f32 %v3055, 1.0
        %v3580 = vadd.f32 %v3057, 1.0
        %v3581 = vadd.f32 %v3059, 1.0
        %v3582 = vadd.f32 %v3061, 1.0
        %v3583 = vadd.f32 %v3063, 1.0
        %v3584 = vadd.f32 %v3065, 1.0
        %v3585 = vadd.f32 %v3067, 1.0
        %v3586 = vadd.f32 %v3069, 1.0
        %v3587 = vadd.f32 %v3071, 1.0
        %v3588 = vadd.f32 %v3073, 1.0
        %v3589 = vadd.f32 %v3075, 1.0
        %v3590 = vadd.f32 %v3077, 1.0
        %v3591 = vadd.f32 %v3079, 1.0
        %v3592 = vadd.f32 %v3081, 1.0
        %v3593 = vadd.f32 %v3083, 1.0
        %v3594 = vadd.f32 %v3085, 1.0
        %v3595 = vadd.f32 %v3087, 1.0
        %v3596 = vadd.f32 %v3089, 1.0
        %v3597 = vadd.f32 %v3091, 1.0
        %v3598 = vadd.f32 %v3093, 1.0
        %v3599 = vadd.f32 %v3095, 1.0
        %v3600 = vadd.f32 %v3097, 1.0
        %v3601 = vadd.f32 %v3099, 1.0
        %v3602 = vadd.f32 %v3101, 1.0
        %v3603 = vadd.f32 %v3103, 1.0
        %v3604 = vadd.f32 %v3105, 1.0
        %v3605 = vadd.f32 %v3107, 1.0
        %v3606 = vadd.f32 %v3109, 1.0
        %v3607 = vadd.f32 %v3111, 1.0
        %v3608 = vadd.f32 %v3113, 1.0
        %v3609 = vadd.f32 %v3115, 1.0
        %v3610 = vadd.f32 %v3117, 1.0
        %v3611 = vadd.f32 %v3119, 1.0
        %v3612 = vadd.f32 %v3121, 1.0
        %v3613 = vadd.f32 %v3123, 1.0
        %v3614 = vadd.f32 %v3125, 1.0
        %v3615 = vadd.f32 %v3127, 1.0
        %v3616 = vadd.f32 %v3129, 1.0
        %v3617 = vadd.f32 %v3131, 1.0
        %v3618 = vadd.f32 %v3133, 1.0
        %v3619 = vadd.f32 %v3135, 1.0
        %v3620 = vadd.f32 %v3137, 1.0
        %v3621 = vadd.f32 %v3139, 1.0
        %v3622 = vadd.f32 %v3141, 1.0
        %v3623 = vadd.f32 %v3143, 1.0
        %v3624 = vadd.f32 %v3145, 1.0
        %v3625 = vadd.f32 %v3147, 1.0
        %v3626 = vadd.f32 %v3149, 1.0
        %v3627 = vadd.f32 %v3151, 1.0
        %v3628 = vadd.f32 %v3153, 1.0
        %v3629 = vadd.f32 %v3155, 1.0
        %v3630 = vadd.f32 %v3157, 1.0
        %v3631 = vadd.f32 %v3159, 1.0
        %v3632 = vadd.f32 %v3161, 1.0
        %v3633 = vadd.f32 %v3163, 1.0
        %v3634 = vadd.f32 %v3165, 1.0
        %v3635 = vadd.f32 %v3167, 1.0
        %v3636 = vadd.f32 %v3169, 1.0
        %v3637 = vadd.f32 %v3171, 1.0
        %v3638 = vadd.f32 %v3173, 1.0
        %v3639 = vadd.f32 %v3175, 1.0
        %v3640 = vadd.f32 %v3177, 1.0
        %v3641 = vadd.f32 %v3179, 1.0
        %v3642 = vadd.f32 %v3181, 1.0
        %v3643 = vadd.f32 %v3183, 1.0
        %v3644 = vadd.f32 %v3185, 1.0
        %v3645 = vadd.f32 %v3187, 1.0
        %v3646 = vadd.f32 %v3189, 1.0
        %v3647 = vadd.f32 %v3191, 1.0
        %v3648 = vadd.f32 %v3193, 1.0
        %v3649 = vadd.f32 %v3195, 1.0
        %v3650 = vadd.f32 %v3197, 1.0
        %v3651 = vadd.f32 %v3199, 1.0
        %v3652 = vadd.f32 %v3201, 1.0
        %v3653 = vadd.f32 %v3203, 1.0
        %v3654 = vadd.f32 %v3205, 1.0
        %v3655 = vadd.f32 %v3207, 1.0
        %v3656 = vadd.f32 %v3209, 1.0
        %v3657 = vadd.f32 %v3211, 1.0
        %v3658 = vadd.f32 %v3213, 1.0
        %v3659 = vadd.f32 %v3215, 1.0
        %v3660 = vadd.f32 %v3217, 1.0
        %v3661 = vadd.f32 %v3219, 1.0
        %v3662 = vadd.f32 %v3221, 1.0
        %v3663 = vadd.f32 %v3223, 1.0
        %v3664 = vadd.f32 %v3225, 1.0
        %v3665 = vadd.f32 %v3227, 1.0
        %v3666 = vadd.f32 %v3229, 1.0
        %v3667 = vadd.f32 %v3231, 1.0
        %v3668 = vadd.f32 %v3233, 1.0
        %v3669 = vadd.f32 %v3235, 1.0
        %v3670 = vadd.f32 %v3237, 1.0
        %v3671 = vadd.f32 %v3239, 1.0
        %v3672 = vadd.f32 %v3241, 1.0
        %v3673 = vadd.f32 %v3243, 1.0
        %v3674 = vadd.f32 %v3245, 1.0
        %v3675 = vadd.f32 %v3247, 1.0
        %v3676 = vadd.f32 %v3249, 1.0
        %v3677 = vadd.f32 %v3251, 1.0
        %v3678 = vadd.f32 %v3253, 1.0
        %v3679 = vadd.f32 %v3255, 1.0
        %v3680 = vadd.f32 %v3257, 1.0
        %v3681 = vadd.f32 %v3259, 1.0
        %v3682 = vadd.f32 %v3261, 1.0
        %v3683 = vadd.f32 %v3263, 1.0
        %v3684 = vadd.f32 %v3265, 1.0
        %v3685 = vadd.f32 %v3267, 1.0
        %v3686 = vadd.f32 %v3269, 1.0
        %v3687 = vadd.f32 %v3271, 1.0
        %v3688 = vadd.f32 %v3273, 1.0
        %v3689 = vadd.f32 %v3275, 1.0
        %v3690 = vadd.f32 %v3277, 1.0
        %v3691 = vadd.f32 %v3279, 1.0
        %v3692 = vadd.f32 %v3281, 1.0
        %v3693 = vadd.f32 %v3283, 1.0
        %v3694 = vadd.f32 %v3285, 1.0
        %v3695 = vadd.f32 %v3287, 1.0
        %v3696 = vadd.f32 %v3289, 1.0
        %v3697 = vadd.f32 %v3291, 1.0
        %v3698 = vadd.f32 %v3293, 1.0
        %v3699 = vadd.f32 %v3295, 1.0
        %v3700 = vadd.f32 %v3297, 1.0
        %v3701 = vadd.f32 %v3299, 1.0
        %v3702 = vadd.f32 %v3301, 1.0
        %v3703 = vadd.f32 %v3303, 1.0
        %v3704 = vadd.f32 %v3305, 1.0
        %v3705 = vadd.f32 %v3307, 1.0
        %v3706 = vadd.f32 %v3309, 1.0
        %v3707 = vadd.f32 %v3311, 1.0
        %v3708 = vadd.f32 %v3313, 1.0
        %v3709 = vadd.f32 %v3315, 1.0
        %v3710 = vadd.f32 %v3317, 1.0
        %v3711 = vadd.f32 %v3319, 1.0
        %v3712 = vadd.f32 %v3321, 1.0
        %v3713 = vadd.f32 %v3323, 1.0
        %v3714 = vadd.f32 %v3325, 1.0
        %v3715 = vadd.f32 %v3327, 1.0
        %v3716 = vadd.f32 %v3329, 1.0
        %v3717 = vadd.f32 %v3331, 1.0
        %v3718 = vadd.f32 %v3333, 1.0
        %v3719 = vadd.f32 %v3335, 1.0
        %v3720 = vadd.f32 %v3337, 1.0
        %v3721 = vadd.f32 %v3339, 1.0
        %v3722 = vadd.f32 %v3341, 1.0
        %v3723 = vadd.f32 %v3343, 1.0
        %v3724 = vadd.f32 %v3345, 1.0
        %v3725 = vadd.f32 %v3347, 1.0
        %v3726 = vadd.f32 %v3349, 1.0
        %v3727 = vadd.f32 %v3351, 1.0
        %v3728 = vadd.f32 %v3353, 1.0
        %v3729 = vadd.f32 %v3355, 1.0
        %v3730 = vadd.f32 %v3357, 1.0
        %v3731 = vadd.f32 %v3359, 1.0
        %v3732 = vadd.f32 %v3361, 1.0
        %v3733 = vadd.f32 %v3363, 1.0
        %v3734 = vadd.f32 %v3365, 1.0
        %v3735 = vadd.f32 %v3367, 1.0
        %v3736 = vadd.f32 %v3369, 1.0
        %v3737 = vadd.f32 %v3371, 1.0
        %v3738 = vadd.f32 %v3373, 1.0
        %v3739 = vadd.f32 %v3375, 1.0
        %v3740 = vadd.f32 %v3377, 1.0
        %v3741 = vadd.f32 %v3379, 1.0
        %v3742 = vadd.f32 %v3381, 1.0
        %v3743 = vadd.f32 %v3383, 1.0
        %v3744 = vrcp.pop %v3384
        %v3745 = vmul.f32 1.0, %v3744
        %v3746 = vrcp.pop %v3385
        %v3747 = vmul.f32 1.0, %v3746
        %v3748 = vrcp.pop %v3386
        %v3749 = vmul.f32 1.0, %v3748
        %v3750 = vrcp.pop %v3387
        %v3751 = vmul.f32 1.0, %v3750
        %v3752 = vrcp.pop %v3388
        %v3753 = vmul.f32 1.0, %v3752
        %v3754 = vrcp.pop %v3389
        %v3755 = vmul.f32 1.0, %v3754
        %v3756 = vrcp.pop %v3390
        %v3757 = vmul.f32 1.0, %v3756
        %v3758 = vrcp.pop %v3391
        %v3759 = vmul.f32 1.0, %v3758
        %v3760 = vrcp.pop %v3392
        %v3761 = vmul.f32 1.0, %v3760
        %v3762 = vrcp.pop %v3393
        %v3763 = vmul.f32 1.0, %v3762
        %v3764 = vrcp.pop %v3394
        %v3765 = vmul.f32 1.0, %v3764
        %v3766 = vrcp.pop %v3395
        %v3767 = vmul.f32 1.0, %v3766
        %v3768 = vrcp.pop %v3396
        %v3769 = vmul.f32 1.0, %v3768
        %v3770 = vrcp.pop %v3397
        %v3771 = vmul.f32 1.0, %v3770
        %v3772 = vrcp.pop %v3398
        %v3773 = vmul.f32 1.0, %v3772
        %v3774 = vrcp.pop %v3399
        %v3775 = vmul.f32 1.0, %v3774
        %v3776 = vrcp.pop %v3400
        %v3777 = vmul.f32 1.0, %v3776
        %v3778 = vrcp.pop %v3401
        %v3779 = vmul.f32 1.0, %v3778
        %v3780 = vrcp.pop %v3402
        %v3781 = vmul.f32 1.0, %v3780
        %v3782 = vrcp.pop %v3403
        %v3783 = vmul.f32 1.0, %v3782
        %v3784 = vrcp.pop %v3404
        %v3785 = vmul.f32 1.0, %v3784
        %v3786 = vrcp.pop %v3405
        %v3787 = vmul.f32 1.0, %v3786
        %v3788 = vrcp.pop %v3406
        %v3789 = vmul.f32 1.0, %v3788
        %v3790 = vrcp.pop %v3407
        %v3791 = vmul.f32 1.0, %v3790
        %v3792 = vrcp.pop %v3408
        %v3793 = vmul.f32 1.0, %v3792
        %v3794 = vrcp.pop %v3409
        %v3795 = vmul.f32 1.0, %v3794
        %v3796 = vrcp.pop %v3410
        %v3797 = vmul.f32 1.0, %v3796
        %v3798 = vrcp.pop %v3411
        %v3799 = vmul.f32 1.0, %v3798
        %v3800 = vrcp.pop %v3412
        %v3801 = vmul.f32 1.0, %v3800
        %v3802 = vrcp.pop %v3413
        %v3803 = vmul.f32 1.0, %v3802
        %v3804 = vrcp.pop %v3414
        %v3805 = vmul.f32 1.0, %v3804
        %v3806 = vrcp.pop %v3415
        %v3807 = vmul.f32 1.0, %v3806
        %v3808 = vrcp.pop %v3416
        %v3809 = vmul.f32 1.0, %v3808
        %v3810 = vrcp.pop %v3417
        %v3811 = vmul.f32 1.0, %v3810
        %v3812 = vrcp.pop %v3418
        %v3813 = vmul.f32 1.0, %v3812
        %v3814 = vrcp.pop %v3419
        %v3815 = vmul.f32 1.0, %v3814
        %v3816 = vrcp.pop %v3420
        %v3817 = vmul.f32 1.0, %v3816
        %v3818 = vrcp.pop %v3421
        %v3819 = vmul.f32 1.0, %v3818
        %v3820 = vrcp.pop %v3422
        %v3821 = vmul.f32 1.0, %v3820
        %v3822 = vrcp.pop %v3423
        %v3823 = vmul.f32 1.0, %v3822
        %v3824 = vrcp.pop %v3424
        %v3825 = vmul.f32 1.0, %v3824
        %v3826 = vrcp.pop %v3425
        %v3827 = vmul.f32 1.0, %v3826
        %v3828 = vrcp.pop %v3426
        %v3829 = vmul.f32 1.0, %v3828
        %v3830 = vrcp.pop %v3427
        %v3831 = vmul.f32 1.0, %v3830
        %v3832 = vrcp.pop %v3428
        %v3833 = vmul.f32 1.0, %v3832
        %v3834 = vrcp.pop %v3429
        %v3835 = vmul.f32 1.0, %v3834
        %v3836 = vrcp.pop %v3430
        %v3837 = vmul.f32 1.0, %v3836
        %v3838 = vrcp.pop %v3431
        %v3839 = vmul.f32 1.0, %v3838
        %v3840 = vrcp.pop %v3432
        %v3841 = vmul.f32 1.0, %v3840
        %v3842 = vrcp.pop %v3433
        %v3843 = vmul.f32 1.0, %v3842
        %v3844 = vrcp.pop %v3434
        %v3845 = vmul.f32 1.0, %v3844
        %v3846 = vrcp.pop %v3435
        %v3847 = vmul.f32 1.0, %v3846
        %v3848 = vrcp.pop %v3436
        %v3849 = vmul.f32 1.0, %v3848
        %v3850 = vrcp.pop %v3437
        %v3851 = vmul.f32 1.0, %v3850
        %v3852 = vrcp.pop %v3438
        %v3853 = vmul.f32 1.0, %v3852
        %v3854 = vrcp.pop %v3439
        %v3855 = vmul.f32 1.0, %v3854
        %v3856 = vrcp.pop %v3440
        %v3857 = vmul.f32 1.0, %v3856
        %v3858 = vrcp.pop %v3441
        %v3859 = vmul.f32 1.0, %v3858
        %v3860 = vrcp.pop %v3442
        %v3861 = vmul.f32 1.0, %v3860
        %v3862 = vrcp.pop %v3443
        %v3863 = vmul.f32 1.0, %v3862
        %v3864 = vrcp.pop %v3444
        %v3865 = vmul.f32 1.0, %v3864
        %v3866 = vrcp.pop %v3445
        %v3867 = vmul.f32 1.0, %v3866
        %v3868 = vrcp.pop %v3446
        %v3869 = vmul.f32 1.0, %v3868
        %v3870 = vrcp.pop %v3447
        %v3871 = vmul.f32 1.0, %v3870
        %v3872 = vrcp.pop %v3448
        %v3873 = vmul.f32 1.0, %v3872
        %v3874 = vrcp.pop %v3449
        %v3875 = vmul.f32 1.0, %v3874
        %v3876 = vrcp.pop %v3450
        %v3877 = vmul.f32 1.0, %v3876
        %v3878 = vrcp.pop %v3451
        %v3879 = vmul.f32 1.0, %v3878
        %v3880 = vrcp.pop %v3452
        %v3881 = vmul.f32 1.0, %v3880
        %v3882 = vrcp.pop %v3453
        %v3883 = vmul.f32 1.0, %v3882
        %v3884 = vrcp.pop %v3454
        %v3885 = vmul.f32 1.0, %v3884
        %v3886 = vrcp.pop %v3455
        %v3887 = vmul.f32 1.0, %v3886
        %v3888 = vrcp.pop %v3456
        %v3889 = vmul.f32 1.0, %v3888
        %v3890 = vrcp.pop %v3457
        %v3891 = vmul.f32 1.0, %v3890
        %v3892 = vrcp.pop %v3458
        %v3893 = vmul.f32 1.0, %v3892
        %v3894 = vrcp.pop %v3459
        %v3895 = vmul.f32 1.0, %v3894
        %v3896 = vrcp.pop %v3460
        %v3897 = vmul.f32 1.0, %v3896
        %v3898 = vrcp.pop %v3461
        %v3899 = vmul.f32 1.0, %v3898
        %v3900 = vrcp.pop %v3462
        %v3901 = vmul.f32 1.0, %v3900
        %v3902 = vrcp.pop %v3463
        %v3903 = vmul.f32 1.0, %v3902
        %v3904 = vrcp.pop %v3464
        %v3905 = vmul.f32 1.0, %v3904
        %v3906 = vrcp.pop %v3465
        %v3907 = vmul.f32 1.0, %v3906
        %v3908 = vrcp.pop %v3466
        %v3909 = vmul.f32 1.0, %v3908
        %v3910 = vrcp.pop %v3467
        %v3911 = vmul.f32 1.0, %v3910
        %v3912 = vrcp.pop %v3468
        %v3913 = vmul.f32 1.0, %v3912
        %v3914 = vrcp.pop %v3469
        %v3915 = vmul.f32 1.0, %v3914
        %v3916 = vrcp.pop %v3470
        %v3917 = vmul.f32 1.0, %v3916
        %v3918 = vrcp.pop %v3471
        %v3919 = vmul.f32 1.0, %v3918
        %v3920 = vrcp.pop %v3472
        %v3921 = vmul.f32 1.0, %v3920
        %v3922 = vrcp.pop %v3473
        %v3923 = vmul.f32 1.0, %v3922
        %v3924 = vrcp.pop %v3474
        %v3925 = vmul.f32 1.0, %v3924
        %v3926 = vrcp.pop %v3475
        %v3927 = vmul.f32 1.0, %v3926
        %v3928 = vrcp.pop %v3476
        %v3929 = vmul.f32 1.0, %v3928
        %v3930 = vrcp.pop %v3477
        %v3931 = vmul.f32 1.0, %v3930
        %v3932 = vrcp.pop %v3478
        %v3933 = vmul.f32 1.0, %v3932
        %v3934 = vrcp.pop %v3479
        %v3935 = vmul.f32 1.0, %v3934
        %v3936 = vrcp.pop %v3480
        %v3937 = vmul.f32 1.0, %v3936
        %v3938 = vrcp.pop %v3481
        %v3939 = vmul.f32 1.0, %v3938
        %v3940 = vrcp.pop %v3482
        %v3941 = vmul.f32 1.0, %v3940
        %v3942 = vrcp.pop %v3483
        %v3943 = vmul.f32 1.0, %v3942
        %v3944 = vrcp.pop %v3484
        %v3945 = vmul.f32 1.0, %v3944
        %v3946 = vrcp.pop %v3485
        %v3947 = vmul.f32 1.0, %v3946
        %v3948 = vrcp.pop %v3486
        %v3949 = vmul.f32 1.0, %v3948
        %v3950 = vrcp.pop %v3487
        %v3951 = vmul.f32 1.0, %v3950
        %v3952 = vrcp.pop %v3488
        %v3953 = vmul.f32 1.0, %v3952
        %v3954 = vrcp.pop %v3489
        %v3955 = vmul.f32 1.0, %v3954
        %v3956 = vrcp.pop %v3490
        %v3957 = vmul.f32 1.0, %v3956
        %v3958 = vrcp.pop %v3491
        %v3959 = vmul.f32 1.0, %v3958
        %v3960 = vrcp.pop %v3492
        %v3961 = vmul.f32 1.0, %v3960
        %v3962 = vrcp.pop %v3493
        %v3963 = vmul.f32 1.0, %v3962
        %v3964 = vrcp.pop %v3494
        %v3965 = vmul.f32 1.0, %v3964
        %v3966 = vrcp.pop %v3495
        %v3967 = vmul.f32 1.0, %v3966
        %v3968 = vrcp.pop %v3496
        %v3969 = vmul.f32 1.0, %v3968
        %v3970 = vrcp.pop %v3497
        %v3971 = vmul.f32 1.0, %v3970
        %v3972 = vrcp.pop %v3498
        %v3973 = vmul.f32 1.0, %v3972
        %v3974 = vrcp.pop %v3499
        %v3975 = vmul.f32 1.0, %v3974
        %v3976 = vrcp.pop %v3500
        %v3977 = vmul.f32 1.0, %v3976
        %v3978 = vrcp.pop %v3501
        %v3979 = vmul.f32 1.0, %v3978
        %v3980 = vrcp.pop %v3502
        %v3981 = vmul.f32 1.0, %v3980
        %v3982 = vrcp.pop %v3503
        %v3983 = vmul.f32 1.0, %v3982
        %v3984 = vrcp.pop %v3504
        %v3985 = vmul.f32 1.0, %v3984
        %v3986 = vrcp.pop %v3505
        %v3987 = vmul.f32 1.0, %v3986
        %v3988 = vrcp.pop %v3506
        %v3989 = vmul.f32 1.0, %v3988
        %v3990 = vrcp.pop %v3507
        %v3991 = vmul.f32 1.0, %v3990
        %v3992 = vrcp.pop %v3508
        %v3993 = vmul.f32 1.0, %v3992
        %v3994 = vrcp.pop %v3509
        %v3995 = vmul.f32 1.0, %v3994
        %v3996 = vrcp.pop %v3510
        %v3997 = vmul.f32 1.0, %v3996
        %v3998 = vrcp.pop %v3511
        %v3999 = vmul.f32 1.0, %v3998
        %v4000 = vrcp.pop %v3512
        %v4001 = vmul.f32 1.0, %v4000
        %v4002 = vrcp.pop %v3513
        %v4003 = vmul.f32 1.0, %v4002
        %v4004 = vrcp.pop %v3514
        %v4005 = vmul.f32 1.0, %v4004
        %v4006 = vrcp.pop %v3515
        %v4007 = vmul.f32 1.0, %v4006
        %v4008 = vrcp.pop %v3516
        %v4009 = vmul.f32 1.0, %v4008
        %v4010 = vrcp.pop %v3517
        %v4011 = vmul.f32 1.0, %v4010
        %v4012 = vrcp.pop %v3518
        %v4013 = vmul.f32 1.0, %v4012
        %v4014 = vrcp.pop %v3519
        %v4015 = vmul.f32 1.0, %v4014
        %v4016 = vrcp.pop %v3520
        %v4017 = vmul.f32 1.0, %v4016
        %v4018 = vrcp.pop %v3521
        %v4019 = vmul.f32 1.0, %v4018
        %v4020 = vrcp.pop %v3522
        %v4021 = vmul.f32 1.0, %v4020
        %v4022 = vrcp.pop %v3523
        %v4023 = vmul.f32 1.0, %v4022
        %v4024 = vrcp.pop %v3524
        %v4025 = vmul.f32 1.0, %v4024
        %v4026 = vrcp.pop %v3525
        %v4027 = vmul.f32 1.0, %v4026
        %v4028 = vrcp.pop %v3526
        %v4029 = vmul.f32 1.0, %v4028
        %v4030 = vrcp.pop %v3527
        %v4031 = vmul.f32 1.0, %v4030
        %v4032 = vrcp.pop %v3528
        %v4033 = vmul.f32 1.0, %v4032
        %v4034 = vrcp.pop %v3529
        %v4035 = vmul.f32 1.0, %v4034
        %v4036 = vrcp.pop %v3530
        %v4037 = vmul.f32 1.0, %v4036
        %v4038 = vrcp.pop %v3531
        %v4039 = vmul.f32 1.0, %v4038
        %v4040 = vrcp.pop %v3532
        %v4041 = vmul.f32 1.0, %v4040
        %v4042 = vrcp.pop %v3533
        %v4043 = vmul.f32 1.0, %v4042
        %v4044 = vrcp.pop %v3534
        %v4045 = vmul.f32 1.0, %v4044
        %v4046 = vrcp.pop %v3535
        %v4047 = vmul.f32 1.0, %v4046
        %v4048 = vrcp.pop %v3536
        %v4049 = vmul.f32 1.0, %v4048
        %v4050 = vrcp.pop %v3537
        %v4051 = vmul.f32 1.0, %v4050
        %v4052 = vrcp.pop %v3538
        %v4053 = vmul.f32 1.0, %v4052
        %v4054 = vrcp.pop %v3539
        %v4055 = vmul.f32 1.0, %v4054
        %v4056 = vrcp.pop %v3540
        %v4057 = vmul.f32 1.0, %v4056
        %v4058 = vrcp.pop %v3541
        %v4059 = vmul.f32 1.0, %v4058
        %v4060 = vrcp.pop %v3542
        %v4061 = vmul.f32 1.0, %v4060
        %v4062 = vrcp.pop %v3543
        %v4063 = vmul.f32 1.0, %v4062
        %v4064 = vrcp.pop %v3544
        %v4065 = vmul.f32 1.0, %v4064
        %v4066 = vrcp.pop %v3545
        %v4067 = vmul.f32 1.0, %v4066
        %v4068 = vrcp.pop %v3546
        %v4069 = vmul.f32 1.0, %v4068
        %v4070 = vrcp.pop %v3547
        %v4071 = vmul.f32 1.0, %v4070
        %v4072 = vrcp.pop %v3548
        %v4073 = vmul.f32 1.0, %v4072
        %v4074 = vrcp.pop %v3549
        %v4075 = vmul.f32 1.0, %v4074
        %v4076 = vrcp.pop %v3550
        %v4077 = vmul.f32 1.0, %v4076
        %v4078 = vrcp.pop %v3551
        %v4079 = vmul.f32 1.0, %v4078
        %v4080 = vrcp.pop %v3552
        %v4081 = vmul.f32 1.0, %v4080
        %v4082 = vrcp.pop %v3553
        %v4083 = vmul.f32 1.0, %v4082
        %v4084 = vrcp.pop %v3554
        %v4085 = vmul.f32 1.0, %v4084
        %v4086 = vrcp.pop %v3555
        %v4087 = vmul.f32 1.0, %v4086
        %v4088 = vrcp.pop %v3556
        %v4089 = vmul.f32 1.0, %v4088
        %v4090 = vrcp.pop %v3557
        %v4091 = vmul.f32 1.0, %v4090
        %v4092 = vrcp.pop %v3558
        %v4093 = vmul.f32 1.0, %v4092
        %v4094 = vrcp.pop %v3559
        %v4095 = vmul.f32 1.0, %v4094
        %v4096 = vrcp.pop %v3560
        %v4097 = vmul.f32 1.0, %v4096
        %v4098 = vrcp.pop %v3561
        %v4099 = vmul.f32 1.0, %v4098
        %v4100 = vrcp.pop %v3562
        %v4101 = vmul.f32 1.0, %v4100
        %v4102 = vrcp.pop %v3563
        %v4103 = vmul.f32 1.0, %v4102
        %v4104 = vrcp.pop %v3564
        %v4105 = vmul.f32 1.0, %v4104
        %v4106 = vrcp.pop %v3565
        %v4107 = vmul.f32 1.0, %v4106
        %v4108 = vrcp.pop %v3566
        %v4109 = vmul.f32 1.0, %v4108
        %v4110 = vrcp.pop %v3567
        %v4111 = vmul.f32 1.0, %v4110
        %v4112 = vrcp.pop %v3568
        %v4113 = vmul.f32 1.0, %v4112
        %v4114 = vrcp.pop %v3569
        %v4115 = vmul.f32 1.0, %v4114
        %v4116 = vrcp.pop %v3570
        %v4117 = vmul.f32 1.0, %v4116
        %v4118 = vrcp.pop %v3571
        %v4119 = vmul.f32 1.0, %v4118
        %v4120 = vrcp.pop %v3572
        %v4121 = vmul.f32 1.0, %v4120
        %v4122 = vrcp.pop %v3573
        %v4123 = vmul.f32 1.0, %v4122
        %v4124 = vrcp.pop %v3574
        %v4125 = vmul.f32 1.0, %v4124
        %v4126 = vrcp.pop %v3575
        %v4127 = vmul.f32 1.0, %v4126
        %v4128 = vrcp.pop %v3576
        %v4129 = vmul.f32 1.0, %v4128
        %v4130 = vrcp.pop %v3577
        %v4131 = vmul.f32 1.0, %v4130
        %v4132 = vrcp.pop %v3578
        %v4133 = vmul.f32 1.0, %v4132
        %v4134 = vrcp.pop %v3579
        %v4135 = vmul.f32 1.0, %v4134
        %v4136 = vrcp.pop %v3580
        %v4137 = vmul.f32 1.0, %v4136
        %v4138 = vrcp.pop %v3581
        %v4139 = vmul.f32 1.0, %v4138
        %v4140 = vrcp.pop %v3582
        %v4141 = vmul.f32 1.0, %v4140
        %v4142 = vrcp.pop %v3583
        %v4143 = vmul.f32 1.0, %v4142
        %v4144 = vrcp.pop %v3584
        %v4145 = vmul.f32 1.0, %v4144
        %v4146 = vrcp.pop %v3585
        %v4147 = vmul.f32 1.0, %v4146
        %v4148 = vrcp.pop %v3586
        %v4149 = vmul.f32 1.0, %v4148
        %v4150 = vrcp.pop %v3587
        %v4151 = vmul.f32 1.0, %v4150
        %v4152 = vrcp.pop %v3588
        %v4153 = vmul.f32 1.0, %v4152
        %v4154 = vrcp.pop %v3589
        %v4155 = vmul.f32 1.0, %v4154
        %v4156 = vrcp.pop %v3590
        %v4157 = vmul.f32 1.0, %v4156
        %v4158 = vrcp.pop %v3591
        %v4159 = vmul.f32 1.0, %v4158
        %v4160 = vrcp.pop %v3592
        %v4161 = vmul.f32 1.0, %v4160
        %v4162 = vrcp.pop %v3593
        %v4163 = vmul.f32 1.0, %v4162
        %v4164 = vrcp.pop %v3594
        %v4165 = vmul.f32 1.0, %v4164
        %v4166 = vrcp.pop %v3595
        %v4167 = vmul.f32 1.0, %v4166
        %v4168 = vrcp.pop %v3596
        %v4169 = vmul.f32 1.0, %v4168
        %v4170 = vrcp.pop %v3597
        %v4171 = vmul.f32 1.0, %v4170
        %v4172 = vrcp.pop %v3598
        %v4173 = vmul.f32 1.0, %v4172
        %v4174 = vrcp.pop %v3599
        %v4175 = vmul.f32 1.0, %v4174
        %v4176 = vrcp.pop %v3600
        %v4177 = vmul.f32 1.0, %v4176
        %v4178 = vrcp.pop %v3601
        %v4179 = vmul.f32 1.0, %v4178
        %v4180 = vrcp.pop %v3602
        %v4181 = vmul.f32 1.0, %v4180
        %v4182 = vrcp.pop %v3603
        %v4183 = vmul.f32 1.0, %v4182
        %v4184 = vrcp.pop %v3604
        %v4185 = vmul.f32 1.0, %v4184
        %v4186 = vrcp.pop %v3605
        %v4187 = vmul.f32 1.0, %v4186
        %v4188 = vrcp.pop %v3606
        %v4189 = vmul.f32 1.0, %v4188
        %v4190 = vrcp.pop %v3607
        %v4191 = vmul.f32 1.0, %v4190
        %v4192 = vrcp.pop %v3608
        %v4193 = vmul.f32 1.0, %v4192
        %v4194 = vrcp.pop %v3609
        %v4195 = vmul.f32 1.0, %v4194
        %v4196 = vrcp.pop %v3610
        %v4197 = vmul.f32 1.0, %v4196
        %v4198 = vrcp.pop %v3611
        %v4199 = vmul.f32 1.0, %v4198
        %v4200 = vrcp.pop %v3612
        %v4201 = vmul.f32 1.0, %v4200
        %v4202 = vrcp.pop %v3613
        %v4203 = vmul.f32 1.0, %v4202
        %v4204 = vrcp.pop %v3614
        %v4205 = vmul.f32 1.0, %v4204
        %v4206 = vrcp.pop %v3615
        %v4207 = vmul.f32 1.0, %v4206
        %v4208 = vrcp.pop %v3616
        %v4209 = vmul.f32 1.0, %v4208
        %v4210 = vrcp.pop %v3617
        %v4211 = vmul.f32 1.0, %v4210
        %v4212 = vrcp.pop %v3618
        %v4213 = vmul.f32 1.0, %v4212
        %v4214 = vrcp.pop %v3619
        %v4215 = vmul.f32 1.0, %v4214
        %v4216 = vrcp.pop %v3620
        %v4217 = vmul.f32 1.0, %v4216
        %v4218 = vrcp.pop %v3621
        %v4219 = vmul.f32 1.0, %v4218
        %v4220 = vrcp.pop %v3622
        %v4221 = vmul.f32 1.0, %v4220
        %v4222 = vrcp.pop %v3623
        %v4223 = vmul.f32 1.0, %v4222
        %v4224 = vrcp.pop %v3624
        %v4225 = vmul.f32 1.0, %v4224
        %v4226 = vrcp.pop %v3625
        %v4227 = vmul.f32 1.0, %v4226
        %v4228 = vrcp.pop %v3626
        %v4229 = vmul.f32 1.0, %v4228
        %v4230 = vrcp.pop %v3627
        %v4231 = vmul.f32 1.0, %v4230
        %v4232 = vrcp.pop %v3628
        %v4233 = vmul.f32 1.0, %v4232
        %v4234 = vrcp.pop %v3629
        %v4235 = vmul.f32 1.0, %v4234
        %v4236 = vrcp.pop %v3630
        %v4237 = vmul.f32 1.0, %v4236
        %v4238 = vrcp.pop %v3631
        %v4239 = vmul.f32 1.0, %v4238
        %v4240 = vrcp.pop %v3632
        %v4241 = vmul.f32 1.0, %v4240
        %v4242 = vrcp.pop %v3633
        %v4243 = vmul.f32 1.0, %v4242
        %v4244 = vrcp.pop %v3634
        %v4245 = vmul.f32 1.0, %v4244
        %v4246 = vrcp.pop %v3635
        %v4247 = vmul.f32 1.0, %v4246
        %v4248 = vrcp.pop %v3636
        %v4249 = vmul.f32 1.0, %v4248
        %v4250 = vrcp.pop %v3637
        %v4251 = vmul.f32 1.0, %v4250
        %v4252 = vrcp.pop %v3638
        %v4253 = vmul.f32 1.0, %v4252
        %v4254 = vrcp.pop %v3639
        %v4255 = vmul.f32 1.0, %v4254
        %v4256 = vrcp.pop %v3640
        %v4257 = vmul.f32 1.0, %v4256
        %v4258 = vrcp.pop %v3641
        %v4259 = vmul.f32 1.0, %v4258
        %v4260 = vrcp.pop %v3642
        %v4261 = vmul.f32 1.0, %v4260
        %v4262 = vrcp.pop %v3643
        %v4263 = vmul.f32 1.0, %v4262
        %v4264 = vrcp.pop %v3644
        %v4265 = vmul.f32 1.0, %v4264
        %v4266 = vrcp.pop %v3645
        %v4267 = vmul.f32 1.0, %v4266
        %v4268 = vrcp.pop %v3646
        %v4269 = vmul.f32 1.0, %v4268
        %v4270 = vrcp.pop %v3647
        %v4271 = vmul.f32 1.0, %v4270
        %v4272 = vrcp.pop %v3648
        %v4273 = vmul.f32 1.0, %v4272
        %v4274 = vrcp.pop %v3649
        %v4275 = vmul.f32 1.0, %v4274
        %v4276 = vrcp.pop %v3650
        %v4277 = vmul.f32 1.0, %v4276
        %v4278 = vrcp.pop %v3651
        %v4279 = vmul.f32 1.0, %v4278
        %v4280 = vrcp.pop %v3652
        %v4281 = vmul.f32 1.0, %v4280
        %v4282 = vrcp.pop %v3653
        %v4283 = vmul.f32 1.0, %v4282
        %v4284 = vrcp.pop %v3654
        %v4285 = vmul.f32 1.0, %v4284
        %v4286 = vrcp.pop %v3655
        %v4287 = vmul.f32 1.0, %v4286
        %v4288 = vrcp.pop %v3656
        %v4289 = vmul.f32 1.0, %v4288
        %v4290 = vrcp.pop %v3657
        %v4291 = vmul.f32 1.0, %v4290
        %v4292 = vrcp.pop %v3658
        %v4293 = vmul.f32 1.0, %v4292
        %v4294 = vrcp.pop %v3659
        %v4295 = vmul.f32 1.0, %v4294
        %v4296 = vrcp.pop %v3660
        %v4297 = vmul.f32 1.0, %v4296
        %v4298 = vrcp.pop %v3661
        %v4299 = vmul.f32 1.0, %v4298
        %v4300 = vrcp.pop %v3662
        %v4301 = vmul.f32 1.0, %v4300
        %v4302 = vrcp.pop %v3663
        %v4303 = vmul.f32 1.0, %v4302
        %v4304 = vrcp.pop %v3664
        %v4305 = vmul.f32 1.0, %v4304
        %v4306 = vrcp.pop %v3665
        %v4307 = vmul.f32 1.0, %v4306
        %v4308 = vrcp.pop %v3666
        %v4309 = vmul.f32 1.0, %v4308
        %v4310 = vrcp.pop %v3667
        %v4311 = vmul.f32 1.0, %v4310
        %v4312 = vrcp.pop %v3668
        %v4313 = vmul.f32 1.0, %v4312
        %v4314 = vrcp.pop %v3669
        %v4315 = vmul.f32 1.0, %v4314
        %v4316 = vrcp.pop %v3670
        %v4317 = vmul.f32 1.0, %v4316
        %v4318 = vrcp.pop %v3671
        %v4319 = vmul.f32 1.0, %v4318
        %v4320 = vrcp.pop %v3672
        %v4321 = vmul.f32 1.0, %v4320
        %v4322 = vrcp.pop %v3673
        %v4323 = vmul.f32 1.0, %v4322
        %v4324 = vrcp.pop %v3674
        %v4325 = vmul.f32 1.0, %v4324
        %v4326 = vrcp.pop %v3675
        %v4327 = vmul.f32 1.0, %v4326
        %v4328 = vrcp.pop %v3676
        %v4329 = vmul.f32 1.0, %v4328
        %v4330 = vrcp.pop %v3677
        %v4331 = vmul.f32 1.0, %v4330
        %v4332 = vrcp.pop %v3678
        %v4333 = vmul.f32 1.0, %v4332
        %v4334 = vrcp.pop %v3679
        %v4335 = vmul.f32 1.0, %v4334
        %v4336 = vrcp.pop %v3680
        %v4337 = vmul.f32 1.0, %v4336
        %v4338 = vrcp.pop %v3681
        %v4339 = vmul.f32 1.0, %v4338
        %v4340 = vrcp.pop %v3682
        %v4341 = vmul.f32 1.0, %v4340
        %v4342 = vrcp.pop %v3683
        %v4343 = vmul.f32 1.0, %v4342
        %v4344 = vrcp.pop %v3684
        %v4345 = vmul.f32 1.0, %v4344
        %v4346 = vrcp.pop %v3685
        %v4347 = vmul.f32 1.0, %v4346
        %v4348 = vrcp.pop %v3686
        %v4349 = vmul.f32 1.0, %v4348
        %v4350 = vrcp.pop %v3687
        %v4351 = vmul.f32 1.0, %v4350
        %v4352 = vrcp.pop %v3688
        %v4353 = vmul.f32 1.0, %v4352
        %v4354 = vrcp.pop %v3689
        %v4355 = vmul.f32 1.0, %v4354
        %v4356 = vrcp.pop %v3690
        %v4357 = vmul.f32 1.0, %v4356
        %v4358 = vrcp.pop %v3691
        %v4359 = vmul.f32 1.0, %v4358
        %v4360 = vrcp.pop %v3692
        %v4361 = vmul.f32 1.0, %v4360
        %v4362 = vrcp.pop %v3693
        %v4363 = vmul.f32 1.0, %v4362
        %v4364 = vrcp.pop %v3694
        %v4365 = vmul.f32 1.0, %v4364
        %v4366 = vrcp.pop %v3695
        %v4367 = vmul.f32 1.0, %v4366
        %v4368 = vrcp.pop %v3696
        %v4369 = vmul.f32 1.0, %v4368
        %v4370 = vrcp.pop %v3697
        %v4371 = vmul.f32 1.0, %v4370
        %v4372 = vrcp.pop %v3698
        %v4373 = vmul.f32 1.0, %v4372
        %v4374 = vrcp.pop %v3699
        %v4375 = vmul.f32 1.0, %v4374
        %v4376 = vrcp.pop %v3700
        %v4377 = vmul.f32 1.0, %v4376
        %v4378 = vrcp.pop %v3701
        %v4379 = vmul.f32 1.0, %v4378
        %v4380 = vrcp.pop %v3702
        %v4381 = vmul.f32 1.0, %v4380
        %v4382 = vrcp.pop %v3703
        %v4383 = vmul.f32 1.0, %v4382
        %v4384 = vrcp.pop %v3704
        %v4385 = vmul.f32 1.0, %v4384
        %v4386 = vrcp.pop %v3705
        %v4387 = vmul.f32 1.0, %v4386
        %v4388 = vrcp.pop %v3706
        %v4389 = vmul.f32 1.0, %v4388
        %v4390 = vrcp.pop %v3707
        %v4391 = vmul.f32 1.0, %v4390
        %v4392 = vrcp.pop %v3708
        %v4393 = vmul.f32 1.0, %v4392
        %v4394 = vrcp.pop %v3709
        %v4395 = vmul.f32 1.0, %v4394
        %v4396 = vrcp.pop %v3710
        %v4397 = vmul.f32 1.0, %v4396
        %v4398 = vrcp.pop %v3711
        %v4399 = vmul.f32 1.0, %v4398
        %v4400 = vrcp.pop %v3712
        %v4401 = vmul.f32 1.0, %v4400
        %v4402 = vrcp.pop %v3713
        %v4403 = vmul.f32 1.0, %v4402
        %v4404 = vrcp.pop %v3714
        %v4405 = vmul.f32 1.0, %v4404
        %v4406 = vrcp.pop %v3715
        %v4407 = vmul.f32 1.0, %v4406
        %v4408 = vrcp.pop %v3716
        %v4409 = vmul.f32 1.0, %v4408
        %v4410 = vrcp.pop %v3717
        %v4411 = vmul.f32 1.0, %v4410
        %v4412 = vrcp.pop %v3718
        %v4413 = vmul.f32 1.0, %v4412
        %v4414 = vrcp.pop %v3719
        %v4415 = vmul.f32 1.0, %v4414
        %v4416 = vrcp.pop %v3720
        %v4417 = vmul.f32 1.0, %v4416
        %v4418 = vrcp.pop %v3721
        %v4419 = vmul.f32 1.0, %v4418
        %v4420 = vrcp.pop %v3722
        %v4421 = vmul.f32 1.0, %v4420
        %v4422 = vrcp.pop %v3723
        %v4423 = vmul.f32 1.0, %v4422
        %v4424 = vrcp.pop %v3724
        %v4425 = vmul.f32 1.0, %v4424
        %v4426 = vrcp.pop %v3725
        %v4427 = vmul.f32 1.0, %v4426
        %v4428 = vrcp.pop %v3726
        %v4429 = vmul.f32 1.0, %v4428
        %v4430 = vrcp.pop %v3727
        %v4431 = vmul.f32 1.0, %v4430
        %v4432 = vrcp.pop %v3728
        %v4433 = vmul.f32 1.0, %v4432
        %v4434 = vrcp.pop %v3729
        %v4435 = vmul.f32 1.0, %v4434
        %v4436 = vrcp.pop %v3730
        %v4437 = vmul.f32 1.0, %v4436
        %v4438 = vrcp.pop %v3731
        %v4439 = vmul.f32 1.0, %v4438
        %v4440 = vrcp.pop %v3732
        %v4441 = vmul.f32 1.0, %v4440
        %v4442 = vrcp.pop %v3733
        %v4443 = vmul.f32 1.0, %v4442
        %v4444 = vrcp.pop %v3734
        %v4445 = vmul.f32 1.0, %v4444
        %v4446 = vrcp.pop %v3735
        %v4447 = vmul.f32 1.0, %v4446
        %v4448 = vrcp.pop %v3736
        %v4449 = vmul.f32 1.0, %v4448
        %v4450 = vrcp.pop %v3737
        %v4451 = vmul.f32 1.0, %v4450
        %v4452 = vrcp.pop %v3738
        %v4453 = vmul.f32 1.0, %v4452
        %v4454 = vrcp.pop %v3739
        %v4455 = vmul.f32 1.0, %v4454
        %v4456 = vrcp.pop %v3740
        %v4457 = vmul.f32 1.0, %v4456
        %v4458 = vrcp.pop %v3741
        %v4459 = vmul.f32 1.0, %v4458
        %v4460 = vrcp.pop %v3742
        %v4461 = vmul.f32 1.0, %v4460
        %v4462 = vrcp.pop %v3743
        %v4463 = vmul.f32 1.0, %v4462
        %v4464 = vmul.f32 %v1274, %v3745
        %v4465 = vmul.f32 %v1276, %v3747
        %v4466 = vmul.f32 %v1487, %v3749
        %v4467 = vmul.f32 %v1489, %v3751
        %v4468 = vmul.f32 %v1700, %v3753
        %v4469 = vmul.f32 %v1702, %v3755
        %v4470 = vmul.f32 %v1913, %v3757
        %v4471 = vmul.f32 %v1915, %v3759
        %v4472 = vmul.f32 %v2126, %v3761
        %v4473 = vmul.f32 %v2128, %v3763
        %v4474 = vmul.f32 %v1278, %v3765
        %v4475 = vmul.f32 %v1280, %v3767
        %v4476 = vmul.f32 %v1491, %v3769
        %v4477 = vmul.f32 %v1493, %v3771
        %v4478 = vmul.f32 %v1704, %v3773
        %v4479 = vmul.f32 %v1706, %v3775
        %v4480 = vmul.f32 %v1917, %v3777
        %v4481 = vmul.f32 %v1919, %v3779
        %v4482 = vmul.f32 %v2130, %v3781
        %v4483 = vmul.f32 %v2132, %v3783
        %v4484 = vmul.f32 %v1284, %v3785
        %v4485 = vmul.f32 %v1286, %v3787
        %v4486 = vmul.f32 %v1497, %v3789
        %v4487 = vmul.f32 %v1499, %v3791
        %v4488 = vmul.f32 %v1710, %v3793
        %v4489 = vmul.f32 %v1712, %v3795
        %v4490 = vmul.f32 %v1923, %v3797
        %v4491 = vmul.f32 %v1925, %v3799
        %v4492 = vmul.f32 %v2136, %v3801
        %v4493 = vmul.f32 %v2138, %v3803
        %v4494 = vmul.f32 %v1288, %v3805
        %v4495 = vmul.f32 %v1290, %v3807
        %v4496 = vmul.f32 %v1501, %v3809
        %v4497 = vmul.f32 %v1503, %v3811
        %v4498 = vmul.f32 %v1714, %v3813
        %v4499 = vmul.f32 %v1716, %v3815
        %v4500 = vmul.f32 %v1927, %v3817
        %v4501 = vmul.f32 %v1929, %v3819
        %v4502 = vmul.f32 %v2140, %v3821
        %v4503 = vmul.f32 %v2142, %v3823
        %v4504 = vmul.f32 %v1294, %v3825
        %v4505 = vmul.f32 %v1296, %v3827
        %v4506 = vmul.f32 %v1507, %v3829
        %v4507 = vmul.f32 %v1509, %v3831
        %v4508 = vmul.f32 %v1720, %v3833
        %v4509 = vmul.f32 %v1722, %v3835
        %v4510 = vmul.f32 %v1933, %v3837
        %v4511 = vmul.f32 %v1935, %v3839
        %v4512 = vmul.f32 %v2146, %v3841
        %v4513 = vmul.f32 %v2148, %v3843
        %v4514 = vmul.f32 %v1298, %v3845
        %v4515 = vmul.f32 %v1300, %v3847
        %v4516 = vmul.f32 %v1511, %v3849
        %v4517 = vmul.f32 %v1513, %v3851
        %v4518 = vmul.f32 %v1724, %v3853
        %v4519 = vmul.f32 %v1726, %v3855
        %v4520 = vmul.f32 %v1937, %v3857
        %v4521 = vmul.f32 %v1939, %v3859
        %v4522 = vmul.f32 %v2150, %v3861
        %v4523 = vmul.f32 %v2152, %v3863
        %v4524 = vmul.f32 %v1304, %v3865
        %v4525 = vmul.f32 %v1306, %v3867
        %v4526 = vmul.f32 %v1517, %v3869
        %v4527 = vmul.f32 %v1519, %v3871
        %v4528 = vmul.f32 %v1730, %v3873
        %v4529 = vmul.f32 %v1732, %v3875
        %v4530 = vmul.f32 %v1943, %v3877
        %v4531 = vmul.f32 %v1945, %v3879
        %v4532 = vmul.f32 %v2156, %v3881
        %v4533 = vmul.f32 %v2158, %v3883
        %v4534 = vmul.f32 %v1308, %v3885
        %v4535 = vmul.f32 %v1310, %v3887
        %v4536 = vmul.f32 %v1521, %v3889
        %v4537 = vmul.f32 %v1523, %v3891
        %v4538 = vmul.f32 %v1734, %v3893
        %v4539 = vmul.f32 %v1736, %v3895
        %v4540 = vmul.f32 %v1947, %v3897
        %v4541 = vmul.f32 %v1949, %v3899
        %v4542 = vmul.f32 %v2160, %v3901
        %v4543 = vmul.f32 %v2162, %v3903
        %v4544 = vmul.f32 %v1314, %v3905
        %v4545 = vmul.f32 %v1316, %v3907
        %v4546 = vmul.f32 %v1527, %v3909
        %v4547 = vmul.f32 %v1529, %v3911
        %v4548 = vmul.f32 %v1740, %v3913
        %v4549 = vmul.f32 %v1742, %v3915
        %v4550 = vmul.f32 %v1953, %v3917
        %v4551 = vmul.f32 %v1955, %v3919
        %v4552 = vmul.f32 %v2166, %v3921
        %v4553 = vmul.f32 %v2168, %v3923
        %v4554 = vmul.f32 %v1318, %v3925
        %v4555 = vmul.f32 %v1320, %v3927
        %v4556 = vmul.f32 %v1531, %v3929
        %v4557 = vmul.f32 %v1533, %v3931
        %v4558 = vmul.f32 %v1744, %v3933
        %v4559 = vmul.f32 %v1746, %v3935
        %v4560 = vmul.f32 %v1957, %v3937
        %v4561 = vmul.f32 %v1959, %v3939
        %v4562 = vmul.f32 %v2170, %v3941
        %v4563 = vmul.f32 %v2172, %v3943
        %v4564 = vmul.f32 %v1324, %v3945
        %v4565 = vmul.f32 %v1326, %v3947
        %v4566 = vmul.f32 %v1537, %v3949
        %v4567 = vmul.f32 %v1539, %v3951
        %v4568 = vmul.f32 %v1750, %v3953
        %v4569 = vmul.f32 %v1752, %v3955
        %v4570 = vmul.f32 %v1963, %v3957
        %v4571 = vmul.f32 %v1965, %v3959
        %v4572 = vmul.f32 %v2176, %v3961
        %v4573 = vmul.f32 %v2178, %v3963
        %v4574 = vmul.f32 %v1328, %v3965
        %v4575 = vmul.f32 %v1330, %v3967
        %v4576 = vmul.f32 %v1541, %v3969
        %v4577 = vmul.f32 %v1543, %v3971
        %v4578 = vmul.f32 %v1754, %v3973
        %v4579 = vmul.f32 %v1756, %v3975
        %v4580 = vmul.f32 %v1967, %v3977
        %v4581 = vmul.f32 %v1969, %v3979
        %v4582 = vmul.f32 %v2180, %v3981
        %v4583 = vmul.f32 %v2182, %v3983
        %v4584 = vmul.f32 %v1334, %v3985
        %v4585 = vmul.f32 %v1336, %v3987
        %v4586 = vmul.f32 %v1547, %v3989
        %v4587 = vmul.f32 %v1549, %v3991
        %v4588 = vmul.f32 %v1760, %v3993
        %v4589 = vmul.f32 %v1762, %v3995
        %v4590 = vmul.f32 %v1973, %v3997
        %v4591 = vmul.f32 %v1975, %v3999
        %v4592 = vmul.f32 %v2186, %v4001
        %v4593 = vmul.f32 %v2188, %v4003
        %v4594 = vmul.f32 %v1338, %v4005
        %v4595 = vmul.f32 %v1340, %v4007
        %v4596 = vmul.f32 %v1551, %v4009
        %v4597 = vmul.f32 %v1553, %v4011
        %v4598 = vmul.f32 %v1764, %v4013
        %v4599 = vmul.f32 %v1766, %v4015
        %v4600 = vmul.f32 %v1977, %v4017
        %v4601 = vmul.f32 %v1979, %v4019
        %v4602 = vmul.f32 %v2190, %v4021
        %v4603 = vmul.f32 %v2192, %v4023
        %v4604 = vmul.f32 %v1344, %v4025
        %v4605 = vmul.f32 %v1346, %v4027
        %v4606 = vmul.f32 %v1557, %v4029
        %v4607 = vmul.f32 %v1559, %v4031
        %v4608 = vmul.f32 %v1770, %v4033
        %v4609 = vmul.f32 %v1772, %v4035
        %v4610 = vmul.f32 %v1983, %v4037
        %v4611 = vmul.f32 %v1985, %v4039
        %v4612 = vmul.f32 %v2196, %v4041
        %v4613 = vmul.f32 %v2198, %v4043
        %v4614 = vmul.f32 %v1348, %v4045
        %v4615 = vmul.f32 %v1350, %v4047
        %v4616 = vmul.f32 %v1561, %v4049
        %v4617 = vmul.f32 %v1563, %v4051
        %v4618 = vmul.f32 %v1774, %v4053
        %v4619 = vmul.f32 %v1776, %v4055
        %v4620 = vmul.f32 %v1987, %v4057
        %v4621 = vmul.f32 %v1989, %v4059
        %v4622 = vmul.f32 %v2200, %v4061
        %v4623 = vmul.f32 %v2202, %v4063
        %v4624 = vmul.f32 %v1354, %v4065
        %v4625 = vmul.f32 %v1356, %v4067
        %v4626 = vmul.f32 %v1567, %v4069
        %v4627 = vmul.f32 %v1569, %v4071
        %v4628 = vmul.f32 %v1780, %v4073
        %v4629 = vmul.f32 %v1782, %v4075
        %v4630 = vmul.f32 %v1993, %v4077
        %v4631 = vmul.f32 %v1995, %v4079
        %v4632 = vmul.f32 %v2206, %v4081
        %v4633 = vmul.f32 %v2208, %v4083
        %v4634 = vmul.f32 %v1358, %v4085
        %v4635 = vmul.f32 %v1360, %v4087
        %v4636 = vmul.f32 %v1571, %v4089
        %v4637 = vmul.f32 %v1573, %v4091
        %v4638 = vmul.f32 %v1784, %v4093
        %v4639 = vmul.f32 %v1786, %v4095
        %v4640 = vmul.f32 %v1997, %v4097
        %v4641 = vmul.f32 %v1999, %v4099
        %v4642 = vmul.f32 %v2210, %v4101
        %v4643 = vmul.f32 %v2212, %v4103
        %v4644 = vmul.f32 %v1364, %v4105
        %v4645 = vmul.f32 %v1366, %v4107
        %v4646 = vmul.f32 %v1577, %v4109
        %v4647 = vmul.f32 %v1579, %v4111
        %v4648 = vmul.f32 %v1790, %v4113
        %v4649 = vmul.f32 %v1792, %v4115
        %v4650 = vmul.f32 %v2003, %v4117
        %v4651 = vmul.f32 %v2005, %v4119
        %v4652 = vmul.f32 %v2216, %v4121
        %v4653 = vmul.f32 %v2218, %v4123
        %v4654 = vmul.f32 %v1368, %v4125
        %v4655 = vmul.f32 %v1370, %v4127
        %v4656 = vmul.f32 %v1581, %v4129
        %v4657 = vmul.f32 %v1583, %v4131
        %v4658 = vmul.f32 %v1794, %v4133
        %v4659 = vmul.f32 %v1796, %v4135
        %v4660 = vmul.f32 %v2007, %v4137
        %v4661 = vmul.f32 %v2009, %v4139
        %v4662 = vmul.f32 %v2220, %v4141
        %v4663 = vmul.f32 %v2222, %v4143
        %v4664 = vmul.f32 %v1374, %v4145
        %v4665 = vmul.f32 %v1376, %v4147
        %v4666 = vmul.f32 %v1587, %v4149
        %v4667 = vmul.f32 %v1589, %v4151
        %v4668 = vmul.f32 %v1800, %v4153
        %v4669 = vmul.f32 %v1802, %v4155
        %v4670 = vmul.f32 %v2013, %v4157
        %v4671 = vmul.f32 %v2015, %v4159
        %v4672 = vmul.f32 %v2226, %v4161
        %v4673 = vmul.f32 %v2228, %v4163
        %v4674 = vmul.f32 %v1378, %v4165
        %v4675 = vmul.f32 %v1380, %v4167
        %v4676 = vmul.f32 %v1591, %v4169
        %v4677 = vmul.f32 %v1593, %v4171
        %v4678 = vmul.f32 %v1804, %v4173
        %v4679 = vmul.f32 %v1806, %v4175
        %v4680 = vmul.f32 %v2017, %v4177
        %v4681 = vmul.f32 %v2019, %v4179
        %v4682 = vmul.f32 %v2230, %v4181
        %v4683 = vmul.f32 %v2232, %v4183
        %v4684 = vmul.f32 %v1384, %v4185
        %v4685 = vmul.f32 %v1386, %v4187
        %v4686 = vmul.f32 %v1597, %v4189
        %v4687 = vmul.f32 %v1599, %v4191
        %v4688 = vmul.f32 %v1810, %v4193
        %v4689 = vmul.f32 %v1812, %v4195
        %v4690 = vmul.f32 %v2023, %v4197
        %v4691 = vmul.f32 %v2025, %v4199
        %v4692 = vmul.f32 %v2236, %v4201
        %v4693 = vmul.f32 %v2238, %v4203
        %v4694 = vmul.f32 %v1388, %v4205
        %v4695 = vmul.f32 %v1390, %v4207
        %v4696 = vmul.f32 %v1601, %v4209
        %v4697 = vmul.f32 %v1603, %v4211
        %v4698 = vmul.f32 %v1814, %v4213
        %v4699 = vmul.f32 %v1816, %v4215
        %v4700 = vmul.f32 %v2027, %v4217
        %v4701 = vmul.f32 %v2029, %v4219
        %v4702 = vmul.f32 %v2240, %v4221
        %v4703 = vmul.f32 %v2242, %v4223
        %v4704 = vmul.f32 %v1394, %v4225
        %v4705 = vmul.f32 %v1396, %v4227
        %v4706 = vmul.f32 %v1607, %v4229
        %v4707 = vmul.f32 %v1609, %v4231
        %v4708 = vmul.f32 %v1820, %v4233
        %v4709 = vmul.f32 %v1822, %v4235
        %v4710 = vmul.f32 %v2033, %v4237
        %v4711 = vmul.f32 %v2035, %v4239
        %v4712 = vmul.f32 %v2246, %v4241
        %v4713 = vmul.f32 %v2248, %v4243
        %v4714 = vmul.f32 %v1398, %v4245
        %v4715 = vmul.f32 %v1400, %v4247
        %v4716 = vmul.f32 %v1611, %v4249
        %v4717 = vmul.f32 %v1613, %v4251
        %v4718 = vmul.f32 %v1824, %v4253
        %v4719 = vmul.f32 %v1826, %v4255
        %v4720 = vmul.f32 %v2037, %v4257
        %v4721 = vmul.f32 %v2039, %v4259
        %v4722 = vmul.f32 %v2250, %v4261
        %v4723 = vmul.f32 %v2252, %v4263
        %v4724 = vmul.f32 %v1404, %v4265
        %v4725 = vmul.f32 %v1406, %v4267
        %v4726 = vmul.f32 %v1617, %v4269
        %v4727 = vmul.f32 %v1619, %v4271
        %v4728 = vmul.f32 %v1830, %v4273
        %v4729 = vmul.f32 %v1832, %v4275
        %v4730 = vmul.f32 %v2043, %v4277
        %v4731 = vmul.f32 %v2045, %v4279
        %v4732 = vmul.f32 %v2256, %v4281
        %v4733 = vmul.f32 %v2258, %v4283
        %v4734 = vmul.f32 %v1408, %v4285
        %v4735 = vmul.f32 %v1410, %v4287
        %v4736 = vmul.f32 %v1621, %v4289
        %v4737 = vmul.f32 %v1623, %v4291
        %v4738 = vmul.f32 %v1834, %v4293
        %v4739 = vmul.f32 %v1836, %v4295
        %v4740 = vmul.f32 %v2047, %v4297
        %v4741 = vmul.f32 %v2049, %v4299
        %v4742 = vmul.f32 %v2260, %v4301
        %v4743 = vmul.f32 %v2262, %v4303
        %v4744 = vmul.f32 %v1414, %v4305
        %v4745 = vmul.f32 %v1416, %v4307
        %v4746 = vmul.f32 %v1627, %v4309
        %v4747 = vmul.f32 %v1629, %v4311
        %v4748 = vmul.f32 %v1840, %v4313
        %v4749 = vmul.f32 %v1842, %v4315
        %v4750 = vmul.f32 %v2053, %v4317
        %v4751 = vmul.f32 %v2055, %v4319
        %v4752 = vmul.f32 %v2266, %v4321
        %v4753 = vmul.f32 %v2268, %v4323
        %v4754 = vmul.f32 %v1418, %v4325
        %v4755 = vmul.f32 %v1420, %v4327
        %v4756 = vmul.f32 %v1631, %v4329
        %v4757 = vmul.f32 %v1633, %v4331
        %v4758 = vmul.f32 %v1844, %v4333
        %v4759 = vmul.f32 %v1846, %v4335
        %v4760 = vmul.f32 %v2057, %v4337
        %v4761 = vmul.f32 %v2059, %v4339
        %v4762 = vmul.f32 %v2270, %v4341
        %v4763 = vmul.f32 %v2272, %v4343
        %v4764 = vmul.f32 %v1424, %v4345
        %v4765 = vmul.f32 %v1426, %v4347
        %v4766 = vmul.f32 %v1637, %v4349
        %v4767 = vmul.f32 %v1639, %v4351
        %v4768 = vmul.f32 %v1850, %v4353
        %v4769 = vmul.f32 %v1852, %v4355
        %v4770 = vmul.f32 %v2063, %v4357
        %v4771 = vmul.f32 %v2065, %v4359
        %v4772 = vmul.f32 %v2276, %v4361
        %v4773 = vmul.f32 %v2278, %v4363
        %v4774 = vmul.f32 %v1428, %v4365
        %v4775 = vmul.f32 %v1430, %v4367
        %v4776 = vmul.f32 %v1641, %v4369
        %v4777 = vmul.f32 %v1643, %v4371
        %v4778 = vmul.f32 %v1854, %v4373
        %v4779 = vmul.f32 %v1856, %v4375
        %v4780 = vmul.f32 %v2067, %v4377
        %v4781 = vmul.f32 %v2069, %v4379
        %v4782 = vmul.f32 %v2280, %v4381
        %v4783 = vmul.f32 %v2282, %v4383
        %v4784 = vmul.f32 %v1434, %v4385
        %v4785 = vmul.f32 %v1436, %v4387
        %v4786 = vmul.f32 %v1647, %v4389
        %v4787 = vmul.f32 %v1649, %v4391
        %v4788 = vmul.f32 %v1860, %v4393
        %v4789 = vmul.f32 %v1862, %v4395
        %v4790 = vmul.f32 %v2073, %v4397
        %v4791 = vmul.f32 %v2075, %v4399
        %v4792 = vmul.f32 %v2286, %v4401
        %v4793 = vmul.f32 %v2288, %v4403
        %v4794 = vmul.f32 %v1438, %v4405
        %v4795 = vmul.f32 %v1440, %v4407
        %v4796 = vmul.f32 %v1651, %v4409
        %v4797 = vmul.f32 %v1653, %v4411
        %v4798 = vmul.f32 %v1864, %v4413
        %v4799 = vmul.f32 %v1866, %v4415
        %v4800 = vmul.f32 %v2077, %v4417
        %v4801 = vmul.f32 %v2079, %v4419
        %v4802 = vmul.f32 %v2290, %v4421
        %v4803 = vmul.f32 %v2292, %v4423
        %v4804 = vmul.f32 %v1444, %v4425
        %v4805 = vmul.f32 %v1446, %v4427
        %v4806 = vmul.f32 %v1657, %v4429
        %v4807 = vmul.f32 %v1659, %v4431
        %v4808 = vmul.f32 %v1870, %v4433
        %v4809 = vmul.f32 %v1872, %v4435
        %v4810 = vmul.f32 %v2083, %v4437
        %v4811 = vmul.f32 %v2085, %v4439
        %v4812 = vmul.f32 %v2296, %v4441
        %v4813 = vmul.f32 %v2298, %v4443
        %v4814 = vmul.f32 %v1448, %v4445
        %v4815 = vmul.f32 %v1450, %v4447
        %v4816 = vmul.f32 %v1661, %v4449
        %v4817 = vmul.f32 %v1663, %v4451
        %v4818 = vmul.f32 %v1874, %v4453
        %v4819 = vmul.f32 %v1876, %v4455
        %v4820 = vmul.f32 %v2087, %v4457
        %v4821 = vmul.f32 %v2089, %v4459
        %v4822 = vmul.f32 %v2300, %v4461
        %v4823 = vmul.f32 %v2302, %v4463
        %v4824 = vld [vmem:[#allocation2] sm:$0xff]
        %v4825 = vld [vmem:[#allocation2 + $0x8] sm:$0x3]
        %v4826 = vadd.f32 %v4464, %v4474
        %v4827 = vadd.f32 %v4826, %v4484
        %v4828 = vadd.f32 %v4827, %v4494
        %v4829 = vadd.f32 %v4828, %v4504
        %v4830 = vadd.f32 %v4829, %v4514
        %v4831 = vadd.f32 %v4830, %v4524
        %v4832 = vadd.f32 %v4831, %v4534
        %v4833 = vadd.f32 %v4832, %v4544
        %v4834 = vadd.f32 %v4833, %v4554
        %v4835 = vadd.f32 %v4834, %v4564
        %v4836 = vadd.f32 %v4835, %v4574
        %v4837 = vadd.f32 %v4836, %v4584
        %v4838 = vadd.f32 %v4837, %v4594
        %v4839 = vadd.f32 %v4838, %v4604
        %v4840 = vadd.f32 %v4839, %v4614
        %v4841 = vadd.f32 %v4840, %v4624
        %v4842 = vadd.f32 %v4841, %v4634
        %v4843 = vadd.f32 %v4842, %v4644
        %v4844 = vadd.f32 %v4843, %v4654
        %v4845 = vadd.f32 %v4844, %v4664
        %v4846 = vadd.f32 %v4845, %v4674
        %v4847 = vadd.f32 %v4846, %v4684
        %v4848 = vadd.f32 %v4847, %v4694
        %v4849 = vadd.f32 %v4848, %v4704
        %v4850 = vadd.f32 %v4849, %v4714
        %v4851 = vadd.f32 %v4850, %v4724
        %v4852 = vadd.f32 %v4851, %v4734
        %v4853 = vadd.f32 %v4852, %v4744
        %v4854 = vadd.f32 %v4853, %v4754
        %v4855 = vadd.f32 %v4854, %v4764
        %v4856 = vadd.f32 %v4855, %v4774
        %v4857 = vadd.f32 %v4856, %v4784
        %v4858 = vadd.f32 %v4857, %v4794
        %v4859 = vadd.f32 %v4858, %v4804
        %v4860 = vadd.f32 %v4859, %v4814
        %v4861 = vrot.slane %v4860, 4
        %v4862 = vadd.f32 %v4860, %v4861
        %v4863 = vrot.slane %v4862, 2
        %v4864 = vadd.f32 %v4862, %v4863
        %v4865 = vrot.slane %v4864, 1
        %v4866 = vadd.f32 %v4864, %v4865
        %v4867 = vadd.f32 %v4465, %v4475
        %v4868 = vadd.f32 %v4867, %v4485
        %v4869 = vadd.f32 %v4868, %v4495
        %v4870 = vadd.f32 %v4869, %v4505
        %v4871 = vadd.f32 %v4870, %v4515
        %v4872 = vadd.f32 %v4871, %v4525
        %v4873 = vadd.f32 %v4872, %v4535
        %v4874 = vadd.f32 %v4873, %v4545
        %v4875 = vadd.f32 %v4874, %v4555
        %v4876 = vadd.f32 %v4875, %v4565
        %v4877 = vadd.f32 %v4876, %v4575
        %v4878 = vadd.f32 %v4877, %v4585
        %v4879 = vadd.f32 %v4878, %v4595
        %v4880 = vadd.f32 %v4879, %v4605
        %v4881 = vadd.f32 %v4880, %v4615
        %v4882 = vadd.f32 %v4881, %v4625
        %v4883 = vadd.f32 %v4882, %v4635
        %v4884 = vadd.f32 %v4883, %v4645
        %v4885 = vadd.f32 %v4884, %v4655
        %v4886 = vadd.f32 %v4885, %v4665
        %v4887 = vadd.f32 %v4886, %v4675
        %v4888 = vadd.f32 %v4887, %v4685
        %v4889 = vadd.f32 %v4888, %v4695
        %v4890 = vadd.f32 %v4889, %v4705
        %v4891 = vadd.f32 %v4890, %v4715
        %v4892 = vadd.f32 %v4891, %v4725
        %v4893 = vadd.f32 %v4892, %v4735
        %v4894 = vadd.f32 %v4893, %v4745
        %v4895 = vadd.f32 %v4894, %v4755
        %v4896 = vadd.f32 %v4895, %v4765
        %v4897 = vadd.f32 %v4896, %v4775
        %v4898 = vadd.f32 %v4897, %v4785
        %v4899 = vadd.f32 %v4898, %v4795
        %v4900 = vadd.f32 %v4899, %v4805
        %v4901 = vadd.f32 %v4900, %v4815
        %v4902 = vrot.slane %v4901, 4
        %v4903 = vadd.f32 %v4901, %v4902
        %v4904 = vrot.slane %v4903, 2
        %v4905 = vadd.f32 %v4903, %v4904
        %v4906 = vrot.slane %v4905, 1
        %v4907 = vadd.f32 %v4905, %v4906
        %v4908 = vadd.f32 %v4466, %v4476
        %v4909 = vadd.f32 %v4908, %v4486
        %v4910 = vadd.f32 %v4909, %v4496
        %v4911 = vadd.f32 %v4910, %v4506
        %v4912 = vadd.f32 %v4911, %v4516
        %v4913 = vadd.f32 %v4912, %v4526
        %v4914 = vadd.f32 %v4913, %v4536
        %v4915 = vadd.f32 %v4914, %v4546
        %v4916 = vadd.f32 %v4915, %v4556
        %v4917 = vadd.f32 %v4916, %v4566
        %v4918 = vadd.f32 %v4917, %v4576
        %v4919 = vadd.f32 %v4918, %v4586
        %v4920 = vadd.f32 %v4919, %v4596
        %v4921 = vadd.f32 %v4920, %v4606
        %v4922 = vadd.f32 %v4921, %v4616
        %v4923 = vadd.f32 %v4922, %v4626
        %v4924 = vadd.f32 %v4923, %v4636
        %v4925 = vadd.f32 %v4924, %v4646
        %v4926 = vadd.f32 %v4925, %v4656
        %v4927 = vadd.f32 %v4926, %v4666
        %v4928 = vadd.f32 %v4927, %v4676
        %v4929 = vadd.f32 %v4928, %v4686
        %v4930 = vadd.f32 %v4929, %v4696
        %v4931 = vadd.f32 %v4930, %v4706
        %v4932 = vadd.f32 %v4931, %v4716
        %v4933 = vadd.f32 %v4932, %v4726
        %v4934 = vadd.f32 %v4933, %v4736
        %v4935 = vadd.f32 %v4934, %v4746
        %v4936 = vadd.f32 %v4935, %v4756
        %v4937 = vadd.f32 %v4936, %v4766
        %v4938 = vadd.f32 %v4937, %v4776
        %v4939 = vadd.f32 %v4938, %v4786
        %v4940 = vadd.f32 %v4939, %v4796
        %v4941 = vadd.f32 %v4940, %v4806
        %v4942 = vadd.f32 %v4941, %v4816
        %v4943 = vrot.slane %v4942, 4
        %v4944 = vadd.f32 %v4942, %v4943
        %v4945 = vrot.slane %v4944, 2
        %v4946 = vadd.f32 %v4944, %v4945
        %v4947 = vrot.slane %v4946, 1
        %v4948 = vadd.f32 %v4946, %v4947
        %v4949 = vadd.f32 %v4467, %v4477
        %v4950 = vadd.f32 %v4949, %v4487
        %v4951 = vadd.f32 %v4950, %v4497
        %v4952 = vadd.f32 %v4951, %v4507
        %v4953 = vadd.f32 %v4952, %v4517
        %v4954 = vadd.f32 %v4953, %v4527
        %v4955 = vadd.f32 %v4954, %v4537
        %v4956 = vadd.f32 %v4955, %v4547
        %v4957 = vadd.f32 %v4956, %v4557
        %v4958 = vadd.f32 %v4957, %v4567
        %v4959 = vadd.f32 %v4958, %v4577
        %v4960 = vadd.f32 %v4959, %v4587
        %v4961 = vadd.f32 %v4960, %v4597
        %v4962 = vadd.f32 %v4961, %v4607
        %v4963 = vadd.f32 %v4962, %v4617
        %v4964 = vadd.f32 %v4963, %v4627
        %v4965 = vadd.f32 %v4964, %v4637
        %v4966 = vadd.f32 %v4965, %v4647
        %v4967 = vadd.f32 %v4966, %v4657
        %v4968 = vadd.f32 %v4967, %v4667
        %v4969 = vadd.f32 %v4968, %v4677
        %v4970 = vadd.f32 %v4969, %v4687
        %v4971 = vadd.f32 %v4970, %v4697
        %v4972 = vadd.f32 %v4971, %v4707
        %v4973 = vadd.f32 %v4972, %v4717
        %v4974 = vadd.f32 %v4973, %v4727
        %v4975 = vadd.f32 %v4974, %v4737
        %v4976 = vadd.f32 %v4975, %v4747
        %v4977 = vadd.f32 %v4976, %v4757
        %v4978 = vadd.f32 %v4977, %v4767
        %v4979 = vadd.f32 %v4978, %v4777
        %v4980 = vadd.f32 %v4979, %v4787
        %v4981 = vadd.f32 %v4980, %v4797
        %v4982 = vadd.f32 %v4981, %v4807
        %v4983 = vadd.f32 %v4982, %v4817
        %v4984 = vrot.slane %v4983, 4
        %v4985 = vadd.f32 %v4983, %v4984
        %v4986 = vrot.slane %v4985, 2
        %v4987 = vadd.f32 %v4985, %v4986
        %v4988 = vrot.slane %v4987, 1
        %v4989 = vadd.f32 %v4987, %v4988
        %v4990 = vadd.f32 %v4468, %v4478
        %v4991 = vadd.f32 %v4990, %v4488
        %v4992 = vadd.f32 %v4991, %v4498
        %v4993 = vadd.f32 %v4992, %v4508
        %v4994 = vadd.f32 %v4993, %v4518
        %v4995 = vadd.f32 %v4994, %v4528
        %v4996 = vadd.f32 %v4995, %v4538
        %v4997 = vadd.f32 %v4996, %v4548
        %v4998 = vadd.f32 %v4997, %v4558
        %v4999 = vadd.f32 %v4998, %v4568
        %v5000 = vadd.f32 %v4999, %v4578
        %v5001 = vadd.f32 %v5000, %v4588
        %v5002 = vadd.f32 %v5001, %v4598
        %v5003 = vadd.f32 %v5002, %v4608
        %v5004 = vadd.f32 %v5003, %v4618
        %v5005 = vadd.f32 %v5004, %v4628
        %v5006 = vadd.f32 %v5005, %v4638
        %v5007 = vadd.f32 %v5006, %v4648
        %v5008 = vadd.f32 %v5007, %v4658
        %v5009 = vadd.f32 %v5008, %v4668
        %v5010 = vadd.f32 %v5009, %v4678
        %v5011 = vadd.f32 %v5010, %v4688
        %v5012 = vadd.f32 %v5011, %v4698
        %v5013 = vadd.f32 %v5012, %v4708
        %v5014 = vadd.f32 %v5013, %v4718
        %v5015 = vadd.f32 %v5014, %v4728
        %v5016 = vadd.f32 %v5015, %v4738
        %v5017 = vadd.f32 %v5016, %v4748
        %v5018 = vadd.f32 %v5017, %v4758
        %v5019 = vadd.f32 %v5018, %v4768
        %v5020 = vadd.f32 %v5019, %v4778
        %v5021 = vadd.f32 %v5020, %v4788
        %v5022 = vadd.f32 %v5021, %v4798
        %v5023 = vadd.f32 %v5022, %v4808
        %v5024 = vadd.f32 %v5023, %v4818
        %v5025 = vrot.slane %v5024, 4
        %v5026 = vadd.f32 %v5024, %v5025
        %v5027 = vrot.slane %v5026, 2
        %v5028 = vadd.f32 %v5026, %v5027
        %v5029 = vrot.slane %v5028, 1
        %v5030 = vadd.f32 %v5028, %v5029
        %v5031 = vadd.f32 %v4469, %v4479
        %v5032 = vadd.f32 %v5031, %v4489
        %v5033 = vadd.f32 %v5032, %v4499
        %v5034 = vadd.f32 %v5033, %v4509
        %v5035 = vadd.f32 %v5034, %v4519
        %v5036 = vadd.f32 %v5035, %v4529
        %v5037 = vadd.f32 %v5036, %v4539
        %v5038 = vadd.f32 %v5037, %v4549
        %v5039 = vadd.f32 %v5038, %v4559
        %v5040 = vadd.f32 %v5039, %v4569
        %v5041 = vadd.f32 %v5040, %v4579
        %v5042 = vadd.f32 %v5041, %v4589
        %v5043 = vadd.f32 %v5042, %v4599
        %v5044 = vadd.f32 %v5043, %v4609
        %v5045 = vadd.f32 %v5044, %v4619
        %v5046 = vadd.f32 %v5045, %v4629
        %v5047 = vadd.f32 %v5046, %v4639
        %v5048 = vadd.f32 %v5047, %v4649
        %v5049 = vadd.f32 %v5048, %v4659
        %v5050 = vadd.f32 %v5049, %v4669
        %v5051 = vadd.f32 %v5050, %v4679
        %v5052 = vadd.f32 %v5051, %v4689
        %v5053 = vadd.f32 %v5052, %v4699
        %v5054 = vadd.f32 %v5053, %v4709
        %v5055 = vadd.f32 %v5054, %v4719
        %v5056 = vadd.f32 %v5055, %v4729
        %v5057 = vadd.f32 %v5056, %v4739
        %v5058 = vadd.f32 %v5057, %v4749
        %v5059 = vadd.f32 %v5058, %v4759
        %v5060 = vadd.f32 %v5059, %v4769
        %v5061 = vadd.f32 %v5060, %v4779
        %v5062 = vadd.f32 %v5061, %v4789
        %v5063 = vadd.f32 %v5062, %v4799
        %v5064 = vadd.f32 %v5063, %v4809
        %v5065 = vadd.f32 %v5064, %v4819
        %v5066 = vrot.slane %v5065, 4
        %v5067 = vadd.f32 %v5065, %v5066
        %v5068 = vrot.slane %v5067, 2
        %v5069 = vadd.f32 %v5067, %v5068
        %v5070 = vrot.slane %v5069, 1
        %v5071 = vadd.f32 %v5069, %v5070
        %v5072 = vadd.f32 %v4470, %v4480
        %v5073 = vadd.f32 %v5072, %v4490
        %v5074 = vadd.f32 %v5073, %v4500
        %v5075 = vadd.f32 %v5074, %v4510
        %v5076 = vadd.f32 %v5075, %v4520
        %v5077 = vadd.f32 %v5076, %v4530
        %v5078 = vadd.f32 %v5077, %v4540
        %v5079 = vadd.f32 %v5078, %v4550
        %v5080 = vadd.f32 %v5079, %v4560
        %v5081 = vadd.f32 %v5080, %v4570
        %v5082 = vadd.f32 %v5081, %v4580
        %v5083 = vadd.f32 %v5082, %v4590
        %v5084 = vadd.f32 %v5083, %v4600
        %v5085 = vadd.f32 %v5084, %v4610
        %v5086 = vadd.f32 %v5085, %v4620
        %v5087 = vadd.f32 %v5086, %v4630
        %v5088 = vadd.f32 %v5087, %v4640
        %v5089 = vadd.f32 %v5088, %v4650
        %v5090 = vadd.f32 %v5089, %v4660
        %v5091 = vadd.f32 %v5090, %v4670
        %v5092 = vadd.f32 %v5091, %v4680
        %v5093 = vadd.f32 %v5092, %v4690
        %v5094 = vadd.f32 %v5093, %v4700
        %v5095 = vadd.f32 %v5094, %v4710
        %v5096 = vadd.f32 %v5095, %v4720
        %v5097 = vadd.f32 %v5096, %v4730
        %v5098 = vadd.f32 %v5097, %v4740
        %v5099 = vadd.f32 %v5098, %v4750
        %v5100 = vadd.f32 %v5099, %v4760
        %v5101 = vadd.f32 %v5100, %v4770
        %v5102 = vadd.f32 %v5101, %v4780
        %v5103 = vadd.f32 %v5102, %v4790
        %v5104 = vadd.f32 %v5103, %v4800
        %v5105 = vadd.f32 %v5104, %v4810
        %v5106 = vadd.f32 %v5105, %v4820
        %v5107 = vrot.slane %v5106, 4
        %v5108 = vadd.f32 %v5106, %v5107
        %v5109 = vrot.slane %v5108, 2
        %v5110 = vadd.f32 %v5108, %v5109
        %v5111 = vrot.slane %v5110, 1
        %v5112 = vadd.f32 %v5110, %v5111
        %v5113 = vadd.f32 %v4471, %v4481
        %v5114 = vadd.f32 %v5113, %v4491
        %v5115 = vadd.f32 %v5114, %v4501
        %v5116 = vadd.f32 %v5115, %v4511
        %v5117 = vadd.f32 %v5116, %v4521
        %v5118 = vadd.f32 %v5117, %v4531
        %v5119 = vadd.f32 %v5118, %v4541
        %v5120 = vadd.f32 %v5119, %v4551
        %v5121 = vadd.f32 %v5120, %v4561
        %v5122 = vadd.f32 %v5121, %v4571
        %v5123 = vadd.f32 %v5122, %v4581
        %v5124 = vadd.f32 %v5123, %v4591
        %v5125 = vadd.f32 %v5124, %v4601
        %v5126 = vadd.f32 %v5125, %v4611
        %v5127 = vadd.f32 %v5126, %v4621
        %v5128 = vadd.f32 %v5127, %v4631
        %v5129 = vadd.f32 %v5128, %v4641
        %v5130 = vadd.f32 %v5129, %v4651
        %v5131 = vadd.f32 %v5130, %v4661
        %v5132 = vadd.f32 %v5131, %v4671
        %v5133 = vadd.f32 %v5132, %v4681
        %v5134 = vadd.f32 %v5133, %v4691
        %v5135 = vadd.f32 %v5134, %v4701
        %v5136 = vadd.f32 %v5135, %v4711
        %v5137 = vadd.f32 %v5136, %v4721
        %v5138 = vadd.f32 %v5137, %v4731
        %v5139 = vadd.f32 %v5138, %v4741
        %v5140 = vadd.f32 %v5139, %v4751
        %v5141 = vadd.f32 %v5140, %v4761
        %v5142 = vadd.f32 %v5141, %v4771
        %v5143 = vadd.f32 %v5142, %v4781
        %v5144 = vadd.f32 %v5143, %v4791
        %v5145 = vadd.f32 %v5144, %v4801
        %v5146 = vadd.f32 %v5145, %v4811
        %v5147 = vadd.f32 %v5146, %v4821
        %v5148 = vrot.slane %v5147, 4
        %v5149 = vadd.f32 %v5147, %v5148
        %v5150 = vrot.slane %v5149, 2
        %v5151 = vadd.f32 %v5149, %v5150
        %v5152 = vrot.slane %v5151, 1
        %v5153 = vadd.f32 %v5151, %v5152
        %v5154 = vadd.f32 %v4472, %v4482
        %v5155 = vadd.f32 %v5154, %v4492
        %v5156 = vadd.f32 %v5155, %v4502
        %v5157 = vadd.f32 %v5156, %v4512
        %v5158 = vadd.f32 %v5157, %v4522
        %v5159 = vadd.f32 %v5158, %v4532
        %v5160 = vadd.f32 %v5159, %v4542
        %v5161 = vadd.f32 %v5160, %v4552
        %v5162 = vadd.f32 %v5161, %v4562
        %v5163 = vadd.f32 %v5162, %v4572
        %v5164 = vadd.f32 %v5163, %v4582
        %v5165 = vadd.f32 %v5164, %v4592
        %v5166 = vadd.f32 %v5165, %v4602
        %v5167 = vadd.f32 %v5166, %v4612
        %v5168 = vadd.f32 %v5167, %v4622
        %v5169 = vadd.f32 %v5168, %v4632
        %v5170 = vadd.f32 %v5169, %v4642
        %v5171 = vadd.f32 %v5170, %v4652
        %v5172 = vadd.f32 %v5171, %v4662
        %v5173 = vadd.f32 %v5172, %v4672
        %v5174 = vadd.f32 %v5173, %v4682
        %v5175 = vadd.f32 %v5174, %v4692
        %v5176 = vadd.f32 %v5175, %v4702
        %v5177 = vadd.f32 %v5176, %v4712
        %v5178 = vadd.f32 %v5177, %v4722
        %v5179 = vadd.f32 %v5178, %v4732
        %v5180 = vadd.f32 %v5179, %v4742
        %v5181 = vadd.f32 %v5180, %v4752
        %v5182 = vadd.f32 %v5181, %v4762
        %v5183 = vadd.f32 %v5182, %v4772
        %v5184 = vadd.f32 %v5183, %v4782
        %v5185 = vadd.f32 %v5184, %v4792
        %v5186 = vadd.f32 %v5185, %v4802
        %v5187 = vadd.f32 %v5186, %v4812
        %v5188 = vadd.f32 %v5187, %v4822
        %v5189 = vrot.slane %v5188, 4
        %v5190 = vadd.f32 %v5188, %v5189
        %v5191 = vrot.slane %v5190, 2
        %v5192 = vadd.f32 %v5190, %v5191
        %v5193 = vrot.slane %v5192, 1
        %v5194 = vadd.f32 %v5192, %v5193
        %v5195 = vadd.f32 %v4473, %v4483
        %v5196 = vadd.f32 %v5195, %v4493
        %v5197 = vadd.f32 %v5196, %v4503
        %v5198 = vadd.f32 %v5197, %v4513
        %v5199 = vadd.f32 %v5198, %v4523
        %v5200 = vadd.f32 %v5199, %v4533
        %v5201 = vadd.f32 %v5200, %v4543
        %v5202 = vadd.f32 %v5201, %v4553
        %v5203 = vadd.f32 %v5202, %v4563
        %v5204 = vadd.f32 %v5203, %v4573
        %v5205 = vadd.f32 %v5204, %v4583
        %v5206 = vadd.f32 %v5205, %v4593
        %v5207 = vadd.f32 %v5206, %v4603
        %v5208 = vadd.f32 %v5207, %v4613
        %v5209 = vadd.f32 %v5208, %v4623
        %v5210 = vadd.f32 %v5209, %v4633
        %v5211 = vadd.f32 %v5210, %v4643
        %v5212 = vadd.f32 %v5211, %v4653
        %v5213 = vadd.f32 %v5212, %v4663
        %v5214 = vadd.f32 %v5213, %v4673
        %v5215 = vadd.f32 %v5214, %v4683
        %v5216 = vadd.f32 %v5215, %v4693
        %v5217 = vadd.f32 %v5216, %v4703
        %v5218 = vadd.f32 %v5217, %v4713
        %v5219 = vadd.f32 %v5218, %v4723
        %v5220 = vadd.f32 %v5219, %v4733
        %v5221 = vadd.f32 %v5220, %v4743
        %v5222 = vadd.f32 %v5221, %v4753
        %v5223 = vadd.f32 %v5222, %v4763
        %v5224 = vadd.f32 %v5223, %v4773
        %v5225 = vadd.f32 %v5224, %v4783
        %v5226 = vadd.f32 %v5225, %v4793
        %v5227 = vadd.f32 %v5226, %v4803
        %v5228 = vadd.f32 %v5227, %v4813
        %v5229 = vadd.f32 %v5228, %v4823
        %v5230 = vrot.slane %v5229, 4
        %v5231 = vadd.f32 %v5229, %v5230
        %v5232 = vrot.slane %v5231, 2
        %v5233 = vadd.f32 %v5231, %v5232
        %v5234 = vrot.slane %v5233, 1
        %v5235 = vadd.f32 %v5233, %v5234
        %v5246 = vcombine.low %v4866, %v4907
        %v5247 = vcombine.low %v4948, %v4989
        %v5248 = vcombine.low %v5030, %v5071
        %v5249 = vcombine.low %v5112, %v5153
        %v5251 = vunpack.c.l.s4 1966171168
        %v5252 = vunpack.c.0.s8 %v5251
        %v5253 = vlaneseq
        %v5254 = vshrl.u32 %v5253, 7
        %v5255 = vsub.s32 %v5252, %v5254
        %v5256 = vrot.slane %v5246, %v5255
        %v5258 = vunpack.c.l.s4 1966171168
        %v5259 = vunpack.c.0.s8 %v5258
        %v5260 = vlaneseq
        %v5261 = vshrl.u32 %v5260, 7
        %v5262 = vsub.s32 %v5259, %v5261
        %v5263 = vrot.slane %v5247, %v5262
        %v5265 = vunpack.c.l.s4 1966171168
        %v5266 = vunpack.c.0.s8 %v5265
        %v5267 = vlaneseq
        %v5268 = vshrl.u32 %v5267, 7
        %v5269 = vsub.s32 %v5266, %v5268
        %v5270 = vrot.slane %v5248, %v5269
        %v5272 = vunpack.c.l.s4 1966171168
        %v5273 = vunpack.c.0.s8 %v5272
        %v5274 = vlaneseq
        %v5275 = vshrl.u32 %v5274, 7
        %v5276 = vsub.s32 %v5273, %v5275
        %v5277 = vrot.slane %v5249, %v5276
        %v5278 = vcombine.low %v5256, %v5263
        %v5279 = vcombine.low %v5270, %v5277
        %v5281 = vunpack.c.l.s4 1966171168
        %v5282 = vunpack.c.0.s8 %v5281
        %v5283 = vlaneseq
        %v5284 = vshrl.u32 %v5283, 7
        %v5285 = vsub.s32 %v5282, %v5284
        %v5286 = vrot.slane %v5278, %v5285
        %v5288 = vunpack.c.l.s4 1966171168
        %v5289 = vunpack.c.0.s8 %v5288
        %v5290 = vlaneseq
        %v5291 = vshrl.u32 %v5290, 7
        %v5292 = vsub.s32 %v5289, %v5291
        %v5293 = vrot.slane %v5279, %v5292
        %v5294 = vcombine.low %v5286, %v5293
        %v5295 = vcombine.low %v5194, %v5235
        %v5297 = vunpack.c.l.s4 1966171168
        %v5298 = vunpack.c.0.s8 %v5297
        %v5299 = vlaneseq
        %v5300 = vshrl.u32 %v5299, 7
        %v5301 = vsub.s32 %v5298, %v5300
        %v5302 = vrot.slane %v5295, %v5301
        %v5304 = vunpack.c.l.s4 1966171168
        %v5305 = vunpack.c.0.s8 %v5304
        %v5306 = vlaneseq
        %v5307 = vshrl.u32 %v5306, 7
        %v5308 = vsub.s32 %v5305, %v5307
        %v5309 = vrot.slane %v5302, %v5308
        %v5312 = vadd.f32 %v4824, %v5294
        %v5313 = vadd.f32 %v4825, %v5309
        %5314 = vst [vmem:[#allocation2] sm:$0xff] %v5312
        %v5315 = vlaneseq
        %vm5316 = vcmp.ge.s32.totalorder %v5315, 0
        %vm5317 = vcmp.lt.s32.totalorder %v5315, 256
        %vm5318 = vmand %vm5316, %vm5317
        %5319 = vst.msk [vmem:[#allocation2 + $0x8] sm:$0x3] %vm5318, %v5313
        %p5320 = scmp.eq.s32.totalorder %s28, 1
        // Predicated region
        $region53: #{avgpool_cnn_forward.1} parent=47 // pred_check
          %p5321 = pneg %p5320
        $region54: #{avgpool_cnn_forward.1} parent=47 // pred_check_branch
          %5323 = sbr.rel (%p5321) target = $region56
        $region55: #{avgpool_cnn_forward.1} parent=47 // pred_region
          %v5324 = vld [vmem:[#allocation2] sm:$0xff]
          %v5325 = vld [vmem:[#allocation2 + $0x8] sm:$0x3]
          %v5326 = vmul.f32 %v5324, 0.0017361111
          %v5327 = vmul.f32 %v5325, 0.0017361111
          %5328 = vst [vmem:[%s341] sm:$0xff] %v5326
          %5329 = vst.msk [vmem:[%s341 + $0x8] sm:$0x3] %vm5318, %v5327
          %v5330 = vld [vmem:[%s5] sm:$0xff]
          %v5331 = vld [vmem:[%s5 + $0x8] sm:$0xff]
          %v5332 = vld [vmem:[%s5 + $0x10] sm:$0xff]
          %v5333 = vld [vmem:[%s5 + $0x18] sm:$0xff]
          %v5334 = vld [vmem:[%s5 + $0x20] sm:$0xff]
          %v5335 = vld [vmem:[%s5 + $0x28] sm:$0xff]
          %v5336 = vld [vmem:[%s5 + $0x30] sm:$0xff]
          %v5337 = vld [vmem:[%s5 + $0x38] sm:$0xff]
          %v5338 = vld [vmem:[%s5 + $0x40] sm:$0xff]
          %v5339 = vld [vmem:[%s5 + $0x48] sm:$0xff]
          %v5340 = vld [vmem:[%s5 + $0x50] sm:$0xff]
          %v5341 = vld [vmem:[%s5 + $0x58] sm:$0xff]
          %v5342 = vld [vmem:[%s5 + $0x60] sm:$0xff]
          %v5343 = vld [vmem:[%s5 + $0x68] sm:$0xff]
          %v5344 = vld [vmem:[%s5 + $0x70] sm:$0xff]
          %v5345 = vld [vmem:[%s5 + $0x78] sm:$0xff]
          %v5346 = vld [vmem:[%s5 + $0x80] sm:$0xff]
          %v5347 = vld [vmem:[%s5 + $0x88] sm:$0xff]
          %v5348 = vld [vmem:[%s5 + $0x90] sm:$0xff]
          %v5349 = vld [vmem:[%s5 + $0x98] sm:$0xff]
          %v5350 = vld [vmem:[%s5 + $0xa0] sm:$0xff]
          %v5351 = vld [vmem:[%s5 + $0xa8] sm:$0xff]
          %v5352 = vld [vmem:[%s5 + $0xb0] sm:$0xff]
          %v5353 = vld [vmem:[%s5 + $0xb8] sm:$0xff]
          %v5354 = vld [vmem:[%s5 + $0xc0] sm:$0xff]
          %v5355 = vld [vmem:[%s5 + $0xc8] sm:$0xff]
          %v5356 = vld [vmem:[%s5 + $0xd0] sm:$0xff]
          %v5357 = vld [vmem:[%s5 + $0xd8] sm:$0xff]
          %v5358 = vld [vmem:[%s5 + $0xe0] sm:$0xff]
          %v5359 = vld [vmem:[%s5 + $0xe8] sm:$0xff]
          %v5360 = vld [vmem:[%s5 + $0xf0] sm:$0xff]
          %v5361 = vld [vmem:[%s5 + $0xf8] sm:$0xff]
          %v5362 = vld [vmem:[%s5 + $0x100] sm:$0xff]
          %v5363 = vld [vmem:[%s5 + $0x108] sm:$0xff]
          %v5364 = vld [vmem:[%s5 + $0x110] sm:$0xff]
          %v5365 = vld [vmem:[%s5 + $0x118] sm:$0xff]
          %v5366 = vld [vmem:[%s5 + $0x120] sm:$0xff]
          %v5367 = vld [vmem:[%s5 + $0x128] sm:$0xff]
          %v5368 = vld [vmem:[%s5 + $0x130] sm:$0xff]
          %v5369 = vld [vmem:[%s5 + $0x138] sm:$0xff]
          %v5370 = vld [vmem:[%s5 + $0x140] sm:$0xff]
          %v5371 = vld [vmem:[%s5 + $0x148] sm:$0xff]
          %v5372 = vld [vmem:[%s5 + $0x150] sm:$0xff]
          %v5373 = vld [vmem:[%s5 + $0x158] sm:$0xff]
          %v5374 = vld [vmem:[%s5 + $0x160] sm:$0xff]
          %v5375 = vld [vmem:[%s5 + $0x168] sm:$0xff]
          %v5376 = vld [vmem:[%s5 + $0x170] sm:$0xff]
          %v5377 = vld [vmem:[%s5 + $0x178] sm:$0xff]
          %v5378 = vld [vmem:[%s5 + $0x180] sm:$0xff]
          %v5379 = vld [vmem:[%s5 + $0x188] sm:$0xff]
          %v5380 = vld [vmem:[%s5 + $0x190] sm:$0xff]
          %v5381 = vld [vmem:[%s5 + $0x198] sm:$0xff]
          %v5382 = vld [vmem:[%s5 + $0x1a0] sm:$0xff]
          %v5383 = vld [vmem:[%s5 + $0x1a8] sm:$0xff]
          %v5384 = vld [vmem:[%s5 + $0x1b0] sm:$0xff]
          %v5385 = vld [vmem:[%s5 + $0x1b8] sm:$0xff]
          %v5386 = vld [vmem:[%s5 + $0x1c0] sm:$0xff]
          %v5387 = vld [vmem:[%s5 + $0x1c8] sm:$0xff]
          %v5388 = vld [vmem:[%s5 + $0x1d0] sm:$0xff]
          %v5389 = vld [vmem:[%s5 + $0x1d8] sm:$0xff]
          %v5390 = vld [vmem:[%s5 + $0x1e0] sm:$0xff]
          %v5391 = vld [vmem:[%s5 + $0x1e8] sm:$0xff]
          %v5392 = vld [vmem:[%s5 + $0x1f0] sm:$0xff]
          %v5393 = vld [vmem:[%s5 + $0x1f8] sm:$0xff]
          %v5394 = vld [vmem:[%s5 + $0x200] sm:$0xff]
          %v5395 = vld [vmem:[%s5 + $0x208] sm:$0xff]
          %v5396 = vld [vmem:[%s5 + $0x210] sm:$0xff]
          %v5397 = vld [vmem:[%s5 + $0x218] sm:$0xff]
          %v5398 = vld [vmem:[%s5 + $0x220] sm:$0xff]
          %v5399 = vld [vmem:[%s5 + $0x228] sm:$0xff]
          %v5400 = vld [vmem:[%s5 + $0x230] sm:$0xff]
          %v5401 = vld [vmem:[%s5 + $0x238] sm:$0xff]
          %v5402 = vld [vmem:[%s5 + $0x240] sm:$0xff]
          %v5403 = vld [vmem:[%s5 + $0x248] sm:$0xff]
          %v5404 = vld [vmem:[%s5 + $0x250] sm:$0xff]
          %v5405 = vld [vmem:[%s5 + $0x258] sm:$0xff]
          %v5406 = vld [vmem:[%s5 + $0x260] sm:$0xff]
          %v5407 = vld [vmem:[%s5 + $0x268] sm:$0xff]
          %v5408 = vld [vmem:[%s5 + $0x270] sm:$0xff]
          %v5409 = vld [vmem:[%s5 + $0x278] sm:$0xff]
          %v5410 = vld [vmem:[%s5 + $0x280] sm:$0xff]
          %v5411 = vld [vmem:[%s5 + $0x288] sm:$0xff]
          %v5412 = vld [vmem:[%s5 + $0x290] sm:$0xff]
          %v5413 = vld [vmem:[%s5 + $0x298] sm:$0xff]
          %v5414 = vld [vmem:[%s5 + $0x2a0] sm:$0xff]
          %v5415 = vld [vmem:[%s5 + $0x2a8] sm:$0xff]
          %v5416 = vld [vmem:[%s5 + $0x2b0] sm:$0xff]
          %v5417 = vld [vmem:[%s5 + $0x2b8] sm:$0xff]
          %v5418 = vld [vmem:[%s5 + $0x2c0] sm:$0xff]
          %v5419 = vld [vmem:[%s5 + $0x2c8] sm:$0xff]
          %v5420 = vld [vmem:[%s5 + $0x2d0] sm:$0xff]
          %v5421 = vld [vmem:[%s5 + $0x2d8] sm:$0xff]
          %v5422 = vld [vmem:[%s5 + $0x2e0] sm:$0xff]
          %v5423 = vld [vmem:[%s5 + $0x2e8] sm:$0xff]
          %v5424 = vld [vmem:[%s5 + $0x2f0] sm:$0xff]
          %v5425 = vld [vmem:[%s5 + $0x2f8] sm:$0xff]
          %v5426 = vld [vmem:[%s5 + $0x300] sm:$0xff]
          %v5427 = vld [vmem:[%s5 + $0x308] sm:$0xff]
          %v5428 = vld [vmem:[%s5 + $0x310] sm:$0xff]
          %v5429 = vld [vmem:[%s5 + $0x318] sm:$0xff]
          %v5430 = vld [vmem:[%s5 + $0x320] sm:$0xff]
          %v5431 = vld [vmem:[%s5 + $0x328] sm:$0xff]
          %v5432 = vld [vmem:[%s5 + $0x330] sm:$0xff]
          %v5433 = vld [vmem:[%s5 + $0x338] sm:$0xff]
          %v5434 = vld [vmem:[%s5 + $0x340] sm:$0xff]
          %v5435 = vld [vmem:[%s5 + $0x348] sm:$0xff]
          %v5436 = vld [vmem:[%s5 + $0x350] sm:$0xff]
          %v5437 = vld [vmem:[%s5 + $0x358] sm:$0xff]
          %v5438 = vld [vmem:[%s5 + $0x360] sm:$0xff]
          %v5439 = vld [vmem:[%s5 + $0x368] sm:$0xff]
          %v5440 = vld [vmem:[%s5 + $0x370] sm:$0xff]
          %v5441 = vld [vmem:[%s5 + $0x378] sm:$0xff]
          %v5442 = vld [vmem:[%s5 + $0x380] sm:$0xff]
          %v5443 = vld [vmem:[%s5 + $0x388] sm:$0xff]
          %v5444 = vld [vmem:[%s5 + $0x390] sm:$0xff]
          %v5445 = vld [vmem:[%s5 + $0x398] sm:$0xff]
          %v5446 = vld [vmem:[%s5 + $0x3a0] sm:$0xff]
          %v5447 = vld [vmem:[%s5 + $0x3a8] sm:$0xff]
          %v5448 = vld [vmem:[%s5 + $0x3b0] sm:$0xff]
          %v5449 = vld [vmem:[%s5 + $0x3b8] sm:$0xff]
          %v5450 = vld [vmem:[%s5 + $0x3c0] sm:$0xff]
          %v5451 = vld [vmem:[%s5 + $0x3c8] sm:$0xff]
          %v5452 = vld [vmem:[%s5 + $0x3d0] sm:$0xff]
          %v5453 = vld [vmem:[%s5 + $0x3d8] sm:$0xff]
          %v5454 = vld [vmem:[%s5 + $0x3e0] sm:$0xff]
          %v5455 = vld [vmem:[%s5 + $0x3e8] sm:$0xff]
          %v5456 = vld [vmem:[%s5 + $0x3f0] sm:$0xff]
          %v5457 = vld [vmem:[%s5 + $0x3f8] sm:$0xff]
          %v5458 = vld [vmem:[%s5 + $0x400] sm:$0xff]
          %v5459 = vld [vmem:[%s5 + $0x408] sm:$0xff]
          %v5460 = vld [vmem:[%s5 + $0x410] sm:$0xff]
          %v5461 = vld [vmem:[%s5 + $0x418] sm:$0xff]
          %v5462 = vld [vmem:[%s5 + $0x420] sm:$0xff]
          %v5463 = vld [vmem:[%s5 + $0x428] sm:$0xff]
          %v5464 = vld [vmem:[%s5 + $0x430] sm:$0xff]
          %v5465 = vld [vmem:[%s5 + $0x438] sm:$0xff]
          %v5466 = vld [vmem:[%s5 + $0x440] sm:$0xff]
          %v5467 = vld [vmem:[%s5 + $0x448] sm:$0xff]
          %v5468 = vld [vmem:[%s5 + $0x450] sm:$0xff]
          %v5469 = vld [vmem:[%s5 + $0x458] sm:$0xff]
          %v5470 = vld [vmem:[%s5 + $0x460] sm:$0xff]
          %v5471 = vld [vmem:[%s5 + $0x468] sm:$0xff]
          %v5472 = vld [vmem:[%s5 + $0x470] sm:$0xff]
          %v5473 = vld [vmem:[%s5 + $0x478] sm:$0xff]
          %v5474 = vld [vmem:[%s5 + $0x480] sm:$0xff]
          %v5475 = vld [vmem:[%s5 + $0x488] sm:$0xff]
          %v5476 = vld [vmem:[%s5 + $0x490] sm:$0xff]
          %v5477 = vld [vmem:[%s5 + $0x498] sm:$0xff]
          %v5478 = vld [vmem:[%s5 + $0x4a0] sm:$0xff]
          %v5479 = vld [vmem:[%s5 + $0x4a8] sm:$0xff]
          %v5480 = vld [vmem:[%s5 + $0x4b0] sm:$0xff]
          %v5481 = vld [vmem:[%s5 + $0x4b8] sm:$0xff]
          %v5482 = vld [vmem:[%s5 + $0x4c0] sm:$0xff]
          %v5483 = vld [vmem:[%s5 + $0x4c8] sm:$0xff]
          %v5484 = vld [vmem:[%s5 + $0x4d0] sm:$0xff]
          %v5485 = vld [vmem:[%s5 + $0x4d8] sm:$0xff]
          %v5486 = vld [vmem:[%s5 + $0x4e0] sm:$0xff]
          %v5487 = vld [vmem:[%s5 + $0x4e8] sm:$0xff]
          %v5488 = vld [vmem:[%s5 + $0x4f0] sm:$0xff]
          %v5489 = vld [vmem:[%s5 + $0x4f8] sm:$0xff]
          %v5490 = vld [vmem:[%s6] sm:$0x1]
          %v5493 = vlaneseq
          %v5494 = vshrl.u32 %v5493, 7
          %v5495 = vsub.s32 0, %v5494
          %v5496 = vrot.slane %v5326, %v5495
          %v5497 = vlaneseq
          %v5498 = vshrl.u32 %v5497, 7
          %v5499 = vsub.s32 1, %v5498
          %v5500 = vrot.slane %v5326, %v5499
          %v5501 = vlaneseq
          %v5502 = vshrl.u32 %v5501, 7
          %v5503 = vsub.s32 2, %v5502
          %v5504 = vrot.slane %v5326, %v5503
          %v5505 = vlaneseq
          %v5506 = vshrl.u32 %v5505, 7
          %v5507 = vsub.s32 3, %v5506
          %v5508 = vrot.slane %v5326, %v5507
          %v5509 = vlaneseq
          %v5510 = vshrl.u32 %v5509, 7
          %v5511 = vsub.s32 4, %v5510
          %v5512 = vrot.slane %v5326, %v5511
          %v5513 = vlaneseq
          %v5514 = vshrl.u32 %v5513, 7
          %v5515 = vsub.s32 5, %v5514
          %v5516 = vrot.slane %v5326, %v5515
          %v5517 = vlaneseq
          %v5518 = vshrl.u32 %v5517, 7
          %v5519 = vsub.s32 6, %v5518
          %v5520 = vrot.slane %v5326, %v5519
          %v5521 = vlaneseq
          %v5522 = vshrl.u32 %v5521, 7
          %v5523 = vsub.s32 7, %v5522
          %v5524 = vrot.slane %v5326, %v5523
          %v5525 = vlaneseq
          %v5526 = vshrl.u32 %v5525, 7
          %v5527 = vsub.s32 0, %v5526
          %v5528 = vrot.slane %v5327, %v5527
          %v5529 = vlaneseq
          %v5530 = vshrl.u32 %v5529, 7
          %v5531 = vsub.s32 1, %v5530
          %v5532 = vrot.slane %v5327, %v5531
          %5543 = vmatprep.subr.mxu0 0.0
          %5544 = vmatpush1.msra.mxu0 %v5330
          %5545 = vmatprep.subr.mxu0 0.0
          %5546 = vmatpush1.msra.mxu0 %v5331
          %5547 = vmatprep.subr.mxu0 0.0
          %5548 = vmatpush1.msra.mxu0 %v5332
          %5549 = vmatprep.subr.mxu0 0.0
          %5550 = vmatpush1.msra.mxu0 %v5333
          %5551 = vmatprep.subr.mxu0 0.0
          %5552 = vmatpush1.msra.mxu0 %v5334
          %5553 = vmatprep.subr.mxu0 0.0
          %5554 = vmatpush1.msra.mxu0 %v5335
          %5555 = vmatprep.subr.mxu0 0.0
          %5556 = vmatpush1.msra.mxu0 %v5336
          %5557 = vmatprep.subr.mxu0 0.0
          %5558 = vmatpush1.msra.mxu0 %v5337
          %5559 = vmatprep.subr.mxu0 0.0
          %5560 = vmatpush1.msra.mxu0 %v5338
          %5561 = vmatprep.subr.mxu0 0.0
          %5562 = vmatpush1.msra.mxu0 %v5339
          %5563 = vmatprep.subr.mxu0 0.0
          %5564 = vmatpush1.msra.mxu0 %v5340
          %5565 = vmatprep.subr.mxu0 0.0
          %5566 = vmatpush1.msra.mxu0 %v5341
          %5567 = vmatprep.subr.mxu0 0.0
          %5568 = vmatpush1.msra.mxu0 %v5342
          %5569 = vmatprep.subr.mxu0 0.0
          %5570 = vmatpush1.msra.mxu0 %v5343
          %5571 = vmatprep.subr.mxu0 0.0
          %5572 = vmatpush1.msra.mxu0 %v5344
          %5573 = vmatprep.subr.mxu0 0.0
          %5574 = vmatpush1.msra.mxu0 %v5345
          %5575 = vmatprep.subr.mxu0 0.0
          %5576 = vmatpush1.msra.mxu0 %v5346
          %5577 = vmatprep.subr.mxu0 0.0
          %5578 = vmatpush1.msra.mxu0 %v5347
          %5579 = vmatprep.subr.mxu0 0.0
          %5580 = vmatpush1.msra.mxu0 %v5348
          %5581 = vmatprep.subr.mxu0 0.0
          %5582 = vmatpush1.msra.mxu0 %v5349
          %5583 = vmatprep.subr.mxu0 0.0
          %5584 = vmatpush1.msra.mxu0 %v5350
          %5585 = vmatprep.subr.mxu0 0.0
          %5586 = vmatpush1.msra.mxu0 %v5351
          %5587 = vmatprep.subr.mxu0 0.0
          %5588 = vmatpush1.msra.mxu0 %v5352
          %5589 = vmatprep.subr.mxu0 0.0
          %5590 = vmatpush1.msra.mxu0 %v5353
          %5591 = vmatprep.subr.mxu0 0.0
          %5592 = vmatpush1.msra.mxu0 %v5354
          %5593 = vmatprep.subr.mxu0 0.0
          %5594 = vmatpush1.msra.mxu0 %v5355
          %5595 = vmatprep.subr.mxu0 0.0
          %5596 = vmatpush1.msra.mxu0 %v5356
          %5597 = vmatprep.subr.mxu0 0.0
          %5598 = vmatpush1.msra.mxu0 %v5357
          %5599 = vmatprep.subr.mxu0 0.0
          %5600 = vmatpush1.msra.mxu0 %v5358
          %5601 = vmatprep.subr.mxu0 0.0
          %5602 = vmatpush1.msra.mxu0 %v5359
          %5603 = vmatprep.subr.mxu0 0.0
          %5604 = vmatpush1.msra.mxu0 %v5360
          %5605 = vmatprep.subr.mxu0 0.0
          %5606 = vmatpush1.msra.mxu0 %v5361
          %5607 = vmatprep.mubr.f32.mxu0 %v5500
          %5608 = vmatmul.mubr.f32.gmra.mrb[0].mxu0 %v5496
          %v5609 = vpop.f32.mrb[0].mxu0
          %v5610 = vadd.f32 %v5490, %v5609
          %v5611 = vpop.f32.mrb[0].mxu0
          %5612 = vdwg.mxu0
          %5613 = vmatprep.subr.mxu0 0.0
          %5614 = vmatpush1.msra.mxu0 %v5362
          %5615 = vmatprep.subr.mxu0 0.0
          %5616 = vmatpush1.msra.mxu0 %v5363
          %5617 = vmatprep.subr.mxu0 0.0
          %5618 = vmatpush1.msra.mxu0 %v5364
          %5619 = vmatprep.subr.mxu0 0.0
          %5620 = vmatpush1.msra.mxu0 %v5365
          %5621 = vmatprep.subr.mxu0 0.0
          %5622 = vmatpush1.msra.mxu0 %v5366
          %5623 = vmatprep.subr.mxu0 0.0
          %5624 = vmatpush1.msra.mxu0 %v5367
          %5625 = vmatprep.subr.mxu0 0.0
          %5626 = vmatpush1.msra.mxu0 %v5368
          %5627 = vmatprep.subr.mxu0 0.0
          %5628 = vmatpush1.msra.mxu0 %v5369
          %5629 = vmatprep.subr.mxu0 0.0
          %5630 = vmatpush1.msra.mxu0 %v5370
          %5631 = vmatprep.subr.mxu0 0.0
          %5632 = vmatpush1.msra.mxu0 %v5371
          %5633 = vmatprep.subr.mxu0 0.0
          %5634 = vmatpush1.msra.mxu0 %v5372
          %5635 = vmatprep.subr.mxu0 0.0
          %5636 = vmatpush1.msra.mxu0 %v5373
          %5637 = vmatprep.subr.mxu0 0.0
          %5638 = vmatpush1.msra.mxu0 %v5374
          %5639 = vmatprep.subr.mxu0 0.0
          %5640 = vmatpush1.msra.mxu0 %v5375
          %5641 = vmatprep.subr.mxu0 0.0
          %5642 = vmatpush1.msra.mxu0 %v5376
          %5643 = vmatprep.subr.mxu0 0.0
          %5644 = vmatpush1.msra.mxu0 %v5377
          %5645 = vmatprep.subr.mxu0 0.0
          %5646 = vmatpush1.msra.mxu0 %v5378
          %5647 = vmatprep.subr.mxu0 0.0
          %5648 = vmatpush1.msra.mxu0 %v5379
          %5649 = vmatprep.subr.mxu0 0.0
          %5650 = vmatpush1.msra.mxu0 %v5380
          %5651 = vmatprep.subr.mxu0 0.0
          %5652 = vmatpush1.msra.mxu0 %v5381
          %5653 = vmatprep.subr.mxu0 0.0
          %5654 = vmatpush1.msra.mxu0 %v5382
          %5655 = vmatprep.subr.mxu0 0.0
          %5656 = vmatpush1.msra.mxu0 %v5383
          %5657 = vmatprep.subr.mxu0 0.0
          %5658 = vmatpush1.msra.mxu0 %v5384
          %5659 = vmatprep.subr.mxu0 0.0
          %5660 = vmatpush1.msra.mxu0 %v5385
          %5661 = vmatprep.subr.mxu0 0.0
          %5662 = vmatpush1.msra.mxu0 %v5386
          %5663 = vmatprep.subr.mxu0 0.0
          %5664 = vmatpush1.msra.mxu0 %v5387
          %5665 = vmatprep.subr.mxu0 0.0
          %5666 = vmatpush1.msra.mxu0 %v5388
          %5667 = vmatprep.subr.mxu0 0.0
          %5668 = vmatpush1.msra.mxu0 %v5389
          %5669 = vmatprep.subr.mxu0 0.0
          %5670 = vmatpush1.msra.mxu0 %v5390
          %5671 = vmatprep.subr.mxu0 0.0
          %5672 = vmatpush1.msra.mxu0 %v5391
          %5673 = vmatprep.subr.mxu0 0.0
          %5674 = vmatpush1.msra.mxu0 %v5392
          %5675 = vmatprep.subr.mxu0 0.0
          %5676 = vmatpush1.msra.mxu0 %v5393
          %5677 = vmatprep.mubr.f32.mxu0 %v5508
          %5678 = vmatmul.mubr.f32.gmra.mrb[0].mxu0 %v5504
          %v5679 = vpop.f32.mrb[0].mxu0
          %v5680 = vadd.f32 %v5610, %v5679
          %v5681 = vpop.f32.mrb[0].mxu0
          %5682 = vdwg.mxu0
          %5683 = vmatprep.subr.mxu0 0.0
          %5684 = vmatpush1.msra.mxu0 %v5394
          %5685 = vmatprep.subr.mxu0 0.0
          %5686 = vmatpush1.msra.mxu0 %v5395
          %5687 = vmatprep.subr.mxu0 0.0
          %5688 = vmatpush1.msra.mxu0 %v5396
          %5689 = vmatprep.subr.mxu0 0.0
          %5690 = vmatpush1.msra.mxu0 %v5397
          %5691 = vmatprep.subr.mxu0 0.0
          %5692 = vmatpush1.msra.mxu0 %v5398
          %5693 = vmatprep.subr.mxu0 0.0
          %5694 = vmatpush1.msra.mxu0 %v5399
          %5695 = vmatprep.subr.mxu0 0.0
          %5696 = vmatpush1.msra.mxu0 %v5400
          %5697 = vmatprep.subr.mxu0 0.0
          %5698 = vmatpush1.msra.mxu0 %v5401
          %5699 = vmatprep.subr.mxu0 0.0
          %5700 = vmatpush1.msra.mxu0 %v5402
          %5701 = vmatprep.subr.mxu0 0.0
          %5702 = vmatpush1.msra.mxu0 %v5403
          %5703 = vmatprep.subr.mxu0 0.0
          %5704 = vmatpush1.msra.mxu0 %v5404
          %5705 = vmatprep.subr.mxu0 0.0
          %5706 = vmatpush1.msra.mxu0 %v5405
          %5707 = vmatprep.subr.mxu0 0.0
          %5708 = vmatpush1.msra.mxu0 %v5406
          %5709 = vmatprep.subr.mxu0 0.0
          %5710 = vmatpush1.msra.mxu0 %v5407
          %5711 = vmatprep.subr.mxu0 0.0
          %5712 = vmatpush1.msra.mxu0 %v5408
          %5713 = vmatprep.subr.mxu0 0.0
          %5714 = vmatpush1.msra.mxu0 %v5409
          %5715 = vmatprep.subr.mxu0 0.0
          %5716 = vmatpush1.msra.mxu0 %v5410
          %5717 = vmatprep.subr.mxu0 0.0
          %5718 = vmatpush1.msra.mxu0 %v5411
          %5719 = vmatprep.subr.mxu0 0.0
          %5720 = vmatpush1.msra.mxu0 %v5412
          %5721 = vmatprep.subr.mxu0 0.0
          %5722 = vmatpush1.msra.mxu0 %v5413
          %5723 = vmatprep.subr.mxu0 0.0
          %5724 = vmatpush1.msra.mxu0 %v5414
          %5725 = vmatprep.subr.mxu0 0.0
          %5726 = vmatpush1.msra.mxu0 %v5415
          %5727 = vmatprep.subr.mxu0 0.0
          %5728 = vmatpush1.msra.mxu0 %v5416
          %5729 = vmatprep.subr.mxu0 0.0
          %5730 = vmatpush1.msra.mxu0 %v5417
          %5731 = vmatprep.subr.mxu0 0.0
          %5732 = vmatpush1.msra.mxu0 %v5418
          %5733 = vmatprep.subr.mxu0 0.0
          %5734 = vmatpush1.msra.mxu0 %v5419
          %5735 = vmatprep.subr.mxu0 0.0
          %5736 = vmatpush1.msra.mxu0 %v5420
          %5737 = vmatprep.subr.mxu0 0.0
          %5738 = vmatpush1.msra.mxu0 %v5421
          %5739 = vmatprep.subr.mxu0 0.0
          %5740 = vmatpush1.msra.mxu0 %v5422
          %5741 = vmatprep.subr.mxu0 0.0
          %5742 = vmatpush1.msra.mxu0 %v5423
          %5743 = vmatprep.subr.mxu0 0.0
          %5744 = vmatpush1.msra.mxu0 %v5424
          %5745 = vmatprep.subr.mxu0 0.0
          %5746 = vmatpush1.msra.mxu0 %v5425
          %5747 = vmatprep.mubr.f32.mxu0 %v5516
          %5748 = vmatmul.mubr.f32.gmra.mrb[0].mxu0 %v5512
          %v5749 = vpop.f32.mrb[0].mxu0
          %v5750 = vadd.f32 %v5680, %v5749
          %v5751 = vpop.f32.mrb[0].mxu0
          %5752 = vdwg.mxu0
          %5753 = vmatprep.subr.mxu0 0.0
          %5754 = vmatpush1.msra.mxu0 %v5426
          %5755 = vmatprep.subr.mxu0 0.0
          %5756 = vmatpush1.msra.mxu0 %v5427
          %5757 = vmatprep.subr.mxu0 0.0
          %5758 = vmatpush1.msra.mxu0 %v5428
          %5759 = vmatprep.subr.mxu0 0.0
          %5760 = vmatpush1.msra.mxu0 %v5429
          %5761 = vmatprep.subr.mxu0 0.0
          %5762 = vmatpush1.msra.mxu0 %v5430
          %5763 = vmatprep.subr.mxu0 0.0
          %5764 = vmatpush1.msra.mxu0 %v5431
          %5765 = vmatprep.subr.mxu0 0.0
          %5766 = vmatpush1.msra.mxu0 %v5432
          %5767 = vmatprep.subr.mxu0 0.0
          %5768 = vmatpush1.msra.mxu0 %v5433
          %5769 = vmatprep.subr.mxu0 0.0
          %5770 = vmatpush1.msra.mxu0 %v5434
          %5771 = vmatprep.subr.mxu0 0.0
          %5772 = vmatpush1.msra.mxu0 %v5435
          %5773 = vmatprep.subr.mxu0 0.0
          %5774 = vmatpush1.msra.mxu0 %v5436
          %5775 = vmatprep.subr.mxu0 0.0
          %5776 = vmatpush1.msra.mxu0 %v5437
          %5777 = vmatprep.subr.mxu0 0.0
          %5778 = vmatpush1.msra.mxu0 %v5438
          %5779 = vmatprep.subr.mxu0 0.0
          %5780 = vmatpush1.msra.mxu0 %v5439
          %5781 = vmatprep.subr.mxu0 0.0
          %5782 = vmatpush1.msra.mxu0 %v5440
          %5783 = vmatprep.subr.mxu0 0.0
          %5784 = vmatpush1.msra.mxu0 %v5441
          %5785 = vmatprep.subr.mxu0 0.0
          %5786 = vmatpush1.msra.mxu0 %v5442
          %5787 = vmatprep.subr.mxu0 0.0
          %5788 = vmatpush1.msra.mxu0 %v5443
          %5789 = vmatprep.subr.mxu0 0.0
          %5790 = vmatpush1.msra.mxu0 %v5444
          %5791 = vmatprep.subr.mxu0 0.0
          %5792 = vmatpush1.msra.mxu0 %v5445
          %5793 = vmatprep.subr.mxu0 0.0
          %5794 = vmatpush1.msra.mxu0 %v5446
          %5795 = vmatprep.subr.mxu0 0.0
          %5796 = vmatpush1.msra.mxu0 %v5447
          %5797 = vmatprep.subr.mxu0 0.0
          %5798 = vmatpush1.msra.mxu0 %v5448
          %5799 = vmatprep.subr.mxu0 0.0
          %5800 = vmatpush1.msra.mxu0 %v5449
          %5801 = vmatprep.subr.mxu0 0.0
          %5802 = vmatpush1.msra.mxu0 %v5450
          %5803 = vmatprep.subr.mxu0 0.0
          %5804 = vmatpush1.msra.mxu0 %v5451
          %5805 = vmatprep.subr.mxu0 0.0
          %5806 = vmatpush1.msra.mxu0 %v5452
          %5807 = vmatprep.subr.mxu0 0.0
          %5808 = vmatpush1.msra.mxu0 %v5453
          %5809 = vmatprep.subr.mxu0 0.0
          %5810 = vmatpush1.msra.mxu0 %v5454
          %5811 = vmatprep.subr.mxu0 0.0
          %5812 = vmatpush1.msra.mxu0 %v5455
          %5813 = vmatprep.subr.mxu0 0.0
          %5814 = vmatpush1.msra.mxu0 %v5456
          %5815 = vmatprep.subr.mxu0 0.0
          %5816 = vmatpush1.msra.mxu0 %v5457
          %5817 = vmatprep.mubr.f32.mxu0 %v5524
          %5818 = vmatmul.mubr.f32.gmra.mrb[0].mxu0 %v5520
          %v5819 = vpop.f32.mrb[0].mxu0
          %v5820 = vadd.f32 %v5750, %v5819
          %v5821 = vpop.f32.mrb[0].mxu0
          %5822 = vdwg.mxu0
          %5823 = vmatprep.subr.mxu0 0.0
          %5824 = vmatpush1.msra.mxu0 %v5458
          %5825 = vmatprep.subr.mxu0 0.0
          %5826 = vmatpush1.msra.mxu0 %v5459
          %5827 = vmatprep.subr.mxu0 0.0
          %5828 = vmatpush1.msra.mxu0 %v5460
          %5829 = vmatprep.subr.mxu0 0.0
          %5830 = vmatpush1.msra.mxu0 %v5461
          %5831 = vmatprep.subr.mxu0 0.0
          %5832 = vmatpush1.msra.mxu0 %v5462
          %5833 = vmatprep.subr.mxu0 0.0
          %5834 = vmatpush1.msra.mxu0 %v5463
          %5835 = vmatprep.subr.mxu0 0.0
          %5836 = vmatpush1.msra.mxu0 %v5464
          %5837 = vmatprep.subr.mxu0 0.0
          %5838 = vmatpush1.msra.mxu0 %v5465
          %5839 = vmatprep.subr.mxu0 0.0
          %5840 = vmatpush1.msra.mxu0 %v5466
          %5841 = vmatprep.subr.mxu0 0.0
          %5842 = vmatpush1.msra.mxu0 %v5467
          %5843 = vmatprep.subr.mxu0 0.0
          %5844 = vmatpush1.msra.mxu0 %v5468
          %5845 = vmatprep.subr.mxu0 0.0
          %5846 = vmatpush1.msra.mxu0 %v5469
          %5847 = vmatprep.subr.mxu0 0.0
          %5848 = vmatpush1.msra.mxu0 %v5470
          %5849 = vmatprep.subr.mxu0 0.0
          %5850 = vmatpush1.msra.mxu0 %v5471
          %5851 = vmatprep.subr.mxu0 0.0
          %5852 = vmatpush1.msra.mxu0 %v5472
          %5853 = vmatprep.subr.mxu0 0.0
          %5854 = vmatpush1.msra.mxu0 %v5473
          %5855 = vmatprep.subr.mxu0 0.0
          %5856 = vmatpush1.msra.mxu0 %v5474
          %5857 = vmatprep.subr.mxu0 0.0
          %5858 = vmatpush1.msra.mxu0 %v5475
          %5859 = vmatprep.subr.mxu0 0.0
          %5860 = vmatpush1.msra.mxu0 %v5476
          %5861 = vmatprep.subr.mxu0 0.0
          %5862 = vmatpush1.msra.mxu0 %v5477
          %5863 = vmatprep.subr.mxu0 0.0
          %5864 = vmatpush1.msra.mxu0 %v5478
          %5865 = vmatprep.subr.mxu0 0.0
          %5866 = vmatpush1.msra.mxu0 %v5479
          %5867 = vmatprep.subr.mxu0 0.0
          %5868 = vmatpush1.msra.mxu0 %v5480
          %5869 = vmatprep.subr.mxu0 0.0
          %5870 = vmatpush1.msra.mxu0 %v5481
          %5871 = vmatprep.subr.mxu0 0.0
          %5872 = vmatpush1.msra.mxu0 %v5482
          %5873 = vmatprep.subr.mxu0 0.0
          %5874 = vmatpush1.msra.mxu0 %v5483
          %5875 = vmatprep.subr.mxu0 0.0
          %5876 = vmatpush1.msra.mxu0 %v5484
          %5877 = vmatprep.subr.mxu0 0.0
          %5878 = vmatpush1.msra.mxu0 %v5485
          %5879 = vmatprep.subr.mxu0 0.0
          %5880 = vmatpush1.msra.mxu0 %v5486
          %5881 = vmatprep.subr.mxu0 0.0
          %5882 = vmatpush1.msra.mxu0 %v5487
          %5883 = vmatprep.subr.mxu0 0.0
          %5884 = vmatpush1.msra.mxu0 %v5488
          %5885 = vmatprep.subr.mxu0 0.0
          %5886 = vmatpush1.msra.mxu0 %v5489
          %5887 = vmatprep.mubr.f32.mxu0 %v5532
          %5888 = vmatmul.mubr.f32.gmra.mrb[0].mxu0 %v5528
          %v5889 = vpop.f32.mrb[0].mxu0
          %v5890 = vadd.f32 %v5820, %v5889
          %v5891 = vpop.f32.mrb[0].mxu0
          %5892 = vdwg.mxu0
          %vm5893 = vcmask 8192
          %5894 = vst.msk [vmem:[%s327] sm:$0x1] %vm5893, %v5890
        $region56: #{avgpool_cnn_forward.1} parent=47 // pred_fallthru
          _
        %p5895 = scmp.lt.s32.totalorder %s27, 1
        %s5896 = scalar_select %p5895, %s27, 1
        %s5897 = smul.addr %s5896, 10
        %s5898 = scalar_lea.vmem %s7, %s5897
        %s5899 = sand.u32 %s223, 1
        %s5900 = scalar_lea.sflag [#allocation4], %s5899
        %s5901 = sand.u32 %s223, 1
        %s5902 = scalar_lea.vmem [#allocation3], %s5901
        // Predicated region
        $region57: #{avgpool_cnn_forward.1} parent=47 // pred_check
          %p5903 = pneg %p207
        $region58: #{avgpool_cnn_forward.1} parent=47 // pred_check_branch
          %5905 = sbr.rel (%p5903) target = $region60
        $region59: #{avgpool_cnn_forward.1} parent=47 // pred_region
          _
        $region60: #{avgpool_cnn_forward.1} parent=47 // pred_fallthru
          _
        // Predicated region
        $region61: #{avgpool_cnn_forward.1} parent=47 // pred_check
          %p5906 = pneg %p233
        $region62: #{avgpool_cnn_forward.1} parent=47 // pred_check_branch
          %5908 = sbr.rel (%p5906) target = $region64
        $region63: #{avgpool_cnn_forward.1} parent=47 // pred_region
          %s5910 = ssub.s32 16, 16
          %5911 = vsyncadd %s5900, %s5910
          %s5912 = smul.addr %s27, 16
          %s5913 = scalar_lea.hbm %s8, %s5912
          %s5915 = sshll.u32 %s5902, 4
          %s5916 = int_to_ptr.vmem [resolvable:$true] %s5915
          %5918 = dma.vmem_to_hbm [thread:$0]  %s5916, 16, %s5913, %s5900
        $region64: #{avgpool_cnn_forward.1} parent=47 // pred_fallthru
          _
      $region48: #{avgpool_cnn_forward.1} parent=5 // pred_fallthru
        _
      %p5919 = scmp.le.s32.totalorder 2, %s18
      // Predicated region
      $region65: #{avgpool_cnn_forward.1} parent=5 // pred_check
        %p5920 = pneg %p5919
      $region66: #{avgpool_cnn_forward.1} parent=5 // pred_check_branch
        %5922 = sbr.rel (%p5920) target = $region68
      $region67: #{avgpool_cnn_forward.1} parent=5 // pred_region
        %s5923 = ssub.s32 %s18, 2
        // Predicated region
        $region69: #{avgpool_cnn_forward.1} parent=67 // pred_check
          %p5924 = pneg %p213
        $region70: #{avgpool_cnn_forward.1} parent=67 // pred_check_branch
          %5926 = sbr.rel (%p5924) target = $region72
        $region71: #{avgpool_cnn_forward.1} parent=67 // pred_region
          %p5927 = scmp.lt.s32.totalorder %s29, 1
          %s5928 = scalar_select %p5927, %s29, 1
          %s5929 = smul.addr %s5928, 10
          %s5930 = scalar_lea.vmem %s7, %s5929
        $region72: #{avgpool_cnn_forward.1} parent=67 // pred_fallthru
          _
        // Predicated region
        $region73: #{avgpool_cnn_forward.1} parent=67 // pred_check
          %p5931 = pneg %p239
        $region74: #{avgpool_cnn_forward.1} parent=67 // pred_check_branch
          %5933 = sbr.rel (%p5931) target = $region76
        $region75: #{avgpool_cnn_forward.1} parent=67 // pred_region
          %s5934 = sand.u32 %s224, 1
          %s5935 = scalar_lea.sflag [#allocation4], %s5934
          %s5936 = sand.u32 %s224, 1
          %s5937 = scalar_lea.vmem [#allocation3], %s5936
          %5938 = dma.done %s5935, 16
        $region76: #{avgpool_cnn_forward.1} parent=67 // pred_fallthru
          _
      $region68: #{avgpool_cnn_forward.1} parent=5 // pred_fallthru
        _
    $region6: #{avgpool_cnn_forward.1} parent=1 // loop_footer
      %s22 = sadd.s32 1, %s18
    $region7: #{avgpool_cnn_forward.1} parent=1 // loop_footer_branch
      %17 = sbr.rel target = $region3
    $region8: #{avgpool_cnn_forward.1} parent=1 // loop_exit
      _
    %5939 = vsyncpa [#allocation4], 1
    %s5940 = scalar_lea.sflag [#allocation4], 1
    %5941 = vsyncpa %s5940, 1

</llo_original>
